<compile_context>
chip_gen: v7x
topology: tpu7x:2x2x1
jax: 0.10.0
libtpu: 0.0.40
codegen_flags: <defaults>
</compile_context>

<pallas_src>
import functools

import jax
import jax.numpy as jnp
from jax.experimental import pallas as pl
from jax.experimental.pallas import tpu as pltpu

BF16 = jnp.bfloat16
F32 = jnp.float32

# Use the single big-K (K = 9*Cin) im2col matmul only for tiny Cin; for larger
# Cin accumulate nine K=Cin matmuls straight from the padded tile (no 9x
# staging buffer).  Production value would be ~32-64; set low here so the toy
# validation config exercises BOTH code paths.
_IM2COL_MAX_CIN = 6

# Explicit scoped-VMEM limit (raises v5e's 16 MiB default, safe on all chips).
_VMEM_LIMIT_BYTES = 32 * 1024 * 1024


# ----------------------------------------------------------------------------
# In-kernel helpers
# ----------------------------------------------------------------------------
def _zero_border(ref):
    """Zero only the 1-px border of a (Hp, Wp, C) f32 scratch tile."""
    Hp, Wp, C = ref.shape
    ref[pl.ds(0, 1), :, :] = jnp.zeros((1, Wp, C), F32)
    ref[pl.ds(Hp - 1, 1), :, :] = jnp.zeros((1, Wp, C), F32)
    ref[:, pl.ds(0, 1), :] = jnp.zeros((Hp, 1, C), F32)
    ref[:, pl.ds(Wp - 1, 1), :] = jnp.zeros((Hp, 1, C), F32)


def _conv3x3_taps(src_refs, *, stride, Ho, Wo):
    """Yield the nine (Ho*Wo, Cin) bf16 tap matrices of a 3x3 'same' conv.

    stride == 1: src_refs = (pad_ref,), the zero-bordered f32 input tile.
    stride == 2: src_refs = (ev_ref, od_ref), even/odd-column compact
                 de-interleaves of the padded tile (built once per conv).
    Reshapes are done while still f32 (layout-safe) and the result is cast to
    bf16 so the MXU sees bf16 operands.
    """
    if stride == 1:
        (pad_ref,) = src_refs
        C = pad_ref.shape[-1]
        for kh in range(3):
            for kw in range(3):
                sl = pad_ref[pl.ds(kh, Ho), pl.ds(kw, Wo), :]
                yield sl.reshape(Ho * Wo, C).astype(BF16)
    else:  # stride == 2
        ev_ref, od_ref = src_refs
        C = ev_ref.shape[-1]
        for kh in range(3):
            for kw in range(3):
                if kw == 0:
                    sl = ev_ref[pl.ds(kh, Ho, 2), pl.ds(0, Wo), :]
                elif kw == 1:
                    sl = od_ref[pl.ds(kh, Ho, 2), :, :]
                else:
                    sl = ev_ref[pl.ds(kh, Ho, 2), pl.ds(1, Wo), :]
                yield sl.reshape(Ho * Wo, C).astype(BF16)


def _conv3x3_bn(src_refs, col_ref, w_ref, scale, bias, *, stride, Ho, Wo):
    """3x3 'same' conv + folded BN.  Returns (Ho*Wo, Cout) f32.

    col_ref is not None : im2col path -> one MXU matmul, K = 9*Cin
                          (w_ref is a (9*Cin, Cout) bf16 ref).
    col_ref is None     : direct path -> nine K=Cin matmuls accumulated in f32
                          (w_ref is a (9, Cin, Cout) bf16 ref).
    """
    taps = _conv3x3_taps(src_refs, stride=stride, Ho=Ho, Wo=Wo)
    if col_ref is not None:
        C = src_refs[0].shape[-1]
        for k, tap in enumerate(taps):
            col_ref[:, pl.ds(k * C, C)] = tap
        y = jnp.dot(col_ref[...], w_ref[...], preferred_element_type=F32)
    else:
        cin, cout = w_ref.shape[1], w_ref.shape[2]
        y = None
        for k, tap in enumerate(taps):
            wk = w_ref[pl.ds(k, 1), :, :].reshape(cin, cout)
            part = jnp.dot(tap, wk, preferred_element_type=F32)
            y = part if y is None else y + part
    return y * scale + bias


def _basic_block_kernel(x_ref, w1_ref, s1_ref, b1_ref, w2_ref, s2_ref, b2_ref,
                        *rest, stride, has_down, im2col1, im2col2):
    """Fused torchvision-style BasicBlock:
        out = relu( bn2(conv2( relu(bn1(conv1(x))) )) + downsample(x) )

    x_ref : (H, W, Cin) bf16 (batch dim squeezed by BlockSpec)
    o_ref : (Ho, Wo, Cout) bf16
    """
    i = 0
    if has_down:
        wd_ref, sd_ref, bd_ref = rest[0], rest[1], rest[2]
        i = 3
    o_ref = rest[i]; i += 1
    pad1 = rest[i]; i += 1
    if stride == 2:
        ev1, od1 = rest[i], rest[i + 1]; i += 2
        src1 = (ev1, od1)
    else:
        src1 = (pad1,)
    pad2 = rest[i]; i += 1
    col1 = col2 = None
    if im2col1:
        col1 = rest[i]; i += 1
    if im2col2:
        col2 = rest[i]; i += 1

    H, W, Cin = x_ref.shape
    Ho, Wo, Cout = o_ref.shape
    Cmid = w1_ref.shape[-1]

    # ---- padded input tile: border-only zeroing + dense interior copy -------
    _zero_border(pad1)
    pad1[pl.ds(1, H), pl.ds(1, W), :] = x_ref[...].astype(F32)
    if stride == 2:
        # De-interleave W once (2 strided copies) instead of 9 strided tap
        # slices + 1 strided downsample slice.
        ev1[...] = pad1[:, pl.ds(0, Wo + 1, 2), :]
        od1[...] = pad1[:, pl.ds(1, Wo, 2), :]

    # ---- conv1: 3x3, stride, pad=1  + BN + ReLU ------------------------------
    h1 = _conv3x3_bn(src1, col1, w1_ref, s1_ref[...], b1_ref[...],
                     stride=stride, Ho=Ho, Wo=Wo)
    h1 = jnp.maximum(h1, 0.0)                               # (Ho*Wo, Cmid) f32

    # ---- identity / 1x1-strided downsample + BN ------------------------------
    if has_down:
        if stride == 1:
            xs = pad1[pl.ds(1, Ho), pl.ds(1, Wo), :]
        else:
            xs = od1[pl.ds(1, Ho, 2), :, :]
        xs = xs.reshape(Ho * Wo, Cin).astype(BF16)
        idn = jnp.dot(xs, wd_ref[...], preferred_element_type=F32)
        idn = idn * sd_ref[...] + bd_ref[...]
    else:
        # stride == 1 and Cin == Cout (asserted by the wrapper).
        idn = pad1[pl.ds(1, Ho), pl.ds(1, Wo), :].reshape(Ho * Wo, Cout)

    # ---- conv2: 3x3, stride 1, pad=1 + BN, + identity, ReLU ------------------
    _zero_border(pad2)
    pad2[pl.ds(1, Ho), pl.ds(1, Wo), :] = h1.reshape(Ho, Wo, Cmid)
    h2 = _conv3x3_bn((pad2,), col2, w2_ref, s2_ref[...], b2_ref[...],
                     stride=1, Ho=Ho, Wo=Wo)
    out = jnp.maximum(h2 + idn, 0.0)
    o_ref[...] = out.reshape(Ho, Wo, Cout).astype(o_ref.dtype)


def _deblocks_concat_kernel(*refs, level_shapes):
    """All deblocks (ConvTranspose2d with kernel==stride, no bias, + BN + ReLU)
    fused with the channel concat.

    Each level is ONE MXU matmul with N = s*s*Cu (instead of s*s small
    matmuls).  Because kernel==stride the taps never overlap, so each tap slab
    is scattered to its interleaved output position / channel slab.

    refs: per level (x (Hi,Wi,Ci) bf16, w (Ci, s*s*Cu) bf16, scale (1,s*s*Cu),
          bias (1,s*s*Cu)) ..., then o_ref (Ho, Wo, Ctot) f32.
    """
    o_ref = refs[-1]
    for li, (s, Hi, Wi, Ci, Cu, c0) in enumerate(level_shapes):
        x_ref, w_ref, sc_ref, bi_ref = refs[4 * li: 4 * li + 4]
        xf = x_ref[...].astype(F32).reshape(Hi * Wi, Ci).astype(BF16)
        y = jnp.dot(xf, w_ref[...], preferred_element_type=F32)  # (Hi*Wi, s*s*Cu)
        y = jnp.maximum(y * sc_ref[...] + bi_ref[...], 0.0)
        y = y.reshape(Hi, Wi, s * s * Cu).astype(o_ref.dtype)
        if s == 1:
            o_ref[:, :, pl.ds(c0, Cu)] = y
        else:
            for dy in range(s):
                for dx in range(s):
                    t = (dy * s + dx) * Cu
                    o_ref[pl.ds(dy, Hi, s), pl.ds(dx, Wi, s), pl.ds(c0, Cu)] = (
                        y[:, :, t:t + Cu])


# ----------------------------------------------------------------------------
# pallas_call wrappers (grid over batch; one image per grid step)
# ----------------------------------------------------------------------------
def basic_block(x, blk):
    """x: (N, H, W, Cin) bf16 -> (N, Ho, Wo, Cout) bf16, one pallas_call."""
    N, H, W, Cin = x.shape
    stride = int(blk["stride"])
    assert stride in (1, 2), "TODO(synk): layer strides > 2 not implemented"
    assert H % stride == 0 and W % stride == 0
    Ho, Wo = H // stride, W // stride
    Cmid = blk["conv1_w"].shape[-1]
    Cout = blk["conv2_w"].shape[-1]
    has_down = "down_w" in blk
    if not has_down:
        assert stride == 1 and Cin == Cout, (
            "identity residual path requires stride==1 and Cin==Cout")

    im2col1 = Cin <= _IM2COL_MAX_CIN
    im2col2 = Cmid <= _IM2COL_MAX_CIN
    # weight rows / taps ordered (kh, kw, cin); bf16 MXU operands
    w1 = blk["conv1_w"].reshape(
        (9 * Cin, Cmid) if im2col1 else (9, Cin, Cmid)).astype(BF16)
    w2 = blk["conv2_w"].reshape(
        (9 * Cmid, Cout) if im2col2 else (9, Cmid, Cout)).astype(BF16)

    def _full(shape):
        nd = len(shape)
        return pl.BlockSpec(shape, lambda n, _nd=nd: (0,) * _nd)

    args = [x, w1, blk["bn1_scale"], blk["bn1_bias"],
            w2, blk["bn2_scale"], blk["bn2_bias"]]
    in_specs = [pl.BlockSpec((None, H, W, Cin), lambda n: (n, 0, 0, 0)),
                _full(w1.shape), _full((1, Cmid)), _full((1, Cmid)),
                _full(w2.shape), _full((1, Cout)), _full((1, Cout))]
    if has_down:
        args += [blk["down_w"].astype(BF16), blk["down_scale"], blk["down_bias"]]
        in_specs += [_full((Cin, Cout)), _full((1, Cout)), _full((1, Cout))]

    scratch = [pltpu.VMEM((H + 2, W + 2, Cin), F32)]            # pad1 (halo)
    if stride == 2:
        scratch += [pltpu.VMEM((H + 2, Wo + 1, Cin), F32),      # even columns
                    pltpu.VMEM((H + 2, Wo, Cin), F32)]          # odd columns
    scratch += [pltpu.VMEM((Ho + 2, Wo + 2, Cmid), F32)]        # pad2 (halo)
    if im2col1:
        scratch += [pltpu.VMEM((Ho * Wo, 9 * Cin), BF16)]       # im2col conv1
    if im2col2:
        scratch += [pltpu.VMEM((Ho * Wo, 9 * Cmid), BF16)]      # im2col conv2

    kernel = functools.partial(_basic_block_kernel, stride=stride,
                               has_down=has_down, im2col1=im2col1,
                               im2col2=im2col2)
    return pl.pallas_call(
        kernel,
        out_shape=jax.ShapeDtypeStruct((N, Ho, Wo, Cout), BF16),
        grid=(N,),
        in_specs=in_specs,
        out_specs=pl.BlockSpec((None, Ho, Wo, Cout), lambda n: (n, 0, 0, 0)),
        scratch_shapes=scratch,
        compiler_params=pltpu.CompilerParams(
            dimension_semantics=("parallel",),
            vmem_limit_bytes=_VMEM_LIMIT_BYTES),
    )(*args)


def deblocks_concat(feats, deblocks):
    """All deconv+BN+ReLU deblocks + channel concat in one pallas_call."""
    assert len(feats) == len(deblocks) and len(feats) >= 1
    N = feats[0].shape[0]
    args, in_specs, level_shapes = [], [], []
    Ho = Wo = None
    c0 = 0
    for f, db in zip(feats, deblocks):
        _, Hi, Wi, Ci = f.shape
        s = int(db["s"])
        Cu = db["w"].shape[-1]
        if Ho is None:
            Ho, Wo = Hi * s, Wi * s
        else:
            assert (Hi * s, Wi * s) == (Ho, Wo)
        # (s, s, Ci, Cu) -> (Ci, s*s*Cu); matmul columns ordered (dy, dx, cu)
        wk = jnp.transpose(db["w"], (2, 0, 1, 3)).reshape(Ci, s * s * Cu).astype(BF16)
        sc = jnp.tile(db["scale"], (1, s * s))
        bi = jnp.tile(db["bias"], (1, s * s))
        args += [f.astype(BF16), wk, sc, bi]
        in_specs += [
            pl.BlockSpec((None, Hi, Wi, Ci), lambda n: (n, 0, 0, 0)),
            pl.BlockSpec((Ci, s * s * Cu), lambda n: (0, 0)),
            pl.BlockSpec((1, s * s * Cu), lambda n: (0, 0)),
            pl.BlockSpec((1, s * s * Cu), lambda n: (0, 0)),
        ]
        level_shapes.append((s, Hi, Wi, Ci, Cu, c0))
        c0 += Cu
    Ctot = c0

    kernel = functools.partial(_deblocks_concat_kernel,
                               level_shapes=tuple(level_shapes))
    return pl.pallas_call(
        kernel,
        out_shape=jax.ShapeDtypeStruct((N, Ho, Wo, Ctot), F32),
        grid=(N,),
        in_specs=in_specs,
        out_specs=pl.BlockSpec((None, Ho, Wo, Ctot), lambda n: (n, 0, 0, 0)),
        compiler_params=pltpu.CompilerParams(
            dimension_semantics=("parallel",),
            vmem_limit_bytes=_VMEM_LIMIT_BYTES),
    )(*args)


# ----------------------------------------------------------------------------
# Parameter construction (deterministic, synthetic).
# Weight layouts: conv = HWIO (kh, kw, cin, cout).  When porting real PyTorch
# weights: Conv2d (Cout, Cin, kH, kW) -> transpose(2, 3, 1, 0);
# ConvTranspose2d (Cin, Cout, kH, kW) -> transpose(2, 3, 0, 1) (no spatial
# flip since kernel == stride).
# ----------------------------------------------------------------------------
def _fold_bn(key, c, eps):
    k1, k2, k3, k4 = jax.random.split(key, 4)
    gamma = 1.0 + 0.1 * jax.random.normal(k1, (c,), F32)
    beta = 0.1 * jax.random.normal(k2, (c,), F32)
    mean = 0.1 * jax.random.normal(k3, (c,), F32)
    var = 1.0 + 0.1 * jax.random.uniform(k4, (c,), F32)
    scale = gamma / jnp.sqrt(var + eps)
    bias = beta - mean * scale
    return scale.reshape(1, c), bias.reshape(1, c)


def _conv_w(key, kh, kw, cin, cout):
    fan_in = kh * kw * cin
    return (jax.random.normal(key, (kh, kw, cin, cout), F32)
            / jnp.sqrt(jnp.float32(fan_in)))


def build_params(key, model_cfg, input_channels):
    layer_nums = model_cfg["layer_nums"]
    layer_strides = model_cfg["layer_strides"]
    num_filters = model_cfg["num_filters"]
    up_strides = model_cfg["upsample_strides"]
    num_up = model_cfg["num_upsample_filter"]

    keys = iter(jax.random.split(key, 256))

    layers = []
    inplanes = input_channels
    for i in range(len(layer_nums)):
        planes = num_filters[i]
        blocks = []
        for b in range(layer_nums[i]):
            stride = layer_strides[i] if b == 0 else 1
            blk = {"stride": stride}
            blk["conv1_w"] = _conv_w(next(keys), 3, 3, inplanes, planes)
            blk["bn1_scale"], blk["bn1_bias"] = _fold_bn(next(keys), planes, 1e-5)
            blk["conv2_w"] = _conv_w(next(keys), 3, 3, planes, planes)
            blk["bn2_scale"], blk["bn2_bias"] = _fold_bn(next(keys), planes, 1e-5)
            if stride != 1 or inplanes != planes:
                blk["down_w"] = _conv_w(next(keys), 1, 1, inplanes, planes)[0, 0]
                blk["down_scale"], blk["down_bias"] = _fold_bn(next(keys), planes, 1e-5)
            blocks.append(blk)
            inplanes = planes
        layers.append(blocks)

    deblocks = []
    for i in range(len(layer_nums)):
        s = up_strides[i]
        assert s >= 1  # TODO(synk): stride<1 (Conv2d downsample) branch not implemented
        w = _conv_w(next(keys), s, s, num_filters[i], num_up[i])
        scale, bias = _fold_bn(next(keys), num_up[i], 1e-3)
        deblocks.append({"s": int(s), "w": w, "scale": scale, "bias": bias})

    extra = None
    if len(up_strides) > len(layer_nums):
        s = int(up_strides[-1])
        c_in = sum(num_up)
        w = _conv_w(next(keys), s, s, c_in, c_in)
        scale, bias = _fold_bn(next(keys), c_in, 1e-3)
        extra = {"s": s, "w": w, "scale": scale, "bias": bias}

    return {"layers": layers, "deblocks": deblocks, "extra_deblock": extra}


# ----------------------------------------------------------------------------
# Forward pass (Pallas)
# ----------------------------------------------------------------------------
def res_bev_backbone_forward(params, spatial_features_nchw):
    """NCHW f32 in (like the PyTorch module) -> NCHW f32 spatial_features_2d."""
    x = jnp.transpose(spatial_features_nchw, (0, 2, 3, 1)).astype(BF16)  # NHWC
    feats = []
    h = x
    for level in params["layers"]:
        for blk in level:
            h = basic_block(h, blk)
        feats.append(h)
    out = deblocks_concat(feats, params["deblocks"])
    if params["extra_deblock"] is not None:
        out = deblocks_concat([out], [params["extra_deblock"]])
    return jnp.transpose(out, (0, 3, 1, 2))                               # NCHW


# ----------------------------------------------------------------------------
# Pure-JAX reference (replicates the kernel's bf16-operand / f32-accumulate
# numerics so the tolerance can stay tight).
# ----------------------------------------------------------------------------
def _ref_conv3x3(x, w, scale, bias, stride, relu, residual=None):
    y = jax.lax.conv_general_dilated(
        x.astype(BF16), w.astype(BF16), (stride, stride), ((1, 1), (1, 1)),
        dimension_numbers=("NHWC", "HWIO", "NHWC"),
        preferred_element_type=F32)
    y = y * scale.reshape(1, 1, 1, -1) + bias.reshape(1, 1, 1, -1)
    if residual is not None:
        y = y + residual
    if relu:
        y = jnp.maximum(y, 0.0)
    return y


def _ref_conv1x1(x, w, scale, bias, stride):
    xs = x[:, ::stride, ::stride, :].astype(BF16)
    y = jnp.einsum("nhwc,cd->nhwd", xs, w.astype(BF16),
                   preferred_element_type=F32)
    return y * scale.reshape(1, 1, 1, -1) + bias.reshape(1, 1, 1, -1)


def _ref_deconv(x, w, scale, bias, s):
    N, H, W, _ = x.shape
    Cout = w.shape[-1]
    y = jnp.einsum("nhwc,ijcd->nhiwjd", x.astype(BF16), w.astype(BF16),
                   preferred_element_type=F32)          # (N, H, s, W, s, Cout)
    y = y.reshape(N, H * s, W * s, Cout)
    return jnp.maximum(
        y * scale.reshape(1, 1, 1, -1) + bias.reshape(1, 1, 1, -1), 0.0)


def ref_forward(params, spatial_features_nchw):
    x = jnp.transpose(spatial_features_nchw, (0, 2, 3, 1)).astype(BF16)
    feats = []
    h = x
    for level in params["layers"]:
        for blk in level:
            s = blk["stride"]
            mid = _ref_conv3x3(h, blk["conv1_w"], blk["bn1_scale"],
                               blk["bn1_bias"], s, relu=True)
            if "down_w" in blk:
                identity = _ref_conv1x1(h, blk["down_w"], blk["down_scale"],
                                        blk["down_bias"], s)
            else:
                identity = h.astype(F32)
            h = _ref_conv3x3(mid.astype(BF16), blk["conv2_w"], blk["bn2_scale"],
                             blk["bn2_bias"], 1, relu=True, residual=identity)
            h = h.astype(BF16)          # inter-block activations stored as bf16
        feats.append(h)
    ups = [_ref_deconv(f, db["w"], db["scale"], db["bias"], db["s"])
           for f, db in zip(feats, params["deblocks"])]
    out = jnp.concatenate(ups, axis=-1) if len(ups) > 1 else ups[0]
    if params["extra_deblock"] is not None:
        db = params["extra_deblock"]
        out = _ref_deconv(out, db["w"], db["scale"], db["bias"], db["s"])
    return jnp.transpose(out, (0, 3, 1, 2))


# ----------------------------------------------------------------------------
# Main
# ----------------------------------------------------------------------------
if __name__ == "__main__":
    # Small config that still exercises: im2col + direct conv paths, stride-1
    # and stride-2 blocks, 1x1 downsample (stride 1 and 2), a no-downsample
    # block, s=1 and s=2 deblocks, and the channel concat.
    model_cfg = {
        "layer_nums": [1, 2],
        "layer_strides": [1, 2],
        "num_filters": [8, 8],
        "upsample_strides": [1, 2],
        "num_upsample_filter": [8, 8],
    }
    input_channels = 4
    N, H, W = 2, 16, 16

    key = jax.random.PRNGKey(0)
    k_in, k_params = jax.random.split(key)
    spatial_features = jax.random.normal(k_in, (N, input_channels, H, W), F32)
    params = build_params(k_params, model_cfg, input_channels)

    out = jax.block_until_ready(res_bev_backbone_forward(params, spatial_features))

    c_out = sum(model_cfg["num_upsample_filter"])
    assert out.shape == (N, c_out, H, W), out.shape
    assert out.dtype == jnp.float32

    ref = jax.block_until_ready(ref_forward(params, spatial_features))
    max_err = float(jnp.max(jnp.abs(out - ref)))
    assert jnp.allclose(out, ref, atol=3e-2, rtol=3e-2), f"max_err={max_err}"

    print("KERNEL_OK")
</pallas_src>

<mosaic_0001>
module attributes {stable_mosaic.version = 11 : i64} {
  func.func @_basic_block_kernel(%arg0: i32, %arg1: memref<1x16x16x4xbf16, #tpu.memory_space<vmem>>, %arg2: memref<36x8xbf16, #tpu.memory_space<vmem>>, %arg3: memref<1x8xf32, #tpu.memory_space<vmem>>, %arg4: memref<1x8xf32, #tpu.memory_space<vmem>>, %arg5: memref<9x8x8xbf16, #tpu.memory_space<vmem>>, %arg6: memref<1x8xf32, #tpu.memory_space<vmem>>, %arg7: memref<1x8xf32, #tpu.memory_space<vmem>>, %arg8: memref<4x8xbf16, #tpu.memory_space<vmem>>, %arg9: memref<1x8xf32, #tpu.memory_space<vmem>>, %arg10: memref<1x8xf32, #tpu.memory_space<vmem>>, %arg11: memref<1x16x16x8xbf16, #tpu.memory_space<vmem>>, %arg12: memref<18x18x4xf32, #tpu.memory_space<vmem>>, %arg13: memref<18x18x8xf32, #tpu.memory_space<vmem>>, %arg14: memref<256x36xbf16, #tpu.memory_space<vmem>>) attributes {dimension_semantics = [#tpu.dimension_semantics<parallel>], iteration_bounds = array<i64: 2>, scalar_prefetch = 0 : i64, scratch_operands = 3 : i64, tpu.core_type = #tpu.core_type<tc>, window_params = [{transform_indices = @transform_0, window_bounds = array<i64: 1, 16, 16, 4>}, {pipeline_mode = #tpu.pipeline_mode<synchronous>, transform_indices = @transform_1, window_bounds = array<i64: 36, 8>}, {pipeline_mode = #tpu.pipeline_mode<synchronous>, transform_indices = @transform_2, window_bounds = array<i64: 1, 8>}, {pipeline_mode = #tpu.pipeline_mode<synchronous>, transform_indices = @transform_3, window_bounds = array<i64: 1, 8>}, {pipeline_mode = #tpu.pipeline_mode<synchronous>, transform_indices = @transform_4, window_bounds = array<i64: 9, 8, 8>}, {pipeline_mode = #tpu.pipeline_mode<synchronous>, transform_indices = @transform_5, window_bounds = array<i64: 1, 8>}, {pipeline_mode = #tpu.pipeline_mode<synchronous>, transform_indices = @transform_6, window_bounds = array<i64: 1, 8>}, {pipeline_mode = #tpu.pipeline_mode<synchronous>, transform_indices = @transform_7, window_bounds = array<i64: 4, 8>}, {pipeline_mode = #tpu.pipeline_mode<synchronous>, transform_indices = @transform_8, window_bounds = array<i64: 1, 8>}, {pipeline_mode = #tpu.pipeline_mode<synchronous>, transform_indices = @transform_9, window_bounds = array<i64: 1, 8>}, {transform_indices = @transform_10, window_bounds = array<i64: 1, 16, 16, 8>}]} {
    %cst = arith.constant 0.000000e+00 : f32
    %0 = vector.broadcast %cst : f32 to vector<1x18x4xf32>
    %c0 = arith.constant 0 : index
    %c0_0 = arith.constant 0 : index
    %c0_1 = arith.constant 0 : index
    %1 = vector.load %arg12[%c0, %c0_0, %c0_1] : memref<18x18x4xf32, #tpu.memory_space<vmem>>, vector<1x18x4xf32>
    tpu.vector_store %arg12[%c0, %c0_0, %c0_1], %0 {strides = array<i32>} : memref<18x18x4xf32, #tpu.memory_space<vmem>>, vector<1x18x4xf32>,
    %cst_2 = arith.constant 0.000000e+00 : f32
    %2 = vector.broadcast %cst_2 : f32 to vector<1x18x4xf32>
    %c17 = arith.constant 17 : index
    %c0_3 = arith.constant 0 : index
    %c0_4 = arith.constant 0 : index
    %3 = vector.load %arg12[%c17, %c0_3, %c0_4] : memref<18x18x4xf32, #tpu.memory_space<vmem>>, vector<1x18x4xf32>
    tpu.vector_store %arg12[%c17, %c0_3, %c0_4], %2 {strides = array<i32>} : memref<18x18x4xf32, #tpu.memory_space<vmem>>, vector<1x18x4xf32>,
    %cst_5 = arith.constant 0.000000e+00 : f32
    %4 = vector.broadcast %cst_5 : f32 to vector<18x1x4xf32>
    %c0_6 = arith.constant 0 : index
    %c0_7 = arith.constant 0 : index
    %c0_8 = arith.constant 0 : index
    %5 = vector.load %arg12[%c0_6, %c0_7, %c0_8] : memref<18x18x4xf32, #tpu.memory_space<vmem>>, vector<18x1x4xf32>
    tpu.vector_store %arg12[%c0_6, %c0_7, %c0_8], %4 {strides = array<i32>} : memref<18x18x4xf32, #tpu.memory_space<vmem>>, vector<18x1x4xf32>,
    %cst_9 = arith.constant 0.000000e+00 : f32
    %6 = vector.broadcast %cst_9 : f32 to vector<18x1x4xf32>
    %c0_10 = arith.constant 0 : index
    %c17_11 = arith.constant 17 : index
    %c0_12 = arith.constant 0 : index
    %7 = vector.load %arg12[%c0_10, %c17_11, %c0_12] : memref<18x18x4xf32, #tpu.memory_space<vmem>>, vector<18x1x4xf32>
    tpu.vector_store %arg12[%c0_10, %c17_11, %c0_12], %6 {strides = array<i32>} : memref<18x18x4xf32, #tpu.memory_space<vmem>>, vector<18x1x4xf32>,
    %c0_13 = arith.constant 0 : index
    %c0_14 = arith.constant 0 : index
    %c0_15 = arith.constant 0 : index
    %c0_16 = arith.constant 0 : index
    %8 = vector.load %arg1[%c0_13, %c0_14, %c0_15, %c0_16] : memref<1x16x16x4xbf16, #tpu.memory_space<vmem>>, vector<1x16x16x4xbf16>
    %9 = vector.shape_cast %8 : vector<1x16x16x4xbf16> to vector<16x16x4xbf16>
    %10 = arith.extf %9 : vector<16x16x4xbf16> to vector<16x16x4xf32>
    %c1 = arith.constant 1 : index
    %c1_17 = arith.constant 1 : index
    %c0_18 = arith.constant 0 : index
    %11 = vector.load %arg12[%c1, %c1_17, %c0_18] : memref<18x18x4xf32, #tpu.memory_space<vmem>>, vector<16x16x4xf32>
    tpu.vector_store %arg12[%c1, %c1_17, %c0_18], %10 {strides = array<i32>} : memref<18x18x4xf32, #tpu.memory_space<vmem>>, vector<16x16x4xf32>,
    %c0_19 = arith.constant 0 : index
    %c0_20 = arith.constant 0 : index
    %12 = vector.load %arg3[%c0_19, %c0_20] : memref<1x8xf32, #tpu.memory_space<vmem>>, vector<1x8xf32>
    %c0_21 = arith.constant 0 : index
    %c0_22 = arith.constant 0 : index
    %13 = vector.load %arg4[%c0_21, %c0_22] : memref<1x8xf32, #tpu.memory_space<vmem>>, vector<1x8xf32>
    %c0_23 = arith.constant 0 : index
    %c0_24 = arith.constant 0 : index
    %c0_25 = arith.constant 0 : index
    %14 = vector.load %arg12[%c0_23, %c0_24, %c0_25] : memref<18x18x4xf32, #tpu.memory_space<vmem>>, vector<16x16x4xf32>
    %15 = vector.shape_cast %14 : vector<16x16x4xf32> to vector<256x4xf32>
    %16 = arith.truncf %15 : vector<256x4xf32> to vector<256x4xbf16>
    %c0_26 = arith.constant 0 : index
    %c0_27 = arith.constant 0 : index
    %17 = vector.load %arg14[%c0_26, %c0_27] : memref<256x36xbf16, #tpu.memory_space<vmem>>, vector<256x4xbf16>
    tpu.vector_store %arg14[%c0_26, %c0_27], %16 {strides = array<i32>} : memref<256x36xbf16, #tpu.memory_space<vmem>>, vector<256x4xbf16>,
    %c0_28 = arith.constant 0 : index
    %c1_29 = arith.constant 1 : index
    %c0_30 = arith.constant 0 : index
    %18 = vector.load %arg12[%c0_28, %c1_29, %c0_30] : memref<18x18x4xf32, #tpu.memory_space<vmem>>, vector<16x16x4xf32>
    %19 = vector.shape_cast %18 : vector<16x16x4xf32> to vector<256x4xf32>
    %20 = arith.truncf %19 : vector<256x4xf32> to vector<256x4xbf16>
    %c0_31 = arith.constant 0 : index
    %c4 = arith.constant 4 : index
    %21 = vector.load %arg14[%c0_31, %c4] : memref<256x36xbf16, #tpu.memory_space<vmem>>, vector<256x4xbf16>
    tpu.vector_store %arg14[%c0_31, %c4], %20 {strides = array<i32>} : memref<256x36xbf16, #tpu.memory_space<vmem>>, vector<256x4xbf16>,
    %c0_32 = arith.constant 0 : index
    %c2 = arith.constant 2 : index
    %c0_33 = arith.constant 0 : index
    %22 = vector.load %arg12[%c0_32, %c2, %c0_33] : memref<18x18x4xf32, #tpu.memory_space<vmem>>, vector<16x16x4xf32>
    %23 = vector.shape_cast %22 : vector<16x16x4xf32> to vector<256x4xf32>
    %24 = arith.truncf %23 : vector<256x4xf32> to vector<256x4xbf16>
    %c0_34 = arith.constant 0 : index
    %c8 = arith.constant 8 : index
    %25 = vector.load %arg14[%c0_34, %c8] : memref<256x36xbf16, #tpu.memory_space<vmem>>, vector<256x4xbf16>
    tpu.vector_store %arg14[%c0_34, %c8], %24 {strides = array<i32>} : memref<256x36xbf16, #tpu.memory_space<vmem>>, vector<256x4xbf16>,
    %c1_35 = arith.constant 1 : index
    %c0_36 = arith.constant 0 : index
    %c0_37 = arith.constant 0 : index
    %26 = vector.load %arg12[%c1_35, %c0_36, %c0_37] : memref<18x18x4xf32, #tpu.memory_space<vmem>>, vector<16x16x4xf32>
    %27 = vector.shape_cast %26 : vector<16x16x4xf32> to vector<256x4xf32>
    %28 = arith.truncf %27 : vector<256x4xf32> to vector<256x4xbf16>
    %c0_38 = arith.constant 0 : index
    %c12 = arith.constant 12 : index
    %29 = vector.load %arg14[%c0_38, %c12] : memref<256x36xbf16, #tpu.memory_space<vmem>>, vector<256x4xbf16>
    tpu.vector_store %arg14[%c0_38, %c12], %28 {strides = array<i32>} : memref<256x36xbf16, #tpu.memory_space<vmem>>, vector<256x4xbf16>,
    %c1_39 = arith.constant 1 : index
    %c1_40 = arith.constant 1 : index
    %c0_41 = arith.constant 0 : index
    %30 = vector.load %arg12[%c1_39, %c1_40, %c0_41] : memref<18x18x4xf32, #tpu.memory_space<vmem>>, vector<16x16x4xf32>
    %31 = vector.shape_cast %30 : vector<16x16x4xf32> to vector<256x4xf32>
    %32 = arith.truncf %31 : vector<256x4xf32> to vector<256x4xbf16>
    %c0_42 = arith.constant 0 : index
    %c16 = arith.constant 16 : index
    %33 = vector.load %arg14[%c0_42, %c16] : memref<256x36xbf16, #tpu.memory_space<vmem>>, vector<256x4xbf16>
    tpu.vector_store %arg14[%c0_42, %c16], %32 {strides = array<i32>} : memref<256x36xbf16, #tpu.memory_space<vmem>>, vector<256x4xbf16>,
    %c1_43 = arith.constant 1 : index
    %c2_44 = arith.constant 2 : index
    %c0_45 = arith.constant 0 : index
    %34 = vector.load %arg12[%c1_43, %c2_44, %c0_45] : memref<18x18x4xf32, #tpu.memory_space<vmem>>, vector<16x16x4xf32>
    %35 = vector.shape_cast %34 : vector<16x16x4xf32> to vector<256x4xf32>
    %36 = arith.truncf %35 : vector<256x4xf32> to vector<256x4xbf16>
    %c0_46 = arith.constant 0 : index
    %c20 = arith.constant 20 : index
    %37 = vector.load %arg14[%c0_46, %c20] : memref<256x36xbf16, #tpu.memory_space<vmem>>, vector<256x4xbf16>
    tpu.vector_store %arg14[%c0_46, %c20], %36 {strides = array<i32>} : memref<256x36xbf16, #tpu.memory_space<vmem>>, vector<256x4xbf16>,
    %c2_47 = arith.constant 2 : index
    %c0_48 = arith.constant 0 : index
    %c0_49 = arith.constant 0 : index
    %38 = vector.load %arg12[%c2_47, %c0_48, %c0_49] : memref<18x18x4xf32, #tpu.memory_space<vmem>>, vector<16x16x4xf32>
    %39 = vector.shape_cast %38 : vector<16x16x4xf32> to vector<256x4xf32>
    %40 = arith.truncf %39 : vector<256x4xf32> to vector<256x4xbf16>
    %c0_50 = arith.constant 0 : index
    %c24 = arith.constant 24 : index
    %41 = vector.load %arg14[%c0_50, %c24] : memref<256x36xbf16, #tpu.memory_space<vmem>>, vector<256x4xbf16>
    tpu.vector_store %arg14[%c0_50, %c24], %40 {strides = array<i32>} : memref<256x36xbf16, #tpu.memory_space<vmem>>, vector<256x4xbf16>,
    %c2_51 = arith.constant 2 : index
    %c1_52 = arith.constant 1 : index
    %c0_53 = arith.constant 0 : index
    %42 = vector.load %arg12[%c2_51, %c1_52, %c0_53] : memref<18x18x4xf32, #tpu.memory_space<vmem>>, vector<16x16x4xf32>
    %43 = vector.shape_cast %42 : vector<16x16x4xf32> to vector<256x4xf32>
    %44 = arith.truncf %43 : vector<256x4xf32> to vector<256x4xbf16>
    %c0_54 = arith.constant 0 : index
    %c28 = arith.constant 28 : index
    %45 = vector.load %arg14[%c0_54, %c28] : memref<256x36xbf16, #tpu.memory_space<vmem>>, vector<256x4xbf16>
    tpu.vector_store %arg14[%c0_54, %c28], %44 {strides = array<i32>} : memref<256x36xbf16, #tpu.memory_space<vmem>>, vector<256x4xbf16>,
    %c2_55 = arith.constant 2 : index
    %c2_56 = arith.constant 2 : index
    %c0_57 = arith.constant 0 : index
    %46 = vector.load %arg12[%c2_55, %c2_56, %c0_57] : memref<18x18x4xf32, #tpu.memory_space<vmem>>, vector<16x16x4xf32>
    %47 = vector.shape_cast %46 : vector<16x16x4xf32> to vector<256x4xf32>
    %48 = arith.truncf %47 : vector<256x4xf32> to vector<256x4xbf16>
    %c0_58 = arith.constant 0 : index
    %c32 = arith.constant 32 : index
    %49 = vector.load %arg14[%c0_58, %c32] : memref<256x36xbf16, #tpu.memory_space<vmem>>, vector<256x4xbf16>
    tpu.vector_store %arg14[%c0_58, %c32], %48 {strides = array<i32>} : memref<256x36xbf16, #tpu.memory_space<vmem>>, vector<256x4xbf16>,
    %c0_59 = arith.constant 0 : index
    %c0_60 = arith.constant 0 : index
    %50 = vector.load %arg14[%c0_59, %c0_60] : memref<256x36xbf16, #tpu.memory_space<vmem>>, vector<256x36xbf16>
    %c0_61 = arith.constant 0 : index
    %c0_62 = arith.constant 0 : index
    %51 = vector.load %arg2[%c0_61, %c0_62] : memref<36x8xbf16, #tpu.memory_space<vmem>>, vector<36x8xbf16>
    %cst_63 = arith.constant dense<0.000000e+00> : vector<256x8xf32>
    %52 = tpu.matmul %50, %51, %cst_63 {dimension_numbers = #tpu.dot_dimension_numbers<[1], [0], [0], [1], [0, 0, 1, 1], [], []>} : vector<256x36xbf16>, vector<36x8xbf16>, vector<256x8xf32> -> vector<256x8xf32>
    %53 = vector.broadcast %12 : vector<1x8xf32> to vector<256x8xf32>
    %54 = arith.mulf %52, %53 : vector<256x8xf32>
    %55 = vector.broadcast %13 : vector<1x8xf32> to vector<256x8xf32>
    %56 = arith.addf %54, %55 : vector<256x8xf32>
    %cst_64 = arith.constant 0.000000e+00 : f32
    %57 = vector.broadcast %cst_64 : f32 to vector<256x8xf32>
    %58 = arith.maximumf %56, %57 : vector<256x8xf32>
    %c1_65 = arith.constant 1 : index
    %c1_66 = arith.constant 1 : index
    %c0_67 = arith.constant 0 : index
    %59 = vector.load %arg12[%c1_65, %c1_66, %c0_67] : memref<18x18x4xf32, #tpu.memory_space<vmem>>, vector<16x16x4xf32>
    %60 = vector.shape_cast %59 : vector<16x16x4xf32> to vector<256x4xf32>
    %61 = arith.truncf %60 : vector<256x4xf32> to vector<256x4xbf16>
    %c0_68 = arith.constant 0 : index
    %c0_69 = arith.constant 0 : index
    %62 = vector.load %arg8[%c0_68, %c0_69] : memref<4x8xbf16, #tpu.memory_space<vmem>>, vector<4x8xbf16>
    %cst_70 = arith.constant dense<0.000000e+00> : vector<256x8xf32>
    %63 = tpu.matmul %61, %62, %cst_70 {dimension_numbers = #tpu.dot_dimension_numbers<[1], [0], [0], [1], [0, 0, 1, 1], [], []>} : vector<256x4xbf16>, vector<4x8xbf16>, vector<256x8xf32> -> vector<256x8xf32>
    %c0_71 = arith.constant 0 : index
    %c0_72 = arith.constant 0 : index
    %64 = vector.load %arg9[%c0_71, %c0_72] : memref<1x8xf32, #tpu.memory_space<vmem>>, vector<1x8xf32>
    %65 = vector.broadcast %64 : vector<1x8xf32> to vector<256x8xf32>
    %66 = arith.mulf %63, %65 : vector<256x8xf32>
    %c0_73 = arith.constant 0 : index
    %c0_74 = arith.constant 0 : index
    %67 = vector.load %arg10[%c0_73, %c0_74] : memref<1x8xf32, #tpu.memory_space<vmem>>, vector<1x8xf32>
    %68 = vector.broadcast %67 : vector<1x8xf32> to vector<256x8xf32>
    %69 = arith.addf %66, %68 : vector<256x8xf32>
    %cst_75 = arith.constant 0.000000e+00 : f32
    %70 = vector.broadcast %cst_75 : f32 to vector<1x18x8xf32>
    %c0_76 = arith.constant 0 : index
    %c0_77 = arith.constant 0 : index
    %c0_78 = arith.constant 0 : index
    %71 = vector.load %arg13[%c0_76, %c0_77, %c0_78] : memref<18x18x8xf32, #tpu.memory_space<vmem>>, vector<1x18x8xf32>
    tpu.vector_store %arg13[%c0_76, %c0_77, %c0_78], %70 {strides = array<i32>} : memref<18x18x8xf32, #tpu.memory_space<vmem>>, vector<1x18x8xf32>,
    %cst_79 = arith.constant 0.000000e+00 : f32
    %72 = vector.broadcast %cst_79 : f32 to vector<1x18x8xf32>
    %c17_80 = arith.constant 17 : index
    %c0_81 = arith.constant 0 : index
    %c0_82 = arith.constant 0 : index
    %73 = vector.load %arg13[%c17_80, %c0_81, %c0_82] : memref<18x18x8xf32, #tpu.memory_space<vmem>>, vector<1x18x8xf32>
    tpu.vector_store %arg13[%c17_80, %c0_81, %c0_82], %72 {strides = array<i32>} : memref<18x18x8xf32, #tpu.memory_space<vmem>>, vector<1x18x8xf32>,
    %cst_83 = arith.constant 0.000000e+00 : f32
    %74 = vector.broadcast %cst_83 : f32 to vector<18x1x8xf32>
    %c0_84 = arith.constant 0 : index
    %c0_85 = arith.constant 0 : index
    %c0_86 = arith.constant 0 : index
    %75 = vector.load %arg13[%c0_84, %c0_85, %c0_86] : memref<18x18x8xf32, #tpu.memory_space<vmem>>, vector<18x1x8xf32>
    tpu.vector_store %arg13[%c0_84, %c0_85, %c0_86], %74 {strides = array<i32>} : memref<18x18x8xf32, #tpu.memory_space<vmem>>, vector<18x1x8xf32>,
    %cst_87 = arith.constant 0.000000e+00 : f32
    %76 = vector.broadcast %cst_87 : f32 to vector<18x1x8xf32>
    %c0_88 = arith.constant 0 : index
    %c17_89 = arith.constant 17 : index
    %c0_90 = arith.constant 0 : index
    %77 = vector.load %arg13[%c0_88, %c17_89, %c0_90] : memref<18x18x8xf32, #tpu.memory_space<vmem>>, vector<18x1x8xf32>
    tpu.vector_store %arg13[%c0_88, %c17_89, %c0_90], %76 {strides = array<i32>} : memref<18x18x8xf32, #tpu.memory_space<vmem>>, vector<18x1x8xf32>,
    %78 = vector.shape_cast %58 : vector<256x8xf32> to vector<16x16x8xf32>
    %c1_91 = arith.constant 1 : index
    %c1_92 = arith.constant 1 : index
    %c0_93 = arith.constant 0 : index
    %79 = vector.load %arg13[%c1_91, %c1_92, %c0_93] : memref<18x18x8xf32, #tpu.memory_space<vmem>>, vector<16x16x8xf32>
    tpu.vector_store %arg13[%c1_91, %c1_92, %c0_93], %78 {strides = array<i32>} : memref<18x18x8xf32, #tpu.memory_space<vmem>>, vector<16x16x8xf32>,
    %c0_94 = arith.constant 0 : index
    %c0_95 = arith.constant 0 : index
    %80 = vector.load %arg6[%c0_94, %c0_95] : memref<1x8xf32, #tpu.memory_space<vmem>>, vector<1x8xf32>
    %c0_96 = arith.constant 0 : index
    %c0_97 = arith.constant 0 : index
    %81 = vector.load %arg7[%c0_96, %c0_97] : memref<1x8xf32, #tpu.memory_space<vmem>>, vector<1x8xf32>
    %c0_98 = arith.constant 0 : index
    %c0_99 = arith.constant 0 : index
    %c0_100 = arith.constant 0 : index
    %82 = vector.load %arg13[%c0_98, %c0_99, %c0_100] : memref<18x18x8xf32, #tpu.memory_space<vmem>>, vector<16x16x8xf32>
    %83 = vector.shape_cast %82 : vector<16x16x8xf32> to vector<256x8xf32>
    %84 = arith.truncf %83 : vector<256x8xf32> to vector<256x8xbf16>
    %c0_101 = arith.constant 0 : index
    %c0_102 = arith.constant 0 : index
    %c0_103 = arith.constant 0 : index
    %85 = vector.load %arg5[%c0_101, %c0_102, %c0_103] : memref<9x8x8xbf16, #tpu.memory_space<vmem>>, vector<1x8x8xbf16>
    %86 = vector.shape_cast %85 : vector<1x8x8xbf16> to vector<8x8xbf16>
    %cst_104 = arith.constant dense<0.000000e+00> : vector<256x8xf32>
    %87 = tpu.matmul %84, %86, %cst_104 {dimension_numbers = #tpu.dot_dimension_numbers<[1], [0], [0], [1], [0, 0, 1, 1], [], []>} : vector<256x8xbf16>, vector<8x8xbf16>, vector<256x8xf32> -> vector<256x8xf32>
    %c0_105 = arith.constant 0 : index
    %c1_106 = arith.constant 1 : index
    %c0_107 = arith.constant 0 : index
    %88 = vector.load %arg13[%c0_105, %c1_106, %c0_107] : memref<18x18x8xf32, #tpu.memory_space<vmem>>, vector<16x16x8xf32>
    %89 = vector.shape_cast %88 : vector<16x16x8xf32> to vector<256x8xf32>
    %90 = arith.truncf %89 : vector<256x8xf32> to vector<256x8xbf16>
    %c1_108 = arith.constant 1 : index
    %c0_109 = arith.constant 0 : index
    %c0_110 = arith.constant 0 : index
    %91 = vector.load %arg5[%c1_108, %c0_109, %c0_110] : memref<9x8x8xbf16, #tpu.memory_space<vmem>>, vector<1x8x8xbf16>
    %92 = vector.shape_cast %91 : vector<1x8x8xbf16> to vector<8x8xbf16>
    %cst_111 = arith.constant dense<0.000000e+00> : vector<256x8xf32>
    %93 = tpu.matmul %90, %92, %cst_111 {dimension_numbers = #tpu.dot_dimension_numbers<[1], [0], [0], [1], [0, 0, 1, 1], [], []>} : vector<256x8xbf16>, vector<8x8xbf16>, vector<256x8xf32> -> vector<256x8xf32>
    %94 = arith.addf %87, %93 : vector<256x8xf32>
    %c0_112 = arith.constant 0 : index
    %c2_113 = arith.constant 2 : index
    %c0_114 = arith.constant 0 : index
    %95 = vector.load %arg13[%c0_112, %c2_113, %c0_114] : memref<18x18x8xf32, #tpu.memory_space<vmem>>, vector<16x16x8xf32>
    %96 = vector.shape_cast %95 : vector<16x16x8xf32> to vector<256x8xf32>
    %97 = arith.truncf %96 : vector<256x8xf32> to vector<256x8xbf16>
    %c2_115 = arith.constant 2 : index
    %c0_116 = arith.constant 0 : index
    %c0_117 = arith.constant 0 : index
    %98 = vector.load %arg5[%c2_115, %c0_116, %c0_117] : memref<9x8x8xbf16, #tpu.memory_space<vmem>>, vector<1x8x8xbf16>
    %99 = vector.shape_cast %98 : vector<1x8x8xbf16> to vector<8x8xbf16>
    %cst_118 = arith.constant dense<0.000000e+00> : vector<256x8xf32>
    %100 = tpu.matmul %97, %99, %cst_118 {dimension_numbers = #tpu.dot_dimension_numbers<[1], [0], [0], [1], [0, 0, 1, 1], [], []>} : vector<256x8xbf16>, vector<8x8xbf16>, vector<256x8xf32> -> vector<256x8xf32>
    %101 = arith.addf %94, %100 : vector<256x8xf32>
    %c1_119 = arith.constant 1 : index
    %c0_120 = arith.constant 0 : index
    %c0_121 = arith.constant 0 : index
    %102 = vector.load %arg13[%c1_119, %c0_120, %c0_121] : memref<18x18x8xf32, #tpu.memory_space<vmem>>, vector<16x16x8xf32>
    %103 = vector.shape_cast %102 : vector<16x16x8xf32> to vector<256x8xf32>
    %104 = arith.truncf %103 : vector<256x8xf32> to vector<256x8xbf16>
    %c3 = arith.constant 3 : index
    %c0_122 = arith.constant 0 : index
    %c0_123 = arith.constant 0 : index
    %105 = vector.load %arg5[%c3, %c0_122, %c0_123] : memref<9x8x8xbf16, #tpu.memory_space<vmem>>, vector<1x8x8xbf16>
    %106 = vector.shape_cast %105 : vector<1x8x8xbf16> to vector<8x8xbf16>
    %cst_124 = arith.constant dense<0.000000e+00> : vector<256x8xf32>
    %107 = tpu.matmul %104, %106, %cst_124 {dimension_numbers = #tpu.dot_dimension_numbers<[1], [0], [0], [1], [0, 0, 1, 1], [], []>} : vector<256x8xbf16>, vector<8x8xbf16>, vector<256x8xf32> -> vector<256x8xf32>
    %108 = arith.addf %101, %107 : vector<256x8xf32>
    %c1_125 = arith.constant 1 : index
    %c1_126 = arith.constant 1 : index
    %c0_127 = arith.constant 0 : index
    %109 = vector.load %arg13[%c1_125, %c1_126, %c0_127] : memref<18x18x8xf32, #tpu.memory_space<vmem>>, vector<16x16x8xf32>
    %110 = vector.shape_cast %109 : vector<16x16x8xf32> to vector<256x8xf32>
    %111 = arith.truncf %110 : vector<256x8xf32> to vector<256x8xbf16>
    %c4_128 = arith.constant 4 : index
    %c0_129 = arith.constant 0 : index
    %c0_130 = arith.constant 0 : index
    %112 = vector.load %arg5[%c4_128, %c0_129, %c0_130] : memref<9x8x8xbf16, #tpu.memory_space<vmem>>, vector<1x8x8xbf16>
    %113 = vector.shape_cast %112 : vector<1x8x8xbf16> to vector<8x8xbf16>
    %cst_131 = arith.constant dense<0.000000e+00> : vector<256x8xf32>
    %114 = tpu.matmul %111, %113, %cst_131 {dimension_numbers = #tpu.dot_dimension_numbers<[1], [0], [0], [1], [0, 0, 1, 1], [], []>} : vector<256x8xbf16>, vector<8x8xbf16>, vector<256x8xf32> -> vector<256x8xf32>
    %115 = arith.addf %108, %114 : vector<256x8xf32>
    %c1_132 = arith.constant 1 : index
    %c2_133 = arith.constant 2 : index
    %c0_134 = arith.constant 0 : index
    %116 = vector.load %arg13[%c1_132, %c2_133, %c0_134] : memref<18x18x8xf32, #tpu.memory_space<vmem>>, vector<16x16x8xf32>
    %117 = vector.shape_cast %116 : vector<16x16x8xf32> to vector<256x8xf32>
    %118 = arith.truncf %117 : vector<256x8xf32> to vector<256x8xbf16>
    %c5 = arith.constant 5 : index
    %c0_135 = arith.constant 0 : index
    %c0_136 = arith.constant 0 : index
    %119 = vector.load %arg5[%c5, %c0_135, %c0_136] : memref<9x8x8xbf16, #tpu.memory_space<vmem>>, vector<1x8x8xbf16>
    %120 = vector.shape_cast %119 : vector<1x8x8xbf16> to vector<8x8xbf16>
    %cst_137 = arith.constant dense<0.000000e+00> : vector<256x8xf32>
    %121 = tpu.matmul %118, %120, %cst_137 {dimension_numbers = #tpu.dot_dimension_numbers<[1], [0], [0], [1], [0, 0, 1, 1], [], []>} : vector<256x8xbf16>, vector<8x8xbf16>, vector<256x8xf32> -> vector<256x8xf32>
    %122 = arith.addf %115, %121 : vector<256x8xf32>
    %c2_138 = arith.constant 2 : index
    %c0_139 = arith.constant 0 : index
    %c0_140 = arith.constant 0 : index
    %123 = vector.load %arg13[%c2_138, %c0_139, %c0_140] : memref<18x18x8xf32, #tpu.memory_space<vmem>>, vector<16x16x8xf32>
    %124 = vector.shape_cast %123 : vector<16x16x8xf32> to vector<256x8xf32>
    %125 = arith.truncf %124 : vector<256x8xf32> to vector<256x8xbf16>
    %c6 = arith.constant 6 : index
    %c0_141 = arith.constant 0 : index
    %c0_142 = arith.constant 0 : index
    %126 = vector.load %arg5[%c6, %c0_141, %c0_142] : memref<9x8x8xbf16, #tpu.memory_space<vmem>>, vector<1x8x8xbf16>
    %127 = vector.shape_cast %126 : vector<1x8x8xbf16> to vector<8x8xbf16>
    %cst_143 = arith.constant dense<0.000000e+00> : vector<256x8xf32>
    %128 = tpu.matmul %125, %127, %cst_143 {dimension_numbers = #tpu.dot_dimension_numbers<[1], [0], [0], [1], [0, 0, 1, 1], [], []>} : vector<256x8xbf16>, vector<8x8xbf16>, vector<256x8xf32> -> vector<256x8xf32>
    %129 = arith.addf %122, %128 : vector<256x8xf32>
    %c2_144 = arith.constant 2 : index
    %c1_145 = arith.constant 1 : index
    %c0_146 = arith.constant 0 : index
    %130 = vector.load %arg13[%c2_144, %c1_145, %c0_146] : memref<18x18x8xf32, #tpu.memory_space<vmem>>, vector<16x16x8xf32>
    %131 = vector.shape_cast %130 : vector<16x16x8xf32> to vector<256x8xf32>
    %132 = arith.truncf %131 : vector<256x8xf32> to vector<256x8xbf16>
    %c7 = arith.constant 7 : index
    %c0_147 = arith.constant 0 : index
    %c0_148 = arith.constant 0 : index
    %133 = vector.load %arg5[%c7, %c0_147, %c0_148] : memref<9x8x8xbf16, #tpu.memory_space<vmem>>, vector<1x8x8xbf16>
    %134 = vector.shape_cast %133 : vector<1x8x8xbf16> to vector<8x8xbf16>
    %cst_149 = arith.constant dense<0.000000e+00> : vector<256x8xf32>
    %135 = tpu.matmul %132, %134, %cst_149 {dimension_numbers = #tpu.dot_dimension_numbers<[1], [0], [0], [1], [0, 0, 1, 1], [], []>} : vector<256x8xbf16>, vector<8x8xbf16>, vector<256x8xf32> -> vector<256x8xf32>
    %136 = arith.addf %129, %135 : vector<256x8xf32>
    %c2_150 = arith.constant 2 : index
    %c2_151 = arith.constant 2 : index
    %c0_152 = arith.constant 0 : index
    %137 = vector.load %arg13[%c2_150, %c2_151, %c0_152] : memref<18x18x8xf32, #tpu.memory_space<vmem>>, vector<16x16x8xf32>
    %138 = vector.shape_cast %137 : vector<16x16x8xf32> to vector<256x8xf32>
    %139 = arith.truncf %138 : vector<256x8xf32> to vector<256x8xbf16>
    %c8_153 = arith.constant 8 : index
    %c0_154 = arith.constant 0 : index
    %c0_155 = arith.constant 0 : index
    %140 = vector.load %arg5[%c8_153, %c0_154, %c0_155] : memref<9x8x8xbf16, #tpu.memory_space<vmem>>, vector<1x8x8xbf16>
    %141 = vector.shape_cast %140 : vector<1x8x8xbf16> to vector<8x8xbf16>
    %cst_156 = arith.constant dense<0.000000e+00> : vector<256x8xf32>
    %142 = tpu.matmul %139, %141, %cst_156 {dimension_numbers = #tpu.dot_dimension_numbers<[1], [0], [0], [1], [0, 0, 1, 1], [], []>} : vector<256x8xbf16>, vector<8x8xbf16>, vector<256x8xf32> -> vector<256x8xf32>
    %143 = arith.addf %136, %142 : vector<256x8xf32>
    %144 = vector.broadcast %80 : vector<1x8xf32> to vector<256x8xf32>
    %145 = arith.mulf %143, %144 : vector<256x8xf32>
    %146 = vector.broadcast %81 : vector<1x8xf32> to vector<256x8xf32>
    %147 = arith.addf %145, %146 : vector<256x8xf32>
    %148 = arith.addf %147, %69 : vector<256x8xf32>
    %cst_157 = arith.constant 0.000000e+00 : f32
    %149 = vector.broadcast %cst_157 : f32 to vector<256x8xf32>
    %150 = arith.maximumf %148, %149 : vector<256x8xf32>
    %151 = vector.shape_cast %150 : vector<256x8xf32> to vector<16x16x8xf32>
    %152 = arith.truncf %151 : vector<16x16x8xf32> to vector<16x16x8xbf16>
    %c0_158 = arith.constant 0 : index
    %c0_159 = arith.constant 0 : index
    %c0_160 = arith.constant 0 : index
    %c0_161 = arith.constant 0 : index
    %153 = vector.load %arg11[%c0_158, %c0_159, %c0_160, %c0_161] : memref<1x16x16x8xbf16, #tpu.memory_space<vmem>>, vector<1x16x16x8xbf16>
    %154 = vector.shape_cast %153 : vector<1x16x16x8xbf16> to vector<16x16x8xbf16>
    %155 = vector.shape_cast %152 : vector<16x16x8xbf16> to vector<1x16x16x8xbf16>
    tpu.vector_store %arg11[%c0_158, %c0_159, %c0_160, %c0_161], %155 {strides = array<i32>} : memref<1x16x16x8xbf16, #tpu.memory_space<vmem>>, vector<1x16x16x8xbf16>,
    return
  }
  func.func @transform_0(%arg0: i32) -> (i32, i32, i32, i32) {
    %c0_i32 = arith.constant 0 : i32
    %c0_i32_0 = arith.constant 0 : i32
    %c0_i32_1 = arith.constant 0 : i32
    %c0_i32_2 = arith.constant 0 : i32
    return %arg0, %c0_i32, %c0_i32_0, %c0_i32_1 : i32, i32, i32, i32
  }
  func.func @transform_1(%arg0: i32) -> (i32, i32) {
    %c0_i32 = arith.constant 0 : i32
    %c0_i32_0 = arith.constant 0 : i32
    %c0_i32_1 = arith.constant 0 : i32
    return %c0_i32, %c0_i32_0 : i32, i32
  }
  func.func @transform_2(%arg0: i32) -> (i32, i32) {
    %c0_i32 = arith.constant 0 : i32
    %c0_i32_0 = arith.constant 0 : i32
    %c0_i32_1 = arith.constant 0 : i32
    return %c0_i32, %c0_i32_0 : i32, i32
  }
  func.func @transform_3(%arg0: i32) -> (i32, i32) {
    %c0_i32 = arith.constant 0 : i32
    %c0_i32_0 = arith.constant 0 : i32
    %c0_i32_1 = arith.constant 0 : i32
    return %c0_i32, %c0_i32_0 : i32, i32
  }
  func.func @transform_4(%arg0: i32) -> (i32, i32, i32) {
    %c0_i32 = arith.constant 0 : i32
    %c0_i32_0 = arith.constant 0 : i32
    %c0_i32_1 = arith.constant 0 : i32
    %c0_i32_2 = arith.constant 0 : i32
    return %c0_i32, %c0_i32_0, %c0_i32_1 : i32, i32, i32
  }
  func.func @transform_5(%arg0: i32) -> (i32, i32) {
    %c0_i32 = arith.constant 0 : i32
    %c0_i32_0 = arith.constant 0 : i32
    %c0_i32_1 = arith.constant 0 : i32
    return %c0_i32, %c0_i32_0 : i32, i32
  }
  func.func @transform_6(%arg0: i32) -> (i32, i32) {
    %c0_i32 = arith.constant 0 : i32
    %c0_i32_0 = arith.constant 0 : i32
    %c0_i32_1 = arith.constant 0 : i32
    return %c0_i32, %c0_i32_0 : i32, i32
  }
  func.func @transform_7(%arg0: i32) -> (i32, i32) {
    %c0_i32 = arith.constant 0 : i32
    %c0_i32_0 = arith.constant 0 : i32
    %c0_i32_1 = arith.constant 0 : i32
    return %c0_i32, %c0_i32_0 : i32, i32
  }
  func.func @transform_8(%arg0: i32) -> (i32, i32) {
    %c0_i32 = arith.constant 0 : i32
    %c0_i32_0 = arith.constant 0 : i32
    %c0_i32_1 = arith.constant 0 : i32
    return %c0_i32, %c0_i32_0 : i32, i32
  }
  func.func @transform_9(%arg0: i32) -> (i32, i32) {
    %c0_i32 = arith.constant 0 : i32
    %c0_i32_0 = arith.constant 0 : i32
    %c0_i32_1 = arith.constant 0 : i32
    return %c0_i32, %c0_i32_0 : i32, i32
  }
  func.func @transform_10(%arg0: i32) -> (i32, i32, i32, i32) {
    %c0_i32 = arith.constant 0 : i32
    %c0_i32_0 = arith.constant 0 : i32
    %c0_i32_1 = arith.constant 0 : i32
    %c0_i32_2 = arith.constant 0 : i32
    return %arg0, %c0_i32, %c0_i32_0, %c0_i32_1 : i32, i32, i32, i32
  }
}

</mosaic_0001>

<llo_original>
// kernel: tpu_custom_call.1
$region0: #{tpu_custom_call.1}
  #allocation0 [shape = 'u32[]', space=smem, size = 0x4, offset = 0x4, fixed_abs, tag = 'smem constant byte address 0x4 - core index']
  #allocation1 [shape = 'u32[144,128]{1,0:T(1,128)}', space=vmem, size = 0x12000, scoped, tag = 'internal scratch']
  #allocation2 [shape = 'f32[18,18,4]{2,1,0:T(8,128)}', space=vmem, size = 0x36000, scoped, tag = 'scratch operand']
  #allocation3 [shape = 'f32[18,18,8]{2,1,0:T(8,128)}', space=vmem, size = 0x36000, scoped, tag = 'scratch operand']
  #allocation4 [shape = 'bf16[256,36]{1,0:T(16,128)(2,1)}', space=vmem, size = 0x10000, scoped, tag = 'scratch operand']
  %s0 = inlined_call_operand.vmem [shape: bf16[2,16,16,4], index: 0, kind: input, shape index: {}]
  %s1 = inlined_call_operand.vmem [shape: bf16[36,8], index: 1, kind: input, shape index: {}]
  %s2 = inlined_call_operand.vmem [shape: f32[1,8], index: 2, kind: input, shape index: {}]
  %s3 = inlined_call_operand.vmem [shape: f32[1,8], index: 3, kind: input, shape index: {}]
  %s4 = inlined_call_operand.vmem [shape: bf16[9,8,8], index: 4, kind: input, shape index: {}]
  %s5 = inlined_call_operand.vmem [shape: f32[1,8], index: 5, kind: input, shape index: {}]
  %s6 = inlined_call_operand.vmem [shape: f32[1,8], index: 6, kind: input, shape index: {}]
  %s7 = inlined_call_operand.vmem [shape: bf16[4,8], index: 7, kind: input, shape index: {}]
  %s8 = inlined_call_operand.vmem [shape: f32[1,8], index: 8, kind: input, shape index: {}]
  %s9 = inlined_call_operand.vmem [shape: f32[1,8], index: 9, kind: input, shape index: {}]
  %s10 = inlined_call_operand.vmem [shape: bf16[2,16,16,8], index: 10, kind: output, shape index: {}]
  %s11 = sld [smem:[#allocation0]]
  $region73: #{tpu_custom_call.1} parent=0
    _
  %s13 = ssub.s32 1, %s11
  %s14 = scalar_select 0, %s13, %s11
  loop: start=0, step=1, limit=4
  $region2: #{tpu_custom_call.1} parent=0 // loop_pre_header
    _
  $region3: #{tpu_custom_call.1} parent=0 // loop_header
    %s16 = sphi 0, %s20
    %p17 = scmp.ge.s32.totalorder %s16, 4
    %s26 = sphi 0, %s28
    %s29 = sphi 0, %s26
    %s30 = sphi 0, %s29
    %s46 = sphi 0, %s30
    %s50 = sphi 0, %s50
    %s52 = sphi 0, %s50
    %s53 = sphi 0, %s52
    %s67 = sphi 0, %s53
    %s71 = sphi 0, %s71
    %s73 = sphi 0, %s71
    %s74 = sphi 0, %s73
    %s88 = sphi 0, %s74
    %s92 = sphi 0, %s92
    %s94 = sphi 0, %s92
    %s95 = sphi 0, %s94
    %s109 = sphi 0, %s95
    %s113 = sphi 0, %s113
    %s115 = sphi 0, %s113
    %s116 = sphi 0, %s115
    %s130 = sphi 0, %s116
    %s134 = sphi 0, %s134
    %s136 = sphi 0, %s134
    %s137 = sphi 0, %s136
    %s151 = sphi 0, %s137
    %s155 = sphi 0, %s155
    %s157 = sphi 0, %s155
    %s158 = sphi 0, %s157
    %s172 = sphi 0, %s158
    %s176 = sphi 0, %s176
    %s178 = sphi 0, %s176
    %s179 = sphi 0, %s178
    %s193 = sphi 0, %s179
    %s197 = sphi 0, %s197
    %s199 = sphi 0, %s197
    %s200 = sphi 0, %s199
    %s214 = sphi 0, %s200
    %s218 = sphi 0, %s218
    %s220 = sphi 0, %s218
    %s221 = sphi 0, %s220
    %s235 = sphi 0, %s221
    %s241 = sphi 0, %s243
    %s244 = sphi 0, %s241
    %s245 = sphi 0, %s244
    %s261 = sphi 0, %s245
  $region4: #{tpu_custom_call.1} parent=0 // loop_header_branch
    %19 = sbr.rel (%p17) target = $region8
  $region5: #{tpu_custom_call.1} parent=0 // loop_body
    %s21 = ssub.s32 %s16, 1
    %s22 = ssub.s32 %s16, 2
    %s23 = sadd.s32 %s16, 1
    %s24 = ssub.s32 %s16, %s23
    %p25 = scmp.eq.s32.totalorder %s24, 0
    %s27 = sadd.s32 %s26, 1
    %s28 = scalar_select %p25, %s26, %s27
    %p31 = pneg %p25
    %p32 = scmp.eq.s32.totalorder %s16, 1
    %p33 = por %p31, %p32
    %p34 = scmp.ne.s32.totalorder %s26, %s29
    %p35 = scmp.eq.s32.totalorder %s16, 0
    %p36 = por %p34, %p35
    %p37 = scmp.ne.s32.totalorder %s26, %s29
    %p38 = scmp.eq.s32.totalorder %s21, 1
    %p39 = por %p37, %p38
    %p40 = scmp.ne.s32.totalorder %s29, %s30
    %p41 = scmp.eq.s32.totalorder %s21, 0
    %p42 = por %p40, %p41
    %p43 = scmp.ne.s32.totalorder %s29, %s30
    %p44 = scmp.eq.s32.totalorder %s22, 1
    %p45 = por %p43, %p44
    %p47 = scmp.ne.s32.totalorder %s30, %s46
    %p48 = scmp.eq.s32.totalorder %s22, 0
    %p49 = por %p47, %p48
    %s51 = sadd.s32 %s50, 1
    %p54 = scmp.eq.s32.totalorder %s16, 1
    %p55 = scmp.ne.s32.totalorder %s50, %s52
    %p56 = scmp.eq.s32.totalorder %s16, 0
    %p57 = por %p55, %p56
    %p58 = scmp.ne.s32.totalorder %s50, %s52
    %p59 = scmp.eq.s32.totalorder %s21, 1
    %p60 = por %p58, %p59
    %p61 = scmp.ne.s32.totalorder %s52, %s53
    %p62 = scmp.eq.s32.totalorder %s21, 0
    %p63 = por %p61, %p62
    %p64 = scmp.ne.s32.totalorder %s52, %s53
    %p65 = scmp.eq.s32.totalorder %s22, 1
    %p66 = por %p64, %p65
    %p68 = scmp.ne.s32.totalorder %s53, %s67
    %p69 = scmp.eq.s32.totalorder %s22, 0
    %p70 = por %p68, %p69
    %s72 = sadd.s32 %s71, 1
    %p75 = scmp.eq.s32.totalorder %s16, 1
    %p76 = scmp.ne.s32.totalorder %s71, %s73
    %p77 = scmp.eq.s32.totalorder %s16, 0
    %p78 = por %p76, %p77
    %p79 = scmp.ne.s32.totalorder %s71, %s73
    %p80 = scmp.eq.s32.totalorder %s21, 1
    %p81 = por %p79, %p80
    %p82 = scmp.ne.s32.totalorder %s73, %s74
    %p83 = scmp.eq.s32.totalorder %s21, 0
    %p84 = por %p82, %p83
    %p85 = scmp.ne.s32.totalorder %s73, %s74
    %p86 = scmp.eq.s32.totalorder %s22, 1
    %p87 = por %p85, %p86
    %p89 = scmp.ne.s32.totalorder %s74, %s88
    %p90 = scmp.eq.s32.totalorder %s22, 0
    %p91 = por %p89, %p90
    %s93 = sadd.s32 %s92, 1
    %p96 = scmp.eq.s32.totalorder %s16, 1
    %p97 = scmp.ne.s32.totalorder %s92, %s94
    %p98 = scmp.eq.s32.totalorder %s16, 0
    %p99 = por %p97, %p98
    %p100 = scmp.ne.s32.totalorder %s92, %s94
    %p101 = scmp.eq.s32.totalorder %s21, 1
    %p102 = por %p100, %p101
    %p103 = scmp.ne.s32.totalorder %s94, %s95
    %p104 = scmp.eq.s32.totalorder %s21, 0
    %p105 = por %p103, %p104
    %p106 = scmp.ne.s32.totalorder %s94, %s95
    %p107 = scmp.eq.s32.totalorder %s22, 1
    %p108 = por %p106, %p107
    %p110 = scmp.ne.s32.totalorder %s95, %s109
    %p111 = scmp.eq.s32.totalorder %s22, 0
    %p112 = por %p110, %p111
    %s114 = sadd.s32 %s113, 1
    %p117 = scmp.eq.s32.totalorder %s16, 1
    %p118 = scmp.ne.s32.totalorder %s113, %s115
    %p119 = scmp.eq.s32.totalorder %s16, 0
    %p120 = por %p118, %p119
    %p121 = scmp.ne.s32.totalorder %s113, %s115
    %p122 = scmp.eq.s32.totalorder %s21, 1
    %p123 = por %p121, %p122
    %p124 = scmp.ne.s32.totalorder %s115, %s116
    %p125 = scmp.eq.s32.totalorder %s21, 0
    %p126 = por %p124, %p125
    %p127 = scmp.ne.s32.totalorder %s115, %s116
    %p128 = scmp.eq.s32.totalorder %s22, 1
    %p129 = por %p127, %p128
    %p131 = scmp.ne.s32.totalorder %s116, %s130
    %p132 = scmp.eq.s32.totalorder %s22, 0
    %p133 = por %p131, %p132
    %s135 = sadd.s32 %s134, 1
    %p138 = scmp.eq.s32.totalorder %s16, 1
    %p139 = scmp.ne.s32.totalorder %s134, %s136
    %p140 = scmp.eq.s32.totalorder %s16, 0
    %p141 = por %p139, %p140
    %p142 = scmp.ne.s32.totalorder %s134, %s136
    %p143 = scmp.eq.s32.totalorder %s21, 1
    %p144 = por %p142, %p143
    %p145 = scmp.ne.s32.totalorder %s136, %s137
    %p146 = scmp.eq.s32.totalorder %s21, 0
    %p147 = por %p145, %p146
    %p148 = scmp.ne.s32.totalorder %s136, %s137
    %p149 = scmp.eq.s32.totalorder %s22, 1
    %p150 = por %p148, %p149
    %p152 = scmp.ne.s32.totalorder %s137, %s151
    %p153 = scmp.eq.s32.totalorder %s22, 0
    %p154 = por %p152, %p153
    %s156 = sadd.s32 %s155, 1
    %p159 = scmp.eq.s32.totalorder %s16, 1
    %p160 = scmp.ne.s32.totalorder %s155, %s157
    %p161 = scmp.eq.s32.totalorder %s16, 0
    %p162 = por %p160, %p161
    %p163 = scmp.ne.s32.totalorder %s155, %s157
    %p164 = scmp.eq.s32.totalorder %s21, 1
    %p165 = por %p163, %p164
    %p166 = scmp.ne.s32.totalorder %s157, %s158
    %p167 = scmp.eq.s32.totalorder %s21, 0
    %p168 = por %p166, %p167
    %p169 = scmp.ne.s32.totalorder %s157, %s158
    %p170 = scmp.eq.s32.totalorder %s22, 1
    %p171 = por %p169, %p170
    %p173 = scmp.ne.s32.totalorder %s158, %s172
    %p174 = scmp.eq.s32.totalorder %s22, 0
    %p175 = por %p173, %p174
    %s177 = sadd.s32 %s176, 1
    %p180 = scmp.eq.s32.totalorder %s16, 1
    %p181 = scmp.ne.s32.totalorder %s176, %s178
    %p182 = scmp.eq.s32.totalorder %s16, 0
    %p183 = por %p181, %p182
    %p184 = scmp.ne.s32.totalorder %s176, %s178
    %p185 = scmp.eq.s32.totalorder %s21, 1
    %p186 = por %p184, %p185
    %p187 = scmp.ne.s32.totalorder %s178, %s179
    %p188 = scmp.eq.s32.totalorder %s21, 0
    %p189 = por %p187, %p188
    %p190 = scmp.ne.s32.totalorder %s178, %s179
    %p191 = scmp.eq.s32.totalorder %s22, 1
    %p192 = por %p190, %p191
    %p194 = scmp.ne.s32.totalorder %s179, %s193
    %p195 = scmp.eq.s32.totalorder %s22, 0
    %p196 = por %p194, %p195
    %s198 = sadd.s32 %s197, 1
    %p201 = scmp.eq.s32.totalorder %s16, 1
    %p202 = scmp.ne.s32.totalorder %s197, %s199
    %p203 = scmp.eq.s32.totalorder %s16, 0
    %p204 = por %p202, %p203
    %p205 = scmp.ne.s32.totalorder %s197, %s199
    %p206 = scmp.eq.s32.totalorder %s21, 1
    %p207 = por %p205, %p206
    %p208 = scmp.ne.s32.totalorder %s199, %s200
    %p209 = scmp.eq.s32.totalorder %s21, 0
    %p210 = por %p208, %p209
    %p211 = scmp.ne.s32.totalorder %s199, %s200
    %p212 = scmp.eq.s32.totalorder %s22, 1
    %p213 = por %p211, %p212
    %p215 = scmp.ne.s32.totalorder %s200, %s214
    %p216 = scmp.eq.s32.totalorder %s22, 0
    %p217 = por %p215, %p216
    %s219 = sadd.s32 %s218, 1
    %p222 = scmp.eq.s32.totalorder %s16, 1
    %p223 = scmp.ne.s32.totalorder %s218, %s220
    %p224 = scmp.eq.s32.totalorder %s16, 0
    %p225 = por %p223, %p224
    %p226 = scmp.ne.s32.totalorder %s218, %s220
    %p227 = scmp.eq.s32.totalorder %s21, 1
    %p228 = por %p226, %p227
    %p229 = scmp.ne.s32.totalorder %s220, %s221
    %p230 = scmp.eq.s32.totalorder %s21, 0
    %p231 = por %p229, %p230
    %p232 = scmp.ne.s32.totalorder %s220, %s221
    %p233 = scmp.eq.s32.totalorder %s22, 1
    %p234 = por %p232, %p233
    %p236 = scmp.ne.s32.totalorder %s221, %s235
    %p237 = scmp.eq.s32.totalorder %s22, 0
    %p238 = por %p236, %p237
    %s239 = ssub.s32 %s16, %s23
    %p240 = scmp.eq.s32.totalorder %s239, 0
    %s242 = sadd.s32 %s241, 1
    %s243 = scalar_select %p240, %s241, %s242
    %p246 = pneg %p240
    %p247 = scmp.eq.s32.totalorder %s16, 1
    %p248 = por %p246, %p247
    %p249 = scmp.ne.s32.totalorder %s241, %s244
    %p250 = scmp.eq.s32.totalorder %s16, 0
    %p251 = por %p249, %p250
    %p252 = scmp.ne.s32.totalorder %s241, %s244
    %p253 = scmp.eq.s32.totalorder %s21, 1
    %p254 = por %p252, %p253
    %p255 = scmp.ne.s32.totalorder %s244, %s245
    %p256 = scmp.eq.s32.totalorder %s21, 0
    %p257 = por %p255, %p256
    %p258 = scmp.ne.s32.totalorder %s244, %s245
    %p259 = scmp.eq.s32.totalorder %s22, 1
    %p260 = por %p258, %p259
    %p262 = scmp.ne.s32.totalorder %s245, %s261
    %p263 = scmp.eq.s32.totalorder %s22, 0
    %p264 = por %p262, %p263
    %p265 = scmp.le.s32.totalorder 1, %s16
    %p266 = scmp.lt.s32.totalorder %s16, 3
    %p267 = pnand %p265, %p266
    %p268 = pneg %p267
    // Predicated region
    $region9: #{tpu_custom_call.1} parent=5 // pred_check
      _
    $region10: #{tpu_custom_call.1} parent=5 // pred_check_branch
      %270 = sbr.rel (%p267) target = $region12
    $region11: #{tpu_custom_call.1} parent=5 // pred_region
      %s271 = ssub.s32 %s16, 1
      // Predicated region
      $region13: #{tpu_custom_call.1} parent=11 // pred_check
        %p272 = pneg %p63
      $region14: #{tpu_custom_call.1} parent=11 // pred_check_branch
        %274 = sbr.rel (%p272) target = $region16
      $region15: #{tpu_custom_call.1} parent=11 // pred_region
        _
      $region16: #{tpu_custom_call.1} parent=11 // pred_fallthru
        _
      // Predicated region
      $region17: #{tpu_custom_call.1} parent=11 // pred_check
        %p275 = pneg %p84
      $region18: #{tpu_custom_call.1} parent=11 // pred_check_branch
        %277 = sbr.rel (%p275) target = $region20
      $region19: #{tpu_custom_call.1} parent=11 // pred_region
        _
      $region20: #{tpu_custom_call.1} parent=11 // pred_fallthru
        _
      // Predicated region
      $region21: #{tpu_custom_call.1} parent=11 // pred_check
        %p278 = pneg %p105
      $region22: #{tpu_custom_call.1} parent=11 // pred_check_branch
        %280 = sbr.rel (%p278) target = $region24
      $region23: #{tpu_custom_call.1} parent=11 // pred_region
        _
      $region24: #{tpu_custom_call.1} parent=11 // pred_fallthru
        _
      // Predicated region
      $region25: #{tpu_custom_call.1} parent=11 // pred_check
        %p281 = pneg %p126
      $region26: #{tpu_custom_call.1} parent=11 // pred_check_branch
        %283 = sbr.rel (%p281) target = $region28
      $region27: #{tpu_custom_call.1} parent=11 // pred_region
        _
      $region28: #{tpu_custom_call.1} parent=11 // pred_fallthru
        _
      // Predicated region
      $region29: #{tpu_custom_call.1} parent=11 // pred_check
        %p284 = pneg %p147
      $region30: #{tpu_custom_call.1} parent=11 // pred_check_branch
        %286 = sbr.rel (%p284) target = $region32
      $region31: #{tpu_custom_call.1} parent=11 // pred_region
        _
      $region32: #{tpu_custom_call.1} parent=11 // pred_fallthru
        _
      // Predicated region
      $region33: #{tpu_custom_call.1} parent=11 // pred_check
        %p287 = pneg %p168
      $region34: #{tpu_custom_call.1} parent=11 // pred_check_branch
        %289 = sbr.rel (%p287) target = $region36
      $region35: #{tpu_custom_call.1} parent=11 // pred_region
        _
      $region36: #{tpu_custom_call.1} parent=11 // pred_fallthru
        _
      // Predicated region
      $region37: #{tpu_custom_call.1} parent=11 // pred_check
        %p290 = pneg %p189
      $region38: #{tpu_custom_call.1} parent=11 // pred_check_branch
        %292 = sbr.rel (%p290) target = $region40
      $region39: #{tpu_custom_call.1} parent=11 // pred_region
        _
      $region40: #{tpu_custom_call.1} parent=11 // pred_fallthru
        _
      // Predicated region
      $region41: #{tpu_custom_call.1} parent=11 // pred_check
        %p293 = pneg %p210
      $region42: #{tpu_custom_call.1} parent=11 // pred_check_branch
        %295 = sbr.rel (%p293) target = $region44
      $region43: #{tpu_custom_call.1} parent=11 // pred_region
        _
      $region44: #{tpu_custom_call.1} parent=11 // pred_fallthru
        _
      // Predicated region
      $region45: #{tpu_custom_call.1} parent=11 // pred_check
        %p296 = pneg %p231
      $region46: #{tpu_custom_call.1} parent=11 // pred_check_branch
        %298 = sbr.rel (%p296) target = $region48
      $region47: #{tpu_custom_call.1} parent=11 // pred_region
        _
      $region48: #{tpu_custom_call.1} parent=11 // pred_fallthru
        _
    $region12: #{tpu_custom_call.1} parent=5 // pred_fallthru
      _
    %p299 = scmp.lt.s32.totalorder %s16, 2
    // Predicated region
    $region49: #{tpu_custom_call.1} parent=5 // pred_check
      %p300 = pneg %p299
    $region50: #{tpu_custom_call.1} parent=5 // pred_check_branch
      %302 = sbr.rel (%p300) target = $region52
    $region51: #{tpu_custom_call.1} parent=5 // pred_region
      // Predicated region
      $region53: #{tpu_custom_call.1} parent=51 // pred_check
        %p303 = pneg %p36
      $region54: #{tpu_custom_call.1} parent=51 // pred_check_branch
        %305 = sbr.rel (%p303) target = $region56
      $region55: #{tpu_custom_call.1} parent=51 // pred_region
        %p306 = scmp.lt.s32.totalorder %s16, 1
        %s307 = scalar_select %p306, %s16, 1
        %s308 = smul.addr %s307, 32
        %s309 = smul.addr %s308, 4
        %s310 = scalar_lea.vmem %s0, %s309
      $region56: #{tpu_custom_call.1} parent=51 // pred_fallthru
        _
    $region52: #{tpu_custom_call.1} parent=5 // pred_fallthru
      _
    %p311 = scmp.le.s32.totalorder 1, %s16
    %p312 = scmp.lt.s32.totalorder %s16, 3
    %p313 = pnand %p311, %p312
    %p314 = pneg %p313
    // Predicated region
    $region57: #{tpu_custom_call.1} parent=5 // pred_check
      _
    $region58: #{tpu_custom_call.1} parent=5 // pred_check_branch
      %316 = sbr.rel (%p313) target = $region60
    $region59: #{tpu_custom_call.1} parent=5 // pred_region
      %s317 = ssub.s32 %s16, 1
      %p318 = scmp.lt.s32.totalorder %s21, 1
      %s319 = scalar_select %p318, %s21, 1
      %s320 = smul.addr %s319, 32
      %s321 = smul.addr %s320, 4
      %s322 = scalar_lea.vmem %s0, %s321
      %p323 = pneg %p42
      %p324 = pneg %p39
      %p325 = pneg %p63
      %p326 = pneg %p60
      %p327 = pneg %p84
      %p328 = pneg %p81
      %p329 = pneg %p105
      %p330 = pneg %p102
      %p331 = pneg %p126
      %p332 = pneg %p123
      %p333 = pneg %p147
      %p334 = pneg %p144
      %p335 = pneg %p168
      %p336 = pneg %p165
      %p337 = pneg %p189
      %p338 = pneg %p186
      %p339 = pneg %p210
      %p340 = pneg %p207
      %p341 = pneg %p231
      %p342 = pneg %p228
      %p343 = pneg %p257
      %p344 = pneg %p254
      %p345 = scmp.lt.s32.totalorder %s21, 1
      %s346 = scalar_select %p345, %s21, 1
      %s347 = smul.addr %s346, 32
      %s348 = smul.addr %s347, 4
      %s349 = scalar_lea.vmem %s10, %s348
      %p350 = scmp.lt.s32.totalorder %s21, 1
      %s351 = scalar_select %p350, %s21, 1
      %s352 = smul.addr %s351, 32
      %s353 = smul.addr %s352, 4
      %s354 = scalar_lea.vmem %s0, %s353
      %p355 = scmp.lt.s32.totalorder %s21, 1
      %s356 = scalar_select %p355, %s21, 1
      %s357 = smul.addr %s356, 32
      %s358 = smul.addr %s357, 4
      %s359 = scalar_lea.vmem %s10, %s358
      %vm361 = vcmask 31744
      %362 = vst.msk [vmem:[#allocation2] sm:$0xff] %vm361, 0.0
      %363 = vst.msk [vmem:[#allocation2 + $0x8] sm:$0xff] %vm361, 0.0
      %vm364 = vcmask 25600
      %365 = vst.msk [vmem:[#allocation2 + $0x10] sm:$0x3] %vm364, 0.0
      %s366 = scalar_lea.vmem [#allocation2], 408
      %367 = vst.msk [vmem:[%s366] sm:$0xff] %vm361, 0.0
      %368 = vst.msk [vmem:[%s366 + $0x8] sm:$0xff] %vm361, 0.0
      %369 = vst.msk [vmem:[%s366 + $0x10] sm:$0x3] %vm364, 0.0
      %vm370 = vcmask 24576
      %371 = vst.msk [vmem:[#allocation2] sm:$0x1] %vm370, 0.0
      %372 = vst.msk [vmem:[#allocation2 + $0x18] sm:$0x1] %vm370, 0.0
      %373 = vst.msk [vmem:[#allocation2 + $0x30] sm:$0x1] %vm370, 0.0
      %374 = vst.msk [vmem:[#allocation2 + $0x48] sm:$0x1] %vm370, 0.0
      %375 = vst.msk [vmem:[#allocation2 + $0x60] sm:$0x1] %vm370, 0.0
      %376 = vst.msk [vmem:[#allocation2 + $0x78] sm:$0x1] %vm370, 0.0
      %377 = vst.msk [vmem:[#allocation2 + $0x90] sm:$0x1] %vm370, 0.0
      %378 = vst.msk [vmem:[#allocation2 + $0xa8] sm:$0x1] %vm370, 0.0
      %379 = vst.msk [vmem:[#allocation2 + $0xc0] sm:$0x1] %vm370, 0.0
      %380 = vst.msk [vmem:[#allocation2 + $0xd8] sm:$0x1] %vm370, 0.0
      %381 = vst.msk [vmem:[#allocation2 + $0xf0] sm:$0x1] %vm370, 0.0
      %382 = vst.msk [vmem:[#allocation2 + $0x108] sm:$0x1] %vm370, 0.0
      %383 = vst.msk [vmem:[#allocation2 + $0x120] sm:$0x1] %vm370, 0.0
      %384 = vst.msk [vmem:[#allocation2 + $0x138] sm:$0x1] %vm370, 0.0
      %385 = vst.msk [vmem:[#allocation2 + $0x150] sm:$0x1] %vm370, 0.0
      %386 = vst.msk [vmem:[#allocation2 + $0x168] sm:$0x1] %vm370, 0.0
      %387 = vst.msk [vmem:[#allocation2 + $0x180] sm:$0x1] %vm370, 0.0
      %388 = vst.msk [vmem:[#allocation2 + $0x198] sm:$0x1] %vm370, 0.0
      %389 = vst.msk [vmem:[#allocation2 + $0x11] sm:$0x1] %vm370, 0.0
      %390 = vst.msk [vmem:[#allocation2 + $0x29] sm:$0x1] %vm370, 0.0
      %391 = vst.msk [vmem:[#allocation2 + $0x41] sm:$0x1] %vm370, 0.0
      %392 = vst.msk [vmem:[#allocation2 + $0x59] sm:$0x1] %vm370, 0.0
      %393 = vst.msk [vmem:[#allocation2 + $0x71] sm:$0x1] %vm370, 0.0
      %394 = vst.msk [vmem:[#allocation2 + $0x89] sm:$0x1] %vm370, 0.0
      %395 = vst.msk [vmem:[#allocation2 + $0xa1] sm:$0x1] %vm370, 0.0
      %396 = vst.msk [vmem:[#allocation2 + $0xb9] sm:$0x1] %vm370, 0.0
      %397 = vst.msk [vmem:[#allocation2 + $0xd1] sm:$0x1] %vm370, 0.0
      %398 = vst.msk [vmem:[#allocation2 + $0xe9] sm:$0x1] %vm370, 0.0
      %399 = vst.msk [vmem:[#allocation2 + $0x101] sm:$0x1] %vm370, 0.0
      %400 = vst.msk [vmem:[#allocation2 + $0x119] sm:$0x1] %vm370, 0.0
      %401 = vst.msk [vmem:[#allocation2 + $0x131] sm:$0x1] %vm370, 0.0
      %402 = vst.msk [vmem:[#allocation2 + $0x149] sm:$0x1] %vm370, 0.0
      %403 = vst.msk [vmem:[#allocation2 + $0x161] sm:$0x1] %vm370, 0.0
      %404 = vst.msk [vmem:[#allocation2 + $0x179] sm:$0x1] %vm370, 0.0
      %405 = vst.msk [vmem:[#allocation2 + $0x191] sm:$0x1] %vm370, 0.0
      %406 = vst.msk [vmem:[#allocation2 + $0x1a9] sm:$0x1] %vm370, 0.0
      %v407 = vld [vmem:[%s354] sm:$0xf]
      %v408 = vld [vmem:[%s354 + $0x4] sm:$0xf]
      %v409 = vld [vmem:[%s354 + $0x8] sm:$0xf]
      %v410 = vld [vmem:[%s354 + $0xc] sm:$0xf]
      %v411 = vld [vmem:[%s354 + $0x10] sm:$0xf]
      %v412 = vld [vmem:[%s354 + $0x14] sm:$0xf]
      %v413 = vld [vmem:[%s354 + $0x18] sm:$0xf]
      %v414 = vld [vmem:[%s354 + $0x1c] sm:$0xf]
      %v415 = vld [vmem:[%s354 + $0x20] sm:$0xf]
      %v416 = vld [vmem:[%s354 + $0x24] sm:$0xf]
      %v417 = vld [vmem:[%s354 + $0x28] sm:$0xf]
      %v418 = vld [vmem:[%s354 + $0x2c] sm:$0xf]
      %v419 = vld [vmem:[%s354 + $0x30] sm:$0xf]
      %v420 = vld [vmem:[%s354 + $0x34] sm:$0xf]
      %v421 = vld [vmem:[%s354 + $0x38] sm:$0xf]
      %v422 = vld [vmem:[%s354 + $0x3c] sm:$0xf]
      %v423 = vld [vmem:[%s354 + $0x40] sm:$0xf]
      %v424 = vld [vmem:[%s354 + $0x44] sm:$0xf]
      %v425 = vld [vmem:[%s354 + $0x48] sm:$0xf]
      %v426 = vld [vmem:[%s354 + $0x4c] sm:$0xf]
      %v427 = vld [vmem:[%s354 + $0x50] sm:$0xf]
      %v428 = vld [vmem:[%s354 + $0x54] sm:$0xf]
      %v429 = vld [vmem:[%s354 + $0x58] sm:$0xf]
      %v430 = vld [vmem:[%s354 + $0x5c] sm:$0xf]
      %v431 = vld [vmem:[%s354 + $0x60] sm:$0xf]
      %v432 = vld [vmem:[%s354 + $0x64] sm:$0xf]
      %v433 = vld [vmem:[%s354 + $0x68] sm:$0xf]
      %v434 = vld [vmem:[%s354 + $0x6c] sm:$0xf]
      %v435 = vld [vmem:[%s354 + $0x70] sm:$0xf]
      %v436 = vld [vmem:[%s354 + $0x74] sm:$0xf]
      %v437 = vld [vmem:[%s354 + $0x78] sm:$0xf]
      %v438 = vld [vmem:[%s354 + $0x7c] sm:$0xf]
      %v439 = vunpack.c.l.bf16 %v407
      %v440 = vunpack.c.l.bf16 %v408
      %v441 = vunpack.c.l.bf16 %v409
      %v442 = vunpack.c.l.bf16 %v410
      %v443 = vunpack.c.l.bf16 %v411
      %v444 = vunpack.c.l.bf16 %v412
      %v445 = vunpack.c.l.bf16 %v413
      %v446 = vunpack.c.l.bf16 %v414
      %v447 = vunpack.c.l.bf16 %v415
      %v448 = vunpack.c.l.bf16 %v416
      %v449 = vunpack.c.l.bf16 %v417
      %v450 = vunpack.c.l.bf16 %v418
      %v451 = vunpack.c.l.bf16 %v419
      %v452 = vunpack.c.l.bf16 %v420
      %v453 = vunpack.c.l.bf16 %v421
      %v454 = vunpack.c.l.bf16 %v422
      %v455 = vunpack.c.l.bf16 %v423
      %v456 = vunpack.c.l.bf16 %v424
      %v457 = vunpack.c.l.bf16 %v425
      %v458 = vunpack.c.l.bf16 %v426
      %v459 = vunpack.c.l.bf16 %v427
      %v460 = vunpack.c.l.bf16 %v428
      %v461 = vunpack.c.l.bf16 %v429
      %v462 = vunpack.c.l.bf16 %v430
      %v463 = vunpack.c.l.bf16 %v431
      %v464 = vunpack.c.l.bf16 %v432
      %v465 = vunpack.c.l.bf16 %v433
      %v466 = vunpack.c.l.bf16 %v434
      %v467 = vunpack.c.l.bf16 %v435
      %v468 = vunpack.c.l.bf16 %v436
      %v469 = vunpack.c.l.bf16 %v437
      %v470 = vunpack.c.l.bf16 %v438
      %s471 = scalar_lea.vmem [#allocation2], 24
      %472 = vst.msk [vmem:[%s471 + $0x1] sm:$0xff] %vm361, %v439
      %473 = vst.msk [vmem:[%s471 + $0x9] sm:$0xff] %vm361, %v440
      %474 = vst.msk [vmem:[%s471 + $0x19] sm:$0xff] %vm361, %v441
      %475 = vst.msk [vmem:[%s471 + $0x21] sm:$0xff] %vm361, %v442
      %476 = vst.msk [vmem:[%s471 + $0x31] sm:$0xff] %vm361, %v443
      %477 = vst.msk [vmem:[%s471 + $0x39] sm:$0xff] %vm361, %v444
      %478 = vst.msk [vmem:[%s471 + $0x49] sm:$0xff] %vm361, %v445
      %479 = vst.msk [vmem:[%s471 + $0x51] sm:$0xff] %vm361, %v446
      %480 = vst.msk [vmem:[%s471 + $0x61] sm:$0xff] %vm361, %v447
      %481 = vst.msk [vmem:[%s471 + $0x69] sm:$0xff] %vm361, %v448
      %482 = vst.msk [vmem:[%s471 + $0x79] sm:$0xff] %vm361, %v449
      %483 = vst.msk [vmem:[%s471 + $0x81] sm:$0xff] %vm361, %v450
      %484 = vst.msk [vmem:[%s471 + $0x91] sm:$0xff] %vm361, %v451
      %485 = vst.msk [vmem:[%s471 + $0x99] sm:$0xff] %vm361, %v452
      %486 = vst.msk [vmem:[%s471 + $0xa9] sm:$0xff] %vm361, %v453
      %487 = vst.msk [vmem:[%s471 + $0xb1] sm:$0xff] %vm361, %v454
      %488 = vst.msk [vmem:[%s471 + $0xc1] sm:$0xff] %vm361, %v455
      %489 = vst.msk [vmem:[%s471 + $0xc9] sm:$0xff] %vm361, %v456
      %490 = vst.msk [vmem:[%s471 + $0xd9] sm:$0xff] %vm361, %v457
      %491 = vst.msk [vmem:[%s471 + $0xe1] sm:$0xff] %vm361, %v458
      %492 = vst.msk [vmem:[%s471 + $0xf1] sm:$0xff] %vm361, %v459
      %493 = vst.msk [vmem:[%s471 + $0xf9] sm:$0xff] %vm361, %v460
      %494 = vst.msk [vmem:[%s471 + $0x109] sm:$0xff] %vm361, %v461
      %495 = vst.msk [vmem:[%s471 + $0x111] sm:$0xff] %vm361, %v462
      %496 = vst.msk [vmem:[%s471 + $0x121] sm:$0xff] %vm361, %v463
      %497 = vst.msk [vmem:[%s471 + $0x129] sm:$0xff] %vm361, %v464
      %498 = vst.msk [vmem:[%s471 + $0x139] sm:$0xff] %vm361, %v465
      %499 = vst.msk [vmem:[%s471 + $0x141] sm:$0xff] %vm361, %v466
      %500 = vst.msk [vmem:[%s471 + $0x151] sm:$0xff] %vm361, %v467
      %501 = vst.msk [vmem:[%s471 + $0x159] sm:$0xff] %vm361, %v468
      %502 = vst.msk [vmem:[%s471 + $0x169] sm:$0xff] %vm361, %v469
      %503 = vst.msk [vmem:[%s471 + $0x171] sm:$0xff] %vm361, %v470
      %v504 = vld [vmem:[%s2] sm:$0x1]
      %v505 = vld [vmem:[%s3] sm:$0x1]
      %v506 = vld [vmem:[#allocation2] sm:$0xff]
      %v507 = vld [vmem:[#allocation2 + $0x8] sm:$0xff]
      %v508 = vld [vmem:[#allocation2 + $0x18] sm:$0xff]
      %v509 = vld [vmem:[#allocation2 + $0x20] sm:$0xff]
      %v510 = vld [vmem:[#allocation2 + $0x30] sm:$0xff]
      %v511 = vld [vmem:[#allocation2 + $0x38] sm:$0xff]
      %v512 = vld [vmem:[#allocation2 + $0x48] sm:$0xff]
      %v513 = vld [vmem:[#allocation2 + $0x50] sm:$0xff]
      %v514 = vld [vmem:[#allocation2 + $0x60] sm:$0xff]
      %v515 = vld [vmem:[#allocation2 + $0x68] sm:$0xff]
      %v516 = vld [vmem:[#allocation2 + $0x78] sm:$0xff]
      %v517 = vld [vmem:[#allocation2 + $0x80] sm:$0xff]
      %v518 = vld [vmem:[#allocation2 + $0x90] sm:$0xff]
      %v519 = vld [vmem:[#allocation2 + $0x98] sm:$0xff]
      %v520 = vld [vmem:[#allocation2 + $0xa8] sm:$0xff]
      %v521 = vld [vmem:[#allocation2 + $0xb0] sm:$0xff]
      %v522 = vld [vmem:[#allocation2 + $0xc0] sm:$0xff]
      %v523 = vld [vmem:[#allocation2 + $0xc8] sm:$0xff]
      %v524 = vld [vmem:[#allocation2 + $0xd8] sm:$0xff]
      %v525 = vld [vmem:[#allocation2 + $0xe0] sm:$0xff]
      %v526 = vld [vmem:[#allocation2 + $0xf0] sm:$0xff]
      %v527 = vld [vmem:[#allocation2 + $0xf8] sm:$0xff]
      %v528 = vld [vmem:[#allocation2 + $0x108] sm:$0xff]
      %v529 = vld [vmem:[#allocation2 + $0x110] sm:$0xff]
      %v530 = vld [vmem:[#allocation2 + $0x120] sm:$0xff]
      %v531 = vld [vmem:[#allocation2 + $0x128] sm:$0xff]
      %v532 = vld [vmem:[#allocation2 + $0x138] sm:$0xff]
      %v533 = vld [vmem:[#allocation2 + $0x140] sm:$0xff]
      %v534 = vld [vmem:[#allocation2 + $0x150] sm:$0xff]
      %v535 = vld [vmem:[#allocation2 + $0x158] sm:$0xff]
      %v536 = vld [vmem:[#allocation2 + $0x168] sm:$0xff]
      %v537 = vld [vmem:[#allocation2 + $0x170] sm:$0xff]
      %v538 = vpack.c.bf16 %v507, %v506
      %v539 = vpack.c.bf16 %v509, %v508
      %v540 = vpack.c.bf16 %v511, %v510
      %v541 = vpack.c.bf16 %v513, %v512
      %v542 = vpack.c.bf16 %v515, %v514
      %v543 = vpack.c.bf16 %v517, %v516
      %v544 = vpack.c.bf16 %v519, %v518
      %v545 = vpack.c.bf16 %v521, %v520
      %v546 = vpack.c.bf16 %v523, %v522
      %v547 = vpack.c.bf16 %v525, %v524
      %v548 = vpack.c.bf16 %v527, %v526
      %v549 = vpack.c.bf16 %v529, %v528
      %v550 = vpack.c.bf16 %v531, %v530
      %v551 = vpack.c.bf16 %v533, %v532
      %v552 = vpack.c.bf16 %v535, %v534
      %v553 = vpack.c.bf16 %v537, %v536
      %554 = vst.msk [vmem:[#allocation4] sm:$0xff] %vm361, %v538
      %555 = vst.msk [vmem:[#allocation4 + $0x8] sm:$0xff] %vm361, %v539
      %556 = vst.msk [vmem:[#allocation4 + $0x10] sm:$0xff] %vm361, %v540
      %557 = vst.msk [vmem:[#allocation4 + $0x18] sm:$0xff] %vm361, %v541
      %558 = vst.msk [vmem:[#allocation4 + $0x20] sm:$0xff] %vm361, %v542
      %559 = vst.msk [vmem:[#allocation4 + $0x28] sm:$0xff] %vm361, %v543
      %560 = vst.msk [vmem:[#allocation4 + $0x30] sm:$0xff] %vm361, %v544
      %561 = vst.msk [vmem:[#allocation4 + $0x38] sm:$0xff] %vm361, %v545
      %562 = vst.msk [vmem:[#allocation4 + $0x40] sm:$0xff] %vm361, %v546
      %563 = vst.msk [vmem:[#allocation4 + $0x48] sm:$0xff] %vm361, %v547
      %564 = vst.msk [vmem:[#allocation4 + $0x50] sm:$0xff] %vm361, %v548
      %565 = vst.msk [vmem:[#allocation4 + $0x58] sm:$0xff] %vm361, %v549
      %566 = vst.msk [vmem:[#allocation4 + $0x60] sm:$0xff] %vm361, %v550
      %567 = vst.msk [vmem:[#allocation4 + $0x68] sm:$0xff] %vm361, %v551
      %568 = vst.msk [vmem:[#allocation4 + $0x70] sm:$0xff] %vm361, %v552
      %569 = vst.msk [vmem:[#allocation4 + $0x78] sm:$0xff] %vm361, %v553
      %v570 = vld [vmem:[#allocation2 + $0x1] sm:$0xff]
      %v571 = vld [vmem:[#allocation2 + $0x9] sm:$0xff]
      %v572 = vld [vmem:[#allocation2 + $0x19] sm:$0xff]
      %v573 = vld [vmem:[#allocation2 + $0x21] sm:$0xff]
      %v574 = vld [vmem:[#allocation2 + $0x31] sm:$0xff]
      %v575 = vld [vmem:[#allocation2 + $0x39] sm:$0xff]
      %v576 = vld [vmem:[#allocation2 + $0x49] sm:$0xff]
      %v577 = vld [vmem:[#allocation2 + $0x51] sm:$0xff]
      %v578 = vld [vmem:[#allocation2 + $0x61] sm:$0xff]
      %v579 = vld [vmem:[#allocation2 + $0x69] sm:$0xff]
      %v580 = vld [vmem:[#allocation2 + $0x79] sm:$0xff]
      %v581 = vld [vmem:[#allocation2 + $0x81] sm:$0xff]
      %v582 = vld [vmem:[#allocation2 + $0x91] sm:$0xff]
      %v583 = vld [vmem:[#allocation2 + $0x99] sm:$0xff]
      %v584 = vld [vmem:[#allocation2 + $0xa9] sm:$0xff]
      %v585 = vld [vmem:[#allocation2 + $0xb1] sm:$0xff]
      %v586 = vld [vmem:[#allocation2 + $0xc1] sm:$0xff]
      %v587 = vld [vmem:[#allocation2 + $0xc9] sm:$0xff]
      %v588 = vld [vmem:[#allocation2 + $0xd9] sm:$0xff]
      %v589 = vld [vmem:[#allocation2 + $0xe1] sm:$0xff]
      %v590 = vld [vmem:[#allocation2 + $0xf1] sm:$0xff]
      %v591 = vld [vmem:[#allocation2 + $0xf9] sm:$0xff]
      %v592 = vld [vmem:[#allocation2 + $0x109] sm:$0xff]
      %v593 = vld [vmem:[#allocation2 + $0x111] sm:$0xff]
      %v594 = vld [vmem:[#allocation2 + $0x121] sm:$0xff]
      %v595 = vld [vmem:[#allocation2 + $0x129] sm:$0xff]
      %v596 = vld [vmem:[#allocation2 + $0x139] sm:$0xff]
      %v597 = vld [vmem:[#allocation2 + $0x141] sm:$0xff]
      %v598 = vld [vmem:[#allocation2 + $0x151] sm:$0xff]
      %v599 = vld [vmem:[#allocation2 + $0x159] sm:$0xff]
      %v600 = vld [vmem:[#allocation2 + $0x169] sm:$0xff]
      %v601 = vld [vmem:[#allocation2 + $0x171] sm:$0xff]
      %v602 = vpack.c.bf16 %v571, %v570
      %v603 = vpack.c.bf16 %v573, %v572
      %v604 = vpack.c.bf16 %v575, %v574
      %v605 = vpack.c.bf16 %v577, %v576
      %v606 = vpack.c.bf16 %v579, %v578
      %v607 = vpack.c.bf16 %v581, %v580
      %v608 = vpack.c.bf16 %v583, %v582
      %v609 = vpack.c.bf16 %v585, %v584
      %v610 = vpack.c.bf16 %v587, %v586
      %v611 = vpack.c.bf16 %v589, %v588
      %v612 = vpack.c.bf16 %v591, %v590
      %v613 = vpack.c.bf16 %v593, %v592
      %v614 = vpack.c.bf16 %v595, %v594
      %v615 = vpack.c.bf16 %v597, %v596
      %v616 = vpack.c.bf16 %v599, %v598
      %v617 = vpack.c.bf16 %v601, %v600
      %634 = vrot.lane.b32.xlu0 %v602, 4
      %v635 = vpop.permute.xlu0 %634
      %636 = vrot.lane.b32.xlu0 %v603, 4
      %v637 = vpop.permute.xlu0 %636
      %638 = vrot.lane.b32.xlu0 %v604, 4
      %v639 = vpop.permute.xlu0 %638
      %640 = vrot.lane.b32.xlu0 %v605, 4
      %v641 = vpop.permute.xlu0 %640
      %642 = vrot.lane.b32.xlu0 %v606, 4
      %v643 = vpop.permute.xlu0 %642
      %644 = vrot.lane.b32.xlu0 %v607, 4
      %v645 = vpop.permute.xlu0 %644
      %646 = vrot.lane.b32.xlu0 %v608, 4
      %v647 = vpop.permute.xlu0 %646
      %648 = vrot.lane.b32.xlu0 %v609, 4
      %v649 = vpop.permute.xlu0 %648
      %650 = vrot.lane.b32.xlu0 %v610, 4
      %v651 = vpop.permute.xlu0 %650
      %652 = vrot.lane.b32.xlu0 %v611, 4
      %v653 = vpop.permute.xlu0 %652
      %654 = vrot.lane.b32.xlu0 %v612, 4
      %v655 = vpop.permute.xlu0 %654
      %656 = vrot.lane.b32.xlu0 %v613, 4
      %v657 = vpop.permute.xlu0 %656
      %658 = vrot.lane.b32.xlu0 %v614, 4
      %v659 = vpop.permute.xlu0 %658
      %660 = vrot.lane.b32.xlu0 %v615, 4
      %v661 = vpop.permute.xlu0 %660
      %662 = vrot.lane.b32.xlu0 %v616, 4
      %v663 = vpop.permute.xlu0 %662
      %664 = vrot.lane.b32.xlu0 %v617, 4
      %v665 = vpop.permute.xlu0 %664
      %vm682 = vcmask 64544
      %683 = vst.msk [vmem:[#allocation4] sm:$0xff] %vm682, %v635
      %684 = vst.msk [vmem:[#allocation4 + $0x8] sm:$0xff] %vm682, %v637
      %685 = vst.msk [vmem:[#allocation4 + $0x10] sm:$0xff] %vm682, %v639
      %686 = vst.msk [vmem:[#allocation4 + $0x18] sm:$0xff] %vm682, %v641
      %687 = vst.msk [vmem:[#allocation4 + $0x20] sm:$0xff] %vm682, %v643
      %688 = vst.msk [vmem:[#allocation4 + $0x28] sm:$0xff] %vm682, %v645
      %689 = vst.msk [vmem:[#allocation4 + $0x30] sm:$0xff] %vm682, %v647
      %690 = vst.msk [vmem:[#allocation4 + $0x38] sm:$0xff] %vm682, %v649
      %691 = vst.msk [vmem:[#allocation4 + $0x40] sm:$0xff] %vm682, %v651
      %692 = vst.msk [vmem:[#allocation4 + $0x48] sm:$0xff] %vm682, %v653
      %693 = vst.msk [vmem:[#allocation4 + $0x50] sm:$0xff] %vm682, %v655
      %694 = vst.msk [vmem:[#allocation4 + $0x58] sm:$0xff] %vm682, %v657
      %695 = vst.msk [vmem:[#allocation4 + $0x60] sm:$0xff] %vm682, %v659
      %696 = vst.msk [vmem:[#allocation4 + $0x68] sm:$0xff] %vm682, %v661
      %697 = vst.msk [vmem:[#allocation4 + $0x70] sm:$0xff] %vm682, %v663
      %698 = vst.msk [vmem:[#allocation4 + $0x78] sm:$0xff] %vm682, %v665
      %v699 = vld [vmem:[#allocation2 + $0x2] sm:$0xff]
      %v700 = vld [vmem:[#allocation2 + $0xa] sm:$0xff]
      %v701 = vld [vmem:[#allocation2 + $0x1a] sm:$0xff]
      %v702 = vld [vmem:[#allocation2 + $0x22] sm:$0xff]
      %v703 = vld [vmem:[#allocation2 + $0x32] sm:$0xff]
      %v704 = vld [vmem:[#allocation2 + $0x3a] sm:$0xff]
      %v705 = vld [vmem:[#allocation2 + $0x4a] sm:$0xff]
      %v706 = vld [vmem:[#allocation2 + $0x52] sm:$0xff]
      %v707 = vld [vmem:[#allocation2 + $0x62] sm:$0xff]
      %v708 = vld [vmem:[#allocation2 + $0x6a] sm:$0xff]
      %v709 = vld [vmem:[#allocation2 + $0x7a] sm:$0xff]
      %v710 = vld [vmem:[#allocation2 + $0x82] sm:$0xff]
      %v711 = vld [vmem:[#allocation2 + $0x92] sm:$0xff]
      %v712 = vld [vmem:[#allocation2 + $0x9a] sm:$0xff]
      %v713 = vld [vmem:[#allocation2 + $0xaa] sm:$0xff]
      %v714 = vld [vmem:[#allocation2 + $0xb2] sm:$0xff]
      %v715 = vld [vmem:[#allocation2 + $0xc2] sm:$0xff]
      %v716 = vld [vmem:[#allocation2 + $0xca] sm:$0xff]
      %v717 = vld [vmem:[#allocation2 + $0xda] sm:$0xff]
      %v718 = vld [vmem:[#allocation2 + $0xe2] sm:$0xff]
      %v719 = vld [vmem:[#allocation2 + $0xf2] sm:$0xff]
      %v720 = vld [vmem:[#allocation2 + $0xfa] sm:$0xff]
      %v721 = vld [vmem:[#allocation2 + $0x10a] sm:$0xff]
      %v722 = vld [vmem:[#allocation2 + $0x112] sm:$0xff]
      %v723 = vld [vmem:[#allocation2 + $0x122] sm:$0xff]
      %v724 = vld [vmem:[#allocation2 + $0x12a] sm:$0xff]
      %v725 = vld [vmem:[#allocation2 + $0x13a] sm:$0xff]
      %v726 = vld [vmem:[#allocation2 + $0x142] sm:$0xff]
      %v727 = vld [vmem:[#allocation2 + $0x152] sm:$0xff]
      %v728 = vld [vmem:[#allocation2 + $0x15a] sm:$0xff]
      %v729 = vld [vmem:[#allocation2 + $0x16a] sm:$0xff]
      %v730 = vld [vmem:[#allocation2 + $0x172] sm:$0xff]
      %v731 = vpack.c.bf16 %v700, %v699
      %v732 = vpack.c.bf16 %v702, %v701
      %v733 = vpack.c.bf16 %v704, %v703
      %v734 = vpack.c.bf16 %v706, %v705
      %v735 = vpack.c.bf16 %v708, %v707
      %v736 = vpack.c.bf16 %v710, %v709
      %v737 = vpack.c.bf16 %v712, %v711
      %v738 = vpack.c.bf16 %v714, %v713
      %v739 = vpack.c.bf16 %v716, %v715
      %v740 = vpack.c.bf16 %v718, %v717
      %v741 = vpack.c.bf16 %v720, %v719
      %v742 = vpack.c.bf16 %v722, %v721
      %v743 = vpack.c.bf16 %v724, %v723
      %v744 = vpack.c.bf16 %v726, %v725
      %v745 = vpack.c.bf16 %v728, %v727
      %v746 = vpack.c.bf16 %v730, %v729
      %763 = vrot.lane.b32.xlu0 %v731, 8
      %v764 = vpop.permute.xlu0 %763
      %765 = vrot.lane.b32.xlu0 %v732, 8
      %v766 = vpop.permute.xlu0 %765
      %767 = vrot.lane.b32.xlu0 %v733, 8
      %v768 = vpop.permute.xlu0 %767
      %769 = vrot.lane.b32.xlu0 %v734, 8
      %v770 = vpop.permute.xlu0 %769
      %771 = vrot.lane.b32.xlu0 %v735, 8
      %v772 = vpop.permute.xlu0 %771
      %773 = vrot.lane.b32.xlu0 %v736, 8
      %v774 = vpop.permute.xlu0 %773
      %775 = vrot.lane.b32.xlu0 %v737, 8
      %v776 = vpop.permute.xlu0 %775
      %777 = vrot.lane.b32.xlu0 %v738, 8
      %v778 = vpop.permute.xlu0 %777
      %779 = vrot.lane.b32.xlu0 %v739, 8
      %v780 = vpop.permute.xlu0 %779
      %781 = vrot.lane.b32.xlu0 %v740, 8
      %v782 = vpop.permute.xlu0 %781
      %783 = vrot.lane.b32.xlu0 %v741, 8
      %v784 = vpop.permute.xlu0 %783
      %785 = vrot.lane.b32.xlu0 %v742, 8
      %v786 = vpop.permute.xlu0 %785
      %787 = vrot.lane.b32.xlu0 %v743, 8
      %v788 = vpop.permute.xlu0 %787
      %789 = vrot.lane.b32.xlu0 %v744, 8
      %v790 = vpop.permute.xlu0 %789
      %791 = vrot.lane.b32.xlu0 %v745, 8
      %v792 = vpop.permute.xlu0 %791
      %793 = vrot.lane.b32.xlu0 %v746, 8
      %v794 = vpop.permute.xlu0 %793
      %vm811 = vcmask 97344
      %812 = vst.msk [vmem:[#allocation4] sm:$0xff] %vm811, %v764
      %813 = vst.msk [vmem:[#allocation4 + $0x8] sm:$0xff] %vm811, %v766
      %814 = vst.msk [vmem:[#allocation4 + $0x10] sm:$0xff] %vm811, %v768
      %815 = vst.msk [vmem:[#allocation4 + $0x18] sm:$0xff] %vm811, %v770
      %816 = vst.msk [vmem:[#allocation4 + $0x20] sm:$0xff] %vm811, %v772
      %817 = vst.msk [vmem:[#allocation4 + $0x28] sm:$0xff] %vm811, %v774
      %818 = vst.msk [vmem:[#allocation4 + $0x30] sm:$0xff] %vm811, %v776
      %819 = vst.msk [vmem:[#allocation4 + $0x38] sm:$0xff] %vm811, %v778
      %820 = vst.msk [vmem:[#allocation4 + $0x40] sm:$0xff] %vm811, %v780
      %821 = vst.msk [vmem:[#allocation4 + $0x48] sm:$0xff] %vm811, %v782
      %822 = vst.msk [vmem:[#allocation4 + $0x50] sm:$0xff] %vm811, %v784
      %823 = vst.msk [vmem:[#allocation4 + $0x58] sm:$0xff] %vm811, %v786
      %824 = vst.msk [vmem:[#allocation4 + $0x60] sm:$0xff] %vm811, %v788
      %825 = vst.msk [vmem:[#allocation4 + $0x68] sm:$0xff] %vm811, %v790
      %826 = vst.msk [vmem:[#allocation4 + $0x70] sm:$0xff] %vm811, %v792
      %827 = vst.msk [vmem:[#allocation4 + $0x78] sm:$0xff] %vm811, %v794
      %v828 = vld [vmem:[%s471] sm:$0xff]
      %v829 = vld [vmem:[%s471 + $0x8] sm:$0xff]
      %v830 = vld [vmem:[%s471 + $0x18] sm:$0xff]
      %v831 = vld [vmem:[%s471 + $0x20] sm:$0xff]
      %v832 = vld [vmem:[%s471 + $0x30] sm:$0xff]
      %v833 = vld [vmem:[%s471 + $0x38] sm:$0xff]
      %v834 = vld [vmem:[%s471 + $0x48] sm:$0xff]
      %v835 = vld [vmem:[%s471 + $0x50] sm:$0xff]
      %v836 = vld [vmem:[%s471 + $0x60] sm:$0xff]
      %v837 = vld [vmem:[%s471 + $0x68] sm:$0xff]
      %v838 = vld [vmem:[%s471 + $0x78] sm:$0xff]
      %v839 = vld [vmem:[%s471 + $0x80] sm:$0xff]
      %v840 = vld [vmem:[%s471 + $0x90] sm:$0xff]
      %v841 = vld [vmem:[%s471 + $0x98] sm:$0xff]
      %v842 = vld [vmem:[%s471 + $0xa8] sm:$0xff]
      %v843 = vld [vmem:[%s471 + $0xb0] sm:$0xff]
      %v844 = vld [vmem:[%s471 + $0xc0] sm:$0xff]
      %v845 = vld [vmem:[%s471 + $0xc8] sm:$0xff]
      %v846 = vld [vmem:[%s471 + $0xd8] sm:$0xff]
      %v847 = vld [vmem:[%s471 + $0xe0] sm:$0xff]
      %v848 = vld [vmem:[%s471 + $0xf0] sm:$0xff]
      %v849 = vld [vmem:[%s471 + $0xf8] sm:$0xff]
      %v850 = vld [vmem:[%s471 + $0x108] sm:$0xff]
      %v851 = vld [vmem:[%s471 + $0x110] sm:$0xff]
      %v852 = vld [vmem:[%s471 + $0x120] sm:$0xff]
      %v853 = vld [vmem:[%s471 + $0x128] sm:$0xff]
      %v854 = vld [vmem:[%s471 + $0x138] sm:$0xff]
      %v855 = vld [vmem:[%s471 + $0x140] sm:$0xff]
      %v856 = vld [vmem:[%s471 + $0x150] sm:$0xff]
      %v857 = vld [vmem:[%s471 + $0x158] sm:$0xff]
      %v858 = vld [vmem:[%s471 + $0x168] sm:$0xff]
      %v859 = vld [vmem:[%s471 + $0x170] sm:$0xff]
      %v860 = vpack.c.bf16 %v829, %v828
      %v861 = vpack.c.bf16 %v831, %v830
      %v862 = vpack.c.bf16 %v833, %v832
      %v863 = vpack.c.bf16 %v835, %v834
      %v864 = vpack.c.bf16 %v837, %v836
      %v865 = vpack.c.bf16 %v839, %v838
      %v866 = vpack.c.bf16 %v841, %v840
      %v867 = vpack.c.bf16 %v843, %v842
      %v868 = vpack.c.bf16 %v845, %v844
      %v869 = vpack.c.bf16 %v847, %v846
      %v870 = vpack.c.bf16 %v849, %v848
      %v871 = vpack.c.bf16 %v851, %v850
      %v872 = vpack.c.bf16 %v853, %v852
      %v873 = vpack.c.bf16 %v855, %v854
      %v874 = vpack.c.bf16 %v857, %v856
      %v875 = vpack.c.bf16 %v859, %v858
      %892 = vrot.lane.b32.xlu0 %v860, 12
      %v893 = vpop.permute.xlu0 %892
      %894 = vrot.lane.b32.xlu0 %v861, 12
      %v895 = vpop.permute.xlu0 %894
      %896 = vrot.lane.b32.xlu0 %v862, 12
      %v897 = vpop.permute.xlu0 %896
      %898 = vrot.lane.b32.xlu0 %v863, 12
      %v899 = vpop.permute.xlu0 %898
      %900 = vrot.lane.b32.xlu0 %v864, 12
      %v901 = vpop.permute.xlu0 %900
      %902 = vrot.lane.b32.xlu0 %v865, 12
      %v903 = vpop.permute.xlu0 %902
      %904 = vrot.lane.b32.xlu0 %v866, 12
      %v905 = vpop.permute.xlu0 %904
      %906 = vrot.lane.b32.xlu0 %v867, 12
      %v907 = vpop.permute.xlu0 %906
      %908 = vrot.lane.b32.xlu0 %v868, 12
      %v909 = vpop.permute.xlu0 %908
      %910 = vrot.lane.b32.xlu0 %v869, 12
      %v911 = vpop.permute.xlu0 %910
      %912 = vrot.lane.b32.xlu0 %v870, 12
      %v913 = vpop.permute.xlu0 %912
      %914 = vrot.lane.b32.xlu0 %v871, 12
      %v915 = vpop.permute.xlu0 %914
      %916 = vrot.lane.b32.xlu0 %v872, 12
      %v917 = vpop.permute.xlu0 %916
      %918 = vrot.lane.b32.xlu0 %v873, 12
      %v919 = vpop.permute.xlu0 %918
      %920 = vrot.lane.b32.xlu0 %v874, 12
      %v921 = vpop.permute.xlu0 %920
      %922 = vrot.lane.b32.xlu0 %v875, 12
      %v923 = vpop.permute.xlu0 %922
      %vm940 = vcmask 130144
      %941 = vst.msk [vmem:[#allocation4] sm:$0xff] %vm940, %v893
      %942 = vst.msk [vmem:[#allocation4 + $0x8] sm:$0xff] %vm940, %v895
      %943 = vst.msk [vmem:[#allocation4 + $0x10] sm:$0xff] %vm940, %v897
      %944 = vst.msk [vmem:[#allocation4 + $0x18] sm:$0xff] %vm940, %v899
      %945 = vst.msk [vmem:[#allocation4 + $0x20] sm:$0xff] %vm940, %v901
      %946 = vst.msk [vmem:[#allocation4 + $0x28] sm:$0xff] %vm940, %v903
      %947 = vst.msk [vmem:[#allocation4 + $0x30] sm:$0xff] %vm940, %v905
      %948 = vst.msk [vmem:[#allocation4 + $0x38] sm:$0xff] %vm940, %v907
      %949 = vst.msk [vmem:[#allocation4 + $0x40] sm:$0xff] %vm940, %v909
      %950 = vst.msk [vmem:[#allocation4 + $0x48] sm:$0xff] %vm940, %v911
      %951 = vst.msk [vmem:[#allocation4 + $0x50] sm:$0xff] %vm940, %v913
      %952 = vst.msk [vmem:[#allocation4 + $0x58] sm:$0xff] %vm940, %v915
      %953 = vst.msk [vmem:[#allocation4 + $0x60] sm:$0xff] %vm940, %v917
      %954 = vst.msk [vmem:[#allocation4 + $0x68] sm:$0xff] %vm940, %v919
      %955 = vst.msk [vmem:[#allocation4 + $0x70] sm:$0xff] %vm940, %v921
      %956 = vst.msk [vmem:[#allocation4 + $0x78] sm:$0xff] %vm940, %v923
      %v957 = vld [vmem:[%s471 + $0x1] sm:$0xff]
      %v958 = vld [vmem:[%s471 + $0x9] sm:$0xff]
      %v959 = vld [vmem:[%s471 + $0x19] sm:$0xff]
      %v960 = vld [vmem:[%s471 + $0x21] sm:$0xff]
      %v961 = vld [vmem:[%s471 + $0x31] sm:$0xff]
      %v962 = vld [vmem:[%s471 + $0x39] sm:$0xff]
      %v963 = vld [vmem:[%s471 + $0x49] sm:$0xff]
      %v964 = vld [vmem:[%s471 + $0x51] sm:$0xff]
      %v965 = vld [vmem:[%s471 + $0x61] sm:$0xff]
      %v966 = vld [vmem:[%s471 + $0x69] sm:$0xff]
      %v967 = vld [vmem:[%s471 + $0x79] sm:$0xff]
      %v968 = vld [vmem:[%s471 + $0x81] sm:$0xff]
      %v969 = vld [vmem:[%s471 + $0x91] sm:$0xff]
      %v970 = vld [vmem:[%s471 + $0x99] sm:$0xff]
      %v971 = vld [vmem:[%s471 + $0xa9] sm:$0xff]
      %v972 = vld [vmem:[%s471 + $0xb1] sm:$0xff]
      %v973 = vld [vmem:[%s471 + $0xc1] sm:$0xff]
      %v974 = vld [vmem:[%s471 + $0xc9] sm:$0xff]
      %v975 = vld [vmem:[%s471 + $0xd9] sm:$0xff]
      %v976 = vld [vmem:[%s471 + $0xe1] sm:$0xff]
      %v977 = vld [vmem:[%s471 + $0xf1] sm:$0xff]
      %v978 = vld [vmem:[%s471 + $0xf9] sm:$0xff]
      %v979 = vld [vmem:[%s471 + $0x109] sm:$0xff]
      %v980 = vld [vmem:[%s471 + $0x111] sm:$0xff]
      %v981 = vld [vmem:[%s471 + $0x121] sm:$0xff]
      %v982 = vld [vmem:[%s471 + $0x129] sm:$0xff]
      %v983 = vld [vmem:[%s471 + $0x139] sm:$0xff]
      %v984 = vld [vmem:[%s471 + $0x141] sm:$0xff]
      %v985 = vld [vmem:[%s471 + $0x151] sm:$0xff]
      %v986 = vld [vmem:[%s471 + $0x159] sm:$0xff]
      %v987 = vld [vmem:[%s471 + $0x169] sm:$0xff]
      %v988 = vld [vmem:[%s471 + $0x171] sm:$0xff]
      %v989 = vpack.c.bf16 %v958, %v957
      %v990 = vpack.c.bf16 %v960, %v959
      %v991 = vpack.c.bf16 %v962, %v961
      %v992 = vpack.c.bf16 %v964, %v963
      %v993 = vpack.c.bf16 %v966, %v965
      %v994 = vpack.c.bf16 %v968, %v967
      %v995 = vpack.c.bf16 %v970, %v969
      %v996 = vpack.c.bf16 %v972, %v971
      %v997 = vpack.c.bf16 %v974, %v973
      %v998 = vpack.c.bf16 %v976, %v975
      %v999 = vpack.c.bf16 %v978, %v977
      %v1000 = vpack.c.bf16 %v980, %v979
      %v1001 = vpack.c.bf16 %v982, %v981
      %v1002 = vpack.c.bf16 %v984, %v983
      %v1003 = vpack.c.bf16 %v986, %v985
      %v1004 = vpack.c.bf16 %v988, %v987
      %1021 = vrot.lane.b32.xlu0 %v989, 16
      %v1022 = vpop.permute.xlu0 %1021
      %1023 = vrot.lane.b32.xlu0 %v990, 16
      %v1024 = vpop.permute.xlu0 %1023
      %1025 = vrot.lane.b32.xlu0 %v991, 16
      %v1026 = vpop.permute.xlu0 %1025
      %1027 = vrot.lane.b32.xlu0 %v992, 16
      %v1028 = vpop.permute.xlu0 %1027
      %1029 = vrot.lane.b32.xlu0 %v993, 16
      %v1030 = vpop.permute.xlu0 %1029
      %1031 = vrot.lane.b32.xlu0 %v994, 16
      %v1032 = vpop.permute.xlu0 %1031
      %1033 = vrot.lane.b32.xlu0 %v995, 16
      %v1034 = vpop.permute.xlu0 %1033
      %1035 = vrot.lane.b32.xlu0 %v996, 16
      %v1036 = vpop.permute.xlu0 %1035
      %1037 = vrot.lane.b32.xlu0 %v997, 16
      %v1038 = vpop.permute.xlu0 %1037
      %1039 = vrot.lane.b32.xlu0 %v998, 16
      %v1040 = vpop.permute.xlu0 %1039
      %1041 = vrot.lane.b32.xlu0 %v999, 16
      %v1042 = vpop.permute.xlu0 %1041
      %1043 = vrot.lane.b32.xlu0 %v1000, 16
      %v1044 = vpop.permute.xlu0 %1043
      %1045 = vrot.lane.b32.xlu0 %v1001, 16
      %v1046 = vpop.permute.xlu0 %1045
      %1047 = vrot.lane.b32.xlu0 %v1002, 16
      %v1048 = vpop.permute.xlu0 %1047
      %1049 = vrot.lane.b32.xlu0 %v1003, 16
      %v1050 = vpop.permute.xlu0 %1049
      %1051 = vrot.lane.b32.xlu0 %v1004, 16
      %v1052 = vpop.permute.xlu0 %1051
      %vm1069 = vcmask 162944
      %1070 = vst.msk [vmem:[#allocation4] sm:$0xff] %vm1069, %v1022
      %1071 = vst.msk [vmem:[#allocation4 + $0x8] sm:$0xff] %vm1069, %v1024
      %1072 = vst.msk [vmem:[#allocation4 + $0x10] sm:$0xff] %vm1069, %v1026
      %1073 = vst.msk [vmem:[#allocation4 + $0x18] sm:$0xff] %vm1069, %v1028
      %1074 = vst.msk [vmem:[#allocation4 + $0x20] sm:$0xff] %vm1069, %v1030
      %1075 = vst.msk [vmem:[#allocation4 + $0x28] sm:$0xff] %vm1069, %v1032
      %1076 = vst.msk [vmem:[#allocation4 + $0x30] sm:$0xff] %vm1069, %v1034
      %1077 = vst.msk [vmem:[#allocation4 + $0x38] sm:$0xff] %vm1069, %v1036
      %1078 = vst.msk [vmem:[#allocation4 + $0x40] sm:$0xff] %vm1069, %v1038
      %1079 = vst.msk [vmem:[#allocation4 + $0x48] sm:$0xff] %vm1069, %v1040
      %1080 = vst.msk [vmem:[#allocation4 + $0x50] sm:$0xff] %vm1069, %v1042
      %1081 = vst.msk [vmem:[#allocation4 + $0x58] sm:$0xff] %vm1069, %v1044
      %1082 = vst.msk [vmem:[#allocation4 + $0x60] sm:$0xff] %vm1069, %v1046
      %1083 = vst.msk [vmem:[#allocation4 + $0x68] sm:$0xff] %vm1069, %v1048
      %1084 = vst.msk [vmem:[#allocation4 + $0x70] sm:$0xff] %vm1069, %v1050
      %1085 = vst.msk [vmem:[#allocation4 + $0x78] sm:$0xff] %vm1069, %v1052
      %v1086 = vld [vmem:[%s471 + $0x2] sm:$0xff]
      %v1087 = vld [vmem:[%s471 + $0xa] sm:$0xff]
      %v1088 = vld [vmem:[%s471 + $0x1a] sm:$0xff]
      %v1089 = vld [vmem:[%s471 + $0x22] sm:$0xff]
      %v1090 = vld [vmem:[%s471 + $0x32] sm:$0xff]
      %v1091 = vld [vmem:[%s471 + $0x3a] sm:$0xff]
      %v1092 = vld [vmem:[%s471 + $0x4a] sm:$0xff]
      %v1093 = vld [vmem:[%s471 + $0x52] sm:$0xff]
      %v1094 = vld [vmem:[%s471 + $0x62] sm:$0xff]
      %v1095 = vld [vmem:[%s471 + $0x6a] sm:$0xff]
      %v1096 = vld [vmem:[%s471 + $0x7a] sm:$0xff]
      %v1097 = vld [vmem:[%s471 + $0x82] sm:$0xff]
      %v1098 = vld [vmem:[%s471 + $0x92] sm:$0xff]
      %v1099 = vld [vmem:[%s471 + $0x9a] sm:$0xff]
      %v1100 = vld [vmem:[%s471 + $0xaa] sm:$0xff]
      %v1101 = vld [vmem:[%s471 + $0xb2] sm:$0xff]
      %v1102 = vld [vmem:[%s471 + $0xc2] sm:$0xff]
      %v1103 = vld [vmem:[%s471 + $0xca] sm:$0xff]
      %v1104 = vld [vmem:[%s471 + $0xda] sm:$0xff]
      %v1105 = vld [vmem:[%s471 + $0xe2] sm:$0xff]
      %v1106 = vld [vmem:[%s471 + $0xf2] sm:$0xff]
      %v1107 = vld [vmem:[%s471 + $0xfa] sm:$0xff]
      %v1108 = vld [vmem:[%s471 + $0x10a] sm:$0xff]
      %v1109 = vld [vmem:[%s471 + $0x112] sm:$0xff]
      %v1110 = vld [vmem:[%s471 + $0x122] sm:$0xff]
      %v1111 = vld [vmem:[%s471 + $0x12a] sm:$0xff]
      %v1112 = vld [vmem:[%s471 + $0x13a] sm:$0xff]
      %v1113 = vld [vmem:[%s471 + $0x142] sm:$0xff]
      %v1114 = vld [vmem:[%s471 + $0x152] sm:$0xff]
      %v1115 = vld [vmem:[%s471 + $0x15a] sm:$0xff]
      %v1116 = vld [vmem:[%s471 + $0x16a] sm:$0xff]
      %v1117 = vld [vmem:[%s471 + $0x172] sm:$0xff]
      %v1118 = vpack.c.bf16 %v1087, %v1086
      %v1119 = vpack.c.bf16 %v1089, %v1088
      %v1120 = vpack.c.bf16 %v1091, %v1090
      %v1121 = vpack.c.bf16 %v1093, %v1092
      %v1122 = vpack.c.bf16 %v1095, %v1094
      %v1123 = vpack.c.bf16 %v1097, %v1096
      %v1124 = vpack.c.bf16 %v1099, %v1098
      %v1125 = vpack.c.bf16 %v1101, %v1100
      %v1126 = vpack.c.bf16 %v1103, %v1102
      %v1127 = vpack.c.bf16 %v1105, %v1104
      %v1128 = vpack.c.bf16 %v1107, %v1106
      %v1129 = vpack.c.bf16 %v1109, %v1108
      %v1130 = vpack.c.bf16 %v1111, %v1110
      %v1131 = vpack.c.bf16 %v1113, %v1112
      %v1132 = vpack.c.bf16 %v1115, %v1114
      %v1133 = vpack.c.bf16 %v1117, %v1116
      %1150 = vrot.lane.b32.xlu0 %v1118, 20
      %v1151 = vpop.permute.xlu0 %1150
      %1152 = vrot.lane.b32.xlu0 %v1119, 20
      %v1153 = vpop.permute.xlu0 %1152
      %1154 = vrot.lane.b32.xlu0 %v1120, 20
      %v1155 = vpop.permute.xlu0 %1154
      %1156 = vrot.lane.b32.xlu0 %v1121, 20
      %v1157 = vpop.permute.xlu0 %1156
      %1158 = vrot.lane.b32.xlu0 %v1122, 20
      %v1159 = vpop.permute.xlu0 %1158
      %1160 = vrot.lane.b32.xlu0 %v1123, 20
      %v1161 = vpop.permute.xlu0 %1160
      %1162 = vrot.lane.b32.xlu0 %v1124, 20
      %v1163 = vpop.permute.xlu0 %1162
      %1164 = vrot.lane.b32.xlu0 %v1125, 20
      %v1165 = vpop.permute.xlu0 %1164
      %1166 = vrot.lane.b32.xlu0 %v1126, 20
      %v1167 = vpop.permute.xlu0 %1166
      %1168 = vrot.lane.b32.xlu0 %v1127, 20
      %v1169 = vpop.permute.xlu0 %1168
      %1170 = vrot.lane.b32.xlu0 %v1128, 20
      %v1171 = vpop.permute.xlu0 %1170
      %1172 = vrot.lane.b32.xlu0 %v1129, 20
      %v1173 = vpop.permute.xlu0 %1172
      %1174 = vrot.lane.b32.xlu0 %v1130, 20
      %v1175 = vpop.permute.xlu0 %1174
      %1176 = vrot.lane.b32.xlu0 %v1131, 20
      %v1177 = vpop.permute.xlu0 %1176
      %1178 = vrot.lane.b32.xlu0 %v1132, 20
      %v1179 = vpop.permute.xlu0 %1178
      %1180 = vrot.lane.b32.xlu0 %v1133, 20
      %v1181 = vpop.permute.xlu0 %1180
      %vm1198 = vcmask 195744
      %1199 = vst.msk [vmem:[#allocation4] sm:$0xff] %vm1198, %v1151
      %1200 = vst.msk [vmem:[#allocation4 + $0x8] sm:$0xff] %vm1198, %v1153
      %1201 = vst.msk [vmem:[#allocation4 + $0x10] sm:$0xff] %vm1198, %v1155
      %1202 = vst.msk [vmem:[#allocation4 + $0x18] sm:$0xff] %vm1198, %v1157
      %1203 = vst.msk [vmem:[#allocation4 + $0x20] sm:$0xff] %vm1198, %v1159
      %1204 = vst.msk [vmem:[#allocation4 + $0x28] sm:$0xff] %vm1198, %v1161
      %1205 = vst.msk [vmem:[#allocation4 + $0x30] sm:$0xff] %vm1198, %v1163
      %1206 = vst.msk [vmem:[#allocation4 + $0x38] sm:$0xff] %vm1198, %v1165
      %1207 = vst.msk [vmem:[#allocation4 + $0x40] sm:$0xff] %vm1198, %v1167
      %1208 = vst.msk [vmem:[#allocation4 + $0x48] sm:$0xff] %vm1198, %v1169
      %1209 = vst.msk [vmem:[#allocation4 + $0x50] sm:$0xff] %vm1198, %v1171
      %1210 = vst.msk [vmem:[#allocation4 + $0x58] sm:$0xff] %vm1198, %v1173
      %1211 = vst.msk [vmem:[#allocation4 + $0x60] sm:$0xff] %vm1198, %v1175
      %1212 = vst.msk [vmem:[#allocation4 + $0x68] sm:$0xff] %vm1198, %v1177
      %1213 = vst.msk [vmem:[#allocation4 + $0x70] sm:$0xff] %vm1198, %v1179
      %1214 = vst.msk [vmem:[#allocation4 + $0x78] sm:$0xff] %vm1198, %v1181
      %s1215 = scalar_lea.vmem [#allocation2], 48
      %v1216 = vld [vmem:[%s1215] sm:$0xff]
      %v1217 = vld [vmem:[%s1215 + $0x8] sm:$0xff]
      %v1218 = vld [vmem:[%s1215 + $0x18] sm:$0xff]
      %v1219 = vld [vmem:[%s1215 + $0x20] sm:$0xff]
      %v1220 = vld [vmem:[%s1215 + $0x30] sm:$0xff]
      %v1221 = vld [vmem:[%s1215 + $0x38] sm:$0xff]
      %v1222 = vld [vmem:[%s1215 + $0x48] sm:$0xff]
      %v1223 = vld [vmem:[%s1215 + $0x50] sm:$0xff]
      %v1224 = vld [vmem:[%s1215 + $0x60] sm:$0xff]
      %v1225 = vld [vmem:[%s1215 + $0x68] sm:$0xff]
      %v1226 = vld [vmem:[%s1215 + $0x78] sm:$0xff]
      %v1227 = vld [vmem:[%s1215 + $0x80] sm:$0xff]
      %v1228 = vld [vmem:[%s1215 + $0x90] sm:$0xff]
      %v1229 = vld [vmem:[%s1215 + $0x98] sm:$0xff]
      %v1230 = vld [vmem:[%s1215 + $0xa8] sm:$0xff]
      %v1231 = vld [vmem:[%s1215 + $0xb0] sm:$0xff]
      %v1232 = vld [vmem:[%s1215 + $0xc0] sm:$0xff]
      %v1233 = vld [vmem:[%s1215 + $0xc8] sm:$0xff]
      %v1234 = vld [vmem:[%s1215 + $0xd8] sm:$0xff]
      %v1235 = vld [vmem:[%s1215 + $0xe0] sm:$0xff]
      %v1236 = vld [vmem:[%s1215 + $0xf0] sm:$0xff]
      %v1237 = vld [vmem:[%s1215 + $0xf8] sm:$0xff]
      %v1238 = vld [vmem:[%s1215 + $0x108] sm:$0xff]
      %v1239 = vld [vmem:[%s1215 + $0x110] sm:$0xff]
      %v1240 = vld [vmem:[%s1215 + $0x120] sm:$0xff]
      %v1241 = vld [vmem:[%s1215 + $0x128] sm:$0xff]
      %v1242 = vld [vmem:[%s1215 + $0x138] sm:$0xff]
      %v1243 = vld [vmem:[%s1215 + $0x140] sm:$0xff]
      %v1244 = vld [vmem:[%s1215 + $0x150] sm:$0xff]
      %v1245 = vld [vmem:[%s1215 + $0x158] sm:$0xff]
      %v1246 = vld [vmem:[%s1215 + $0x168] sm:$0xff]
      %v1247 = vld [vmem:[%s1215 + $0x170] sm:$0xff]
      %v1248 = vpack.c.bf16 %v1217, %v1216
      %v1249 = vpack.c.bf16 %v1219, %v1218
      %v1250 = vpack.c.bf16 %v1221, %v1220
      %v1251 = vpack.c.bf16 %v1223, %v1222
      %v1252 = vpack.c.bf16 %v1225, %v1224
      %v1253 = vpack.c.bf16 %v1227, %v1226
      %v1254 = vpack.c.bf16 %v1229, %v1228
      %v1255 = vpack.c.bf16 %v1231, %v1230
      %v1256 = vpack.c.bf16 %v1233, %v1232
      %v1257 = vpack.c.bf16 %v1235, %v1234
      %v1258 = vpack.c.bf16 %v1237, %v1236
      %v1259 = vpack.c.bf16 %v1239, %v1238
      %v1260 = vpack.c.bf16 %v1241, %v1240
      %v1261 = vpack.c.bf16 %v1243, %v1242
      %v1262 = vpack.c.bf16 %v1245, %v1244
      %v1263 = vpack.c.bf16 %v1247, %v1246
      %1280 = vrot.lane.b32.xlu0 %v1248, 24
      %v1281 = vpop.permute.xlu0 %1280
      %1282 = vrot.lane.b32.xlu0 %v1249, 24
      %v1283 = vpop.permute.xlu0 %1282
      %1284 = vrot.lane.b32.xlu0 %v1250, 24
      %v1285 = vpop.permute.xlu0 %1284
      %1286 = vrot.lane.b32.xlu0 %v1251, 24
      %v1287 = vpop.permute.xlu0 %1286
      %1288 = vrot.lane.b32.xlu0 %v1252, 24
      %v1289 = vpop.permute.xlu0 %1288
      %1290 = vrot.lane.b32.xlu0 %v1253, 24
      %v1291 = vpop.permute.xlu0 %1290
      %1292 = vrot.lane.b32.xlu0 %v1254, 24
      %v1293 = vpop.permute.xlu0 %1292
      %1294 = vrot.lane.b32.xlu0 %v1255, 24
      %v1295 = vpop.permute.xlu0 %1294
      %1296 = vrot.lane.b32.xlu0 %v1256, 24
      %v1297 = vpop.permute.xlu0 %1296
      %1298 = vrot.lane.b32.xlu0 %v1257, 24
      %v1299 = vpop.permute.xlu0 %1298
      %1300 = vrot.lane.b32.xlu0 %v1258, 24
      %v1301 = vpop.permute.xlu0 %1300
      %1302 = vrot.lane.b32.xlu0 %v1259, 24
      %v1303 = vpop.permute.xlu0 %1302
      %1304 = vrot.lane.b32.xlu0 %v1260, 24
      %v1305 = vpop.permute.xlu0 %1304
      %1306 = vrot.lane.b32.xlu0 %v1261, 24
      %v1307 = vpop.permute.xlu0 %1306
      %1308 = vrot.lane.b32.xlu0 %v1262, 24
      %v1309 = vpop.permute.xlu0 %1308
      %1310 = vrot.lane.b32.xlu0 %v1263, 24
      %v1311 = vpop.permute.xlu0 %1310
      %vm1328 = vcmask 228544
      %1329 = vst.msk [vmem:[#allocation4] sm:$0xff] %vm1328, %v1281
      %1330 = vst.msk [vmem:[#allocation4 + $0x8] sm:$0xff] %vm1328, %v1283
      %1331 = vst.msk [vmem:[#allocation4 + $0x10] sm:$0xff] %vm1328, %v1285
      %1332 = vst.msk [vmem:[#allocation4 + $0x18] sm:$0xff] %vm1328, %v1287
      %1333 = vst.msk [vmem:[#allocation4 + $0x20] sm:$0xff] %vm1328, %v1289
      %1334 = vst.msk [vmem:[#allocation4 + $0x28] sm:$0xff] %vm1328, %v1291
      %1335 = vst.msk [vmem:[#allocation4 + $0x30] sm:$0xff] %vm1328, %v1293
      %1336 = vst.msk [vmem:[#allocation4 + $0x38] sm:$0xff] %vm1328, %v1295
      %1337 = vst.msk [vmem:[#allocation4 + $0x40] sm:$0xff] %vm1328, %v1297
      %1338 = vst.msk [vmem:[#allocation4 + $0x48] sm:$0xff] %vm1328, %v1299
      %1339 = vst.msk [vmem:[#allocation4 + $0x50] sm:$0xff] %vm1328, %v1301
      %1340 = vst.msk [vmem:[#allocation4 + $0x58] sm:$0xff] %vm1328, %v1303
      %1341 = vst.msk [vmem:[#allocation4 + $0x60] sm:$0xff] %vm1328, %v1305
      %1342 = vst.msk [vmem:[#allocation4 + $0x68] sm:$0xff] %vm1328, %v1307
      %1343 = vst.msk [vmem:[#allocation4 + $0x70] sm:$0xff] %vm1328, %v1309
      %1344 = vst.msk [vmem:[#allocation4 + $0x78] sm:$0xff] %vm1328, %v1311
      %v1345 = vld [vmem:[%s1215 + $0x1] sm:$0xff]
      %v1346 = vld [vmem:[%s1215 + $0x9] sm:$0xff]
      %v1347 = vld [vmem:[%s1215 + $0x19] sm:$0xff]
      %v1348 = vld [vmem:[%s1215 + $0x21] sm:$0xff]
      %v1349 = vld [vmem:[%s1215 + $0x31] sm:$0xff]
      %v1350 = vld [vmem:[%s1215 + $0x39] sm:$0xff]
      %v1351 = vld [vmem:[%s1215 + $0x49] sm:$0xff]
      %v1352 = vld [vmem:[%s1215 + $0x51] sm:$0xff]
      %v1353 = vld [vmem:[%s1215 + $0x61] sm:$0xff]
      %v1354 = vld [vmem:[%s1215 + $0x69] sm:$0xff]
      %v1355 = vld [vmem:[%s1215 + $0x79] sm:$0xff]
      %v1356 = vld [vmem:[%s1215 + $0x81] sm:$0xff]
      %v1357 = vld [vmem:[%s1215 + $0x91] sm:$0xff]
      %v1358 = vld [vmem:[%s1215 + $0x99] sm:$0xff]
      %v1359 = vld [vmem:[%s1215 + $0xa9] sm:$0xff]
      %v1360 = vld [vmem:[%s1215 + $0xb1] sm:$0xff]
      %v1361 = vld [vmem:[%s1215 + $0xc1] sm:$0xff]
      %v1362 = vld [vmem:[%s1215 + $0xc9] sm:$0xff]
      %v1363 = vld [vmem:[%s1215 + $0xd9] sm:$0xff]
      %v1364 = vld [vmem:[%s1215 + $0xe1] sm:$0xff]
      %v1365 = vld [vmem:[%s1215 + $0xf1] sm:$0xff]
      %v1366 = vld [vmem:[%s1215 + $0xf9] sm:$0xff]
      %v1367 = vld [vmem:[%s1215 + $0x109] sm:$0xff]
      %v1368 = vld [vmem:[%s1215 + $0x111] sm:$0xff]
      %v1369 = vld [vmem:[%s1215 + $0x121] sm:$0xff]
      %v1370 = vld [vmem:[%s1215 + $0x129] sm:$0xff]
      %v1371 = vld [vmem:[%s1215 + $0x139] sm:$0xff]
      %v1372 = vld [vmem:[%s1215 + $0x141] sm:$0xff]
      %v1373 = vld [vmem:[%s1215 + $0x151] sm:$0xff]
      %v1374 = vld [vmem:[%s1215 + $0x159] sm:$0xff]
      %v1375 = vld [vmem:[%s1215 + $0x169] sm:$0xff]
      %v1376 = vld [vmem:[%s1215 + $0x171] sm:$0xff]
      %v1377 = vpack.c.bf16 %v1346, %v1345
      %v1378 = vpack.c.bf16 %v1348, %v1347
      %v1379 = vpack.c.bf16 %v1350, %v1349
      %v1380 = vpack.c.bf16 %v1352, %v1351
      %v1381 = vpack.c.bf16 %v1354, %v1353
      %v1382 = vpack.c.bf16 %v1356, %v1355
      %v1383 = vpack.c.bf16 %v1358, %v1357
      %v1384 = vpack.c.bf16 %v1360, %v1359
      %v1385 = vpack.c.bf16 %v1362, %v1361
      %v1386 = vpack.c.bf16 %v1364, %v1363
      %v1387 = vpack.c.bf16 %v1366, %v1365
      %v1388 = vpack.c.bf16 %v1368, %v1367
      %v1389 = vpack.c.bf16 %v1370, %v1369
      %v1390 = vpack.c.bf16 %v1372, %v1371
      %v1391 = vpack.c.bf16 %v1374, %v1373
      %v1392 = vpack.c.bf16 %v1376, %v1375
      %1409 = vrot.lane.b32.xlu0 %v1377, 28
      %v1410 = vpop.permute.xlu0 %1409
      %1411 = vrot.lane.b32.xlu0 %v1378, 28
      %v1412 = vpop.permute.xlu0 %1411
      %1413 = vrot.lane.b32.xlu0 %v1379, 28
      %v1414 = vpop.permute.xlu0 %1413
      %1415 = vrot.lane.b32.xlu0 %v1380, 28
      %v1416 = vpop.permute.xlu0 %1415
      %1417 = vrot.lane.b32.xlu0 %v1381, 28
      %v1418 = vpop.permute.xlu0 %1417
      %1419 = vrot.lane.b32.xlu0 %v1382, 28
      %v1420 = vpop.permute.xlu0 %1419
      %1421 = vrot.lane.b32.xlu0 %v1383, 28
      %v1422 = vpop.permute.xlu0 %1421
      %1423 = vrot.lane.b32.xlu0 %v1384, 28
      %v1424 = vpop.permute.xlu0 %1423
      %1425 = vrot.lane.b32.xlu0 %v1385, 28
      %v1426 = vpop.permute.xlu0 %1425
      %1427 = vrot.lane.b32.xlu0 %v1386, 28
      %v1428 = vpop.permute.xlu0 %1427
      %1429 = vrot.lane.b32.xlu0 %v1387, 28
      %v1430 = vpop.permute.xlu0 %1429
      %1431 = vrot.lane.b32.xlu0 %v1388, 28
      %v1432 = vpop.permute.xlu0 %1431
      %1433 = vrot.lane.b32.xlu0 %v1389, 28
      %v1434 = vpop.permute.xlu0 %1433
      %1435 = vrot.lane.b32.xlu0 %v1390, 28
      %v1436 = vpop.permute.xlu0 %1435
      %1437 = vrot.lane.b32.xlu0 %v1391, 28
      %v1438 = vpop.permute.xlu0 %1437
      %1439 = vrot.lane.b32.xlu0 %v1392, 28
      %v1440 = vpop.permute.xlu0 %1439
      %vm1457 = vcmask 261344
      %1458 = vst.msk [vmem:[#allocation4] sm:$0xff] %vm1457, %v1410
      %1459 = vst.msk [vmem:[#allocation4 + $0x8] sm:$0xff] %vm1457, %v1412
      %1460 = vst.msk [vmem:[#allocation4 + $0x10] sm:$0xff] %vm1457, %v1414
      %1461 = vst.msk [vmem:[#allocation4 + $0x18] sm:$0xff] %vm1457, %v1416
      %1462 = vst.msk [vmem:[#allocation4 + $0x20] sm:$0xff] %vm1457, %v1418
      %1463 = vst.msk [vmem:[#allocation4 + $0x28] sm:$0xff] %vm1457, %v1420
      %1464 = vst.msk [vmem:[#allocation4 + $0x30] sm:$0xff] %vm1457, %v1422
      %1465 = vst.msk [vmem:[#allocation4 + $0x38] sm:$0xff] %vm1457, %v1424
      %1466 = vst.msk [vmem:[#allocation4 + $0x40] sm:$0xff] %vm1457, %v1426
      %1467 = vst.msk [vmem:[#allocation4 + $0x48] sm:$0xff] %vm1457, %v1428
      %1468 = vst.msk [vmem:[#allocation4 + $0x50] sm:$0xff] %vm1457, %v1430
      %1469 = vst.msk [vmem:[#allocation4 + $0x58] sm:$0xff] %vm1457, %v1432
      %1470 = vst.msk [vmem:[#allocation4 + $0x60] sm:$0xff] %vm1457, %v1434
      %1471 = vst.msk [vmem:[#allocation4 + $0x68] sm:$0xff] %vm1457, %v1436
      %1472 = vst.msk [vmem:[#allocation4 + $0x70] sm:$0xff] %vm1457, %v1438
      %1473 = vst.msk [vmem:[#allocation4 + $0x78] sm:$0xff] %vm1457, %v1440
      %v1474 = vld [vmem:[%s1215 + $0x2] sm:$0xff]
      %v1475 = vld [vmem:[%s1215 + $0xa] sm:$0xff]
      %v1476 = vld [vmem:[%s1215 + $0x1a] sm:$0xff]
      %v1477 = vld [vmem:[%s1215 + $0x22] sm:$0xff]
      %v1478 = vld [vmem:[%s1215 + $0x32] sm:$0xff]
      %v1479 = vld [vmem:[%s1215 + $0x3a] sm:$0xff]
      %v1480 = vld [vmem:[%s1215 + $0x4a] sm:$0xff]
      %v1481 = vld [vmem:[%s1215 + $0x52] sm:$0xff]
      %v1482 = vld [vmem:[%s1215 + $0x62] sm:$0xff]
      %v1483 = vld [vmem:[%s1215 + $0x6a] sm:$0xff]
      %v1484 = vld [vmem:[%s1215 + $0x7a] sm:$0xff]
      %v1485 = vld [vmem:[%s1215 + $0x82] sm:$0xff]
      %v1486 = vld [vmem:[%s1215 + $0x92] sm:$0xff]
      %v1487 = vld [vmem:[%s1215 + $0x9a] sm:$0xff]
      %v1488 = vld [vmem:[%s1215 + $0xaa] sm:$0xff]
      %v1489 = vld [vmem:[%s1215 + $0xb2] sm:$0xff]
      %v1490 = vld [vmem:[%s1215 + $0xc2] sm:$0xff]
      %v1491 = vld [vmem:[%s1215 + $0xca] sm:$0xff]
      %v1492 = vld [vmem:[%s1215 + $0xda] sm:$0xff]
      %v1493 = vld [vmem:[%s1215 + $0xe2] sm:$0xff]
      %v1494 = vld [vmem:[%s1215 + $0xf2] sm:$0xff]
      %v1495 = vld [vmem:[%s1215 + $0xfa] sm:$0xff]
      %v1496 = vld [vmem:[%s1215 + $0x10a] sm:$0xff]
      %v1497 = vld [vmem:[%s1215 + $0x112] sm:$0xff]
      %v1498 = vld [vmem:[%s1215 + $0x122] sm:$0xff]
      %v1499 = vld [vmem:[%s1215 + $0x12a] sm:$0xff]
      %v1500 = vld [vmem:[%s1215 + $0x13a] sm:$0xff]
      %v1501 = vld [vmem:[%s1215 + $0x142] sm:$0xff]
      %v1502 = vld [vmem:[%s1215 + $0x152] sm:$0xff]
      %v1503 = vld [vmem:[%s1215 + $0x15a] sm:$0xff]
      %v1504 = vld [vmem:[%s1215 + $0x16a] sm:$0xff]
      %v1505 = vld [vmem:[%s1215 + $0x172] sm:$0xff]
      %v1506 = vpack.c.bf16 %v1475, %v1474
      %v1507 = vpack.c.bf16 %v1477, %v1476
      %v1508 = vpack.c.bf16 %v1479, %v1478
      %v1509 = vpack.c.bf16 %v1481, %v1480
      %v1510 = vpack.c.bf16 %v1483, %v1482
      %v1511 = vpack.c.bf16 %v1485, %v1484
      %v1512 = vpack.c.bf16 %v1487, %v1486
      %v1513 = vpack.c.bf16 %v1489, %v1488
      %v1514 = vpack.c.bf16 %v1491, %v1490
      %v1515 = vpack.c.bf16 %v1493, %v1492
      %v1516 = vpack.c.bf16 %v1495, %v1494
      %v1517 = vpack.c.bf16 %v1497, %v1496
      %v1518 = vpack.c.bf16 %v1499, %v1498
      %v1519 = vpack.c.bf16 %v1501, %v1500
      %v1520 = vpack.c.bf16 %v1503, %v1502
      %v1521 = vpack.c.bf16 %v1505, %v1504
      %1538 = vrot.lane.b32.xlu0 %v1506, 32
      %v1539 = vpop.permute.xlu0 %1538
      %1540 = vrot.lane.b32.xlu0 %v1507, 32
      %v1541 = vpop.permute.xlu0 %1540
      %1542 = vrot.lane.b32.xlu0 %v1508, 32
      %v1543 = vpop.permute.xlu0 %1542
      %1544 = vrot.lane.b32.xlu0 %v1509, 32
      %v1545 = vpop.permute.xlu0 %1544
      %1546 = vrot.lane.b32.xlu0 %v1510, 32
      %v1547 = vpop.permute.xlu0 %1546
      %1548 = vrot.lane.b32.xlu0 %v1511, 32
      %v1549 = vpop.permute.xlu0 %1548
      %1550 = vrot.lane.b32.xlu0 %v1512, 32
      %v1551 = vpop.permute.xlu0 %1550
      %1552 = vrot.lane.b32.xlu0 %v1513, 32
      %v1553 = vpop.permute.xlu0 %1552
      %1554 = vrot.lane.b32.xlu0 %v1514, 32
      %v1555 = vpop.permute.xlu0 %1554
      %1556 = vrot.lane.b32.xlu0 %v1515, 32
      %v1557 = vpop.permute.xlu0 %1556
      %1558 = vrot.lane.b32.xlu0 %v1516, 32
      %v1559 = vpop.permute.xlu0 %1558
      %1560 = vrot.lane.b32.xlu0 %v1517, 32
      %v1561 = vpop.permute.xlu0 %1560
      %1562 = vrot.lane.b32.xlu0 %v1518, 32
      %v1563 = vpop.permute.xlu0 %1562
      %1564 = vrot.lane.b32.xlu0 %v1519, 32
      %v1565 = vpop.permute.xlu0 %1564
      %1566 = vrot.lane.b32.xlu0 %v1520, 32
      %v1567 = vpop.permute.xlu0 %1566
      %1568 = vrot.lane.b32.xlu0 %v1521, 32
      %v1569 = vpop.permute.xlu0 %1568
      %vm1586 = vcmask 294144
      %1587 = vst.msk [vmem:[#allocation4] sm:$0xff] %vm1586, %v1539
      %1588 = vst.msk [vmem:[#allocation4 + $0x8] sm:$0xff] %vm1586, %v1541
      %1589 = vst.msk [vmem:[#allocation4 + $0x10] sm:$0xff] %vm1586, %v1543
      %1590 = vst.msk [vmem:[#allocation4 + $0x18] sm:$0xff] %vm1586, %v1545
      %1591 = vst.msk [vmem:[#allocation4 + $0x20] sm:$0xff] %vm1586, %v1547
      %1592 = vst.msk [vmem:[#allocation4 + $0x28] sm:$0xff] %vm1586, %v1549
      %1593 = vst.msk [vmem:[#allocation4 + $0x30] sm:$0xff] %vm1586, %v1551
      %1594 = vst.msk [vmem:[#allocation4 + $0x38] sm:$0xff] %vm1586, %v1553
      %1595 = vst.msk [vmem:[#allocation4 + $0x40] sm:$0xff] %vm1586, %v1555
      %1596 = vst.msk [vmem:[#allocation4 + $0x48] sm:$0xff] %vm1586, %v1557
      %1597 = vst.msk [vmem:[#allocation4 + $0x50] sm:$0xff] %vm1586, %v1559
      %1598 = vst.msk [vmem:[#allocation4 + $0x58] sm:$0xff] %vm1586, %v1561
      %1599 = vst.msk [vmem:[#allocation4 + $0x60] sm:$0xff] %vm1586, %v1563
      %1600 = vst.msk [vmem:[#allocation4 + $0x68] sm:$0xff] %vm1586, %v1565
      %1601 = vst.msk [vmem:[#allocation4 + $0x70] sm:$0xff] %vm1586, %v1567
      %1602 = vst.msk [vmem:[#allocation4 + $0x78] sm:$0xff] %vm1586, %v1569
      %v1603 = vld [vmem:[#allocation4] sm:$0xff]
      %v1604 = vld [vmem:[#allocation4 + $0x8] sm:$0xff]
      %v1605 = vld [vmem:[#allocation4 + $0x10] sm:$0xff]
      %v1606 = vld [vmem:[#allocation4 + $0x18] sm:$0xff]
      %v1607 = vld [vmem:[#allocation4 + $0x20] sm:$0xff]
      %v1608 = vld [vmem:[#allocation4 + $0x28] sm:$0xff]
      %v1609 = vld [vmem:[#allocation4 + $0x30] sm:$0xff]
      %v1610 = vld [vmem:[#allocation4 + $0x38] sm:$0xff]
      %v1611 = vld [vmem:[#allocation4 + $0x40] sm:$0xff]
      %v1612 = vld [vmem:[#allocation4 + $0x48] sm:$0xff]
      %v1613 = vld [vmem:[#allocation4 + $0x50] sm:$0xff]
      %v1614 = vld [vmem:[#allocation4 + $0x58] sm:$0xff]
      %v1615 = vld [vmem:[#allocation4 + $0x60] sm:$0xff]
      %v1616 = vld [vmem:[#allocation4 + $0x68] sm:$0xff]
      %v1617 = vld [vmem:[#allocation4 + $0x70] sm:$0xff]
      %v1618 = vld [vmem:[#allocation4 + $0x78] sm:$0xff]
      %v1619 = vld [vmem:[%s1] sm:$0xf]
      %v1620 = vld [vmem:[%s1 + $0x4] sm:$0xf]
      %v1621 = vld [vmem:[%s1 + $0x8] sm:$0xf]
      %v1622 = vld [vmem:[%s1 + $0xc] sm:$0xf]
      %v1623 = vld [vmem:[%s1 + $0x10] sm:$0x3]
      %v1629 = vunpack.c.l.b16 %v1619
      %v1630 = vunpack.c.l.b16 %v1620
      %v1631 = vunpack.c.l.b16 %v1621
      %v1632 = vunpack.c.l.b16 %v1622
      %v1633 = vunpack.c.l.b16 %v1623
      %v1634 = vpack.c.b16 %v1630, %v1629
      %v1635 = vpack.c.b16 %v1632, %v1631
      %v1636 = vpack.c.b16 %v1633, %v1633
      %vm1639 = vcmask 293888
      %v1641 = vsel %vm1639, %v1603, 0
      %v1644 = vsel %vm1639, %v1604, 0
      %v1647 = vsel %vm1639, %v1605, 0
      %v1650 = vsel %vm1639, %v1606, 0
      %v1653 = vsel %vm1639, %v1607, 0
      %v1656 = vsel %vm1639, %v1608, 0
      %v1659 = vsel %vm1639, %v1609, 0
      %v1662 = vsel %vm1639, %v1610, 0
      %v1665 = vsel %vm1639, %v1611, 0
      %v1668 = vsel %vm1639, %v1612, 0
      %v1671 = vsel %vm1639, %v1613, 0
      %v1674 = vsel %vm1639, %v1614, 0
      %v1677 = vsel %vm1639, %v1615, 0
      %v1680 = vsel %vm1639, %v1616, 0
      %v1683 = vsel %vm1639, %v1617, 0
      %v1686 = vsel %vm1639, %v1618, 0
      %vm1688 = vcmask 1041408
      %v1690 = vsel %vm1688, %v1636, 0
      %1692 = vmatprep.subr.bf16.mxu0 0
      %1693 = vmatpush1.bf16.msra.mxu0 %v1634
      %1694 = vmatprep.subr.bf16.mxu0 0
      %1695 = vmatpush1.bf16.msra.mxu0 %v1635
      %1696 = vmatprep.subr.bf16.mxu0 0
      %1697 = vmatpush1.bf16.msra.mxu0 %v1690
      %1698 = vmatprep.subr.bf16.mxu0 0
      %1699 = vmatpush1.bf16.msra.mxu0 0
      %1700 = vmatprep.subr.bf16.mxu0 0
      %1701 = vmatpush1.bf16.msra.mxu0 0
      %1702 = vmatprep.subr.bf16.mxu0 0
      %1703 = vmatpush1.bf16.msra.mxu0 0
      %1704 = vmatprep.subr.bf16.mxu0 0
      %1705 = vmatpush1.bf16.msra.mxu0 0
      %1706 = vmatprep.subr.bf16.mxu0 0
      %1707 = vmatpush1.bf16.msra.mxu0 0
      %1708 = vmatprep.subr.bf16.mxu0 0
      %1709 = vmatpush1.bf16.msra.mxu0 0
      %1710 = vmatprep.subr.bf16.mxu0 0
      %1711 = vmatpush1.bf16.msra.mxu0 0
      %1712 = vmatprep.subr.bf16.mxu0 0
      %1713 = vmatpush1.bf16.msra.mxu0 0
      %1714 = vmatprep.subr.bf16.mxu0 0
      %1715 = vmatpush1.bf16.msra.mxu0 0
      %1716 = vmatprep.subr.bf16.mxu0 0
      %1717 = vmatpush1.bf16.msra.mxu0 0
      %1718 = vmatprep.subr.bf16.mxu0 0
      %1719 = vmatpush1.bf16.msra.mxu0 0
      %1720 = vmatprep.subr.bf16.mxu0 0
      %1721 = vmatpush1.bf16.msra.mxu0 0
      %1722 = vmatprep.subr.bf16.mxu0 0
      %1723 = vmatpush1.bf16.msra.mxu0 0
      %1724 = vmatprep.mubr.bf16.mxu0 0
      %1725 = vmatmul.mubr.bf16.gmra.mrb[0].mxu0 %v1641
      %v1726 = vpop.f32.mrb[0].mxu0
      %v1727 = vadd.f32 0.0, %v1726
      %v1728 = vpop.f32.mrb[0].mxu0
      %v1729 = vpop.f32.mrb[0].mxu0
      %v1730 = vadd.f32 0.0, %v1729
      %v1731 = vpop.f32.mrb[0].mxu0
      %1732 = vmatprep.mubr.bf16.mxu0 0
      %1733 = vmatmul.mubr.bf16.gmra.mrb[0].mxu0 %v1644
      %v1734 = vpop.f32.mrb[0].mxu0
      %v1735 = vadd.f32 0.0, %v1734
      %v1736 = vpop.f32.mrb[0].mxu0
      %v1737 = vpop.f32.mrb[0].mxu0
      %v1738 = vadd.f32 0.0, %v1737
      %v1739 = vpop.f32.mrb[0].mxu0
      %1740 = vmatprep.mubr.bf16.mxu0 0
      %1741 = vmatmul.mubr.bf16.gmra.mrb[0].mxu0 %v1647
      %v1742 = vpop.f32.mrb[0].mxu0
      %v1743 = vadd.f32 0.0, %v1742
      %v1744 = vpop.f32.mrb[0].mxu0
      %v1745 = vpop.f32.mrb[0].mxu0
      %v1746 = vadd.f32 0.0, %v1745
      %v1747 = vpop.f32.mrb[0].mxu0
      %1748 = vmatprep.mubr.bf16.mxu0 0
      %1749 = vmatmul.mubr.bf16.gmra.mrb[0].mxu0 %v1650
      %v1750 = vpop.f32.mrb[0].mxu0
      %v1751 = vadd.f32 0.0, %v1750
      %v1752 = vpop.f32.mrb[0].mxu0
      %v1753 = vpop.f32.mrb[0].mxu0
      %v1754 = vadd.f32 0.0, %v1753
      %v1755 = vpop.f32.mrb[0].mxu0
      %1756 = vmatprep.mubr.bf16.mxu0 0
      %1757 = vmatmul.mubr.bf16.gmra.mrb[0].mxu0 %v1653
      %v1758 = vpop.f32.mrb[0].mxu0
      %v1759 = vadd.f32 0.0, %v1758
      %v1760 = vpop.f32.mrb[0].mxu0
      %v1761 = vpop.f32.mrb[0].mxu0
      %v1762 = vadd.f32 0.0, %v1761
      %v1763 = vpop.f32.mrb[0].mxu0
      %1764 = vmatprep.mubr.bf16.mxu0 0
      %1765 = vmatmul.mubr.bf16.gmra.mrb[0].mxu0 %v1656
      %v1766 = vpop.f32.mrb[0].mxu0
      %v1767 = vadd.f32 0.0, %v1766
      %v1768 = vpop.f32.mrb[0].mxu0
      %v1769 = vpop.f32.mrb[0].mxu0
      %v1770 = vadd.f32 0.0, %v1769
      %v1771 = vpop.f32.mrb[0].mxu0
      %1772 = vmatprep.mubr.bf16.mxu0 0
      %1773 = vmatmul.mubr.bf16.gmra.mrb[0].mxu0 %v1659
      %v1774 = vpop.f32.mrb[0].mxu0
      %v1775 = vadd.f32 0.0, %v1774
      %v1776 = vpop.f32.mrb[0].mxu0
      %v1777 = vpop.f32.mrb[0].mxu0
      %v1778 = vadd.f32 0.0, %v1777
      %v1779 = vpop.f32.mrb[0].mxu0
      %1780 = vmatprep.mubr.bf16.mxu0 0
      %1781 = vmatmul.mubr.bf16.gmra.mrb[0].mxu0 %v1662
      %v1782 = vpop.f32.mrb[0].mxu0
      %v1783 = vadd.f32 0.0, %v1782
      %v1784 = vpop.f32.mrb[0].mxu0
      %v1785 = vpop.f32.mrb[0].mxu0
      %v1786 = vadd.f32 0.0, %v1785
      %v1787 = vpop.f32.mrb[0].mxu0
      %1788 = vmatprep.mubr.bf16.mxu0 0
      %1789 = vmatmul.mubr.bf16.gmra.mrb[0].mxu0 %v1665
      %v1790 = vpop.f32.mrb[0].mxu0
      %v1791 = vadd.f32 0.0, %v1790
      %v1792 = vpop.f32.mrb[0].mxu0
      %v1793 = vpop.f32.mrb[0].mxu0
      %v1794 = vadd.f32 0.0, %v1793
      %v1795 = vpop.f32.mrb[0].mxu0
      %1796 = vmatprep.mubr.bf16.mxu0 0
      %1797 = vmatmul.mubr.bf16.gmra.mrb[0].mxu0 %v1668
      %v1798 = vpop.f32.mrb[0].mxu0
      %v1799 = vadd.f32 0.0, %v1798
      %v1800 = vpop.f32.mrb[0].mxu0
      %v1801 = vpop.f32.mrb[0].mxu0
      %v1802 = vadd.f32 0.0, %v1801
      %v1803 = vpop.f32.mrb[0].mxu0
      %1804 = vmatprep.mubr.bf16.mxu0 0
      %1805 = vmatmul.mubr.bf16.gmra.mrb[0].mxu0 %v1671
      %v1806 = vpop.f32.mrb[0].mxu0
      %v1807 = vadd.f32 0.0, %v1806
      %v1808 = vpop.f32.mrb[0].mxu0
      %v1809 = vpop.f32.mrb[0].mxu0
      %v1810 = vadd.f32 0.0, %v1809
      %v1811 = vpop.f32.mrb[0].mxu0
      %1812 = vmatprep.mubr.bf16.mxu0 0
      %1813 = vmatmul.mubr.bf16.gmra.mrb[0].mxu0 %v1674
      %v1814 = vpop.f32.mrb[0].mxu0
      %v1815 = vadd.f32 0.0, %v1814
      %v1816 = vpop.f32.mrb[0].mxu0
      %v1817 = vpop.f32.mrb[0].mxu0
      %v1818 = vadd.f32 0.0, %v1817
      %v1819 = vpop.f32.mrb[0].mxu0
      %1820 = vmatprep.mubr.bf16.mxu0 0
      %1821 = vmatmul.mubr.bf16.gmra.mrb[0].mxu0 %v1677
      %v1822 = vpop.f32.mrb[0].mxu0
      %v1823 = vadd.f32 0.0, %v1822
      %v1824 = vpop.f32.mrb[0].mxu0
      %v1825 = vpop.f32.mrb[0].mxu0
      %v1826 = vadd.f32 0.0, %v1825
      %v1827 = vpop.f32.mrb[0].mxu0
      %1828 = vmatprep.mubr.bf16.mxu0 0
      %1829 = vmatmul.mubr.bf16.gmra.mrb[0].mxu0 %v1680
      %v1830 = vpop.f32.mrb[0].mxu0
      %v1831 = vadd.f32 0.0, %v1830
      %v1832 = vpop.f32.mrb[0].mxu0
      %v1833 = vpop.f32.mrb[0].mxu0
      %v1834 = vadd.f32 0.0, %v1833
      %v1835 = vpop.f32.mrb[0].mxu0
      %1836 = vmatprep.mubr.bf16.mxu0 0
      %1837 = vmatmul.mubr.bf16.gmra.mrb[0].mxu0 %v1683
      %v1838 = vpop.f32.mrb[0].mxu0
      %v1839 = vadd.f32 0.0, %v1838
      %v1840 = vpop.f32.mrb[0].mxu0
      %v1841 = vpop.f32.mrb[0].mxu0
      %v1842 = vadd.f32 0.0, %v1841
      %v1843 = vpop.f32.mrb[0].mxu0
      %1844 = vmatprep.mubr.bf16.mxu0 0
      %1845 = vmatmul.mubr.bf16.gmra.mrb[0].mxu0 %v1686
      %v1846 = vpop.f32.mrb[0].mxu0
      %v1847 = vadd.f32 0.0, %v1846
      %v1848 = vpop.f32.mrb[0].mxu0
      %v1849 = vpop.f32.mrb[0].mxu0
      %v1850 = vadd.f32 0.0, %v1849
      %v1851 = vpop.f32.mrb[0].mxu0
      %1852 = vdwg.mxu0
      %v1854 = vlaneseq
      %v1855 = vshrl.u32 %v1854, 7
      %v1856 = vsub.s32 0, %v1855
      %v1857 = vrot.slane %v504, %v1856
      %v1859 = vmul.f32 %v1727, %v1857
      %v1860 = vmul.f32 %v1730, %v1857
      %v1861 = vmul.f32 %v1735, %v1857
      %v1862 = vmul.f32 %v1738, %v1857
      %v1863 = vmul.f32 %v1743, %v1857
      %v1864 = vmul.f32 %v1746, %v1857
      %v1865 = vmul.f32 %v1751, %v1857
      %v1866 = vmul.f32 %v1754, %v1857
      %v1867 = vmul.f32 %v1759, %v1857
      %v1868 = vmul.f32 %v1762, %v1857
      %v1869 = vmul.f32 %v1767, %v1857
      %v1870 = vmul.f32 %v1770, %v1857
      %v1871 = vmul.f32 %v1775, %v1857
      %v1872 = vmul.f32 %v1778, %v1857
      %v1873 = vmul.f32 %v1783, %v1857
      %v1874 = vmul.f32 %v1786, %v1857
      %v1875 = vmul.f32 %v1791, %v1857
      %v1876 = vmul.f32 %v1794, %v1857
      %v1877 = vmul.f32 %v1799, %v1857
      %v1878 = vmul.f32 %v1802, %v1857
      %v1879 = vmul.f32 %v1807, %v1857
      %v1880 = vmul.f32 %v1810, %v1857
      %v1881 = vmul.f32 %v1815, %v1857
      %v1882 = vmul.f32 %v1818, %v1857
      %v1883 = vmul.f32 %v1823, %v1857
      %v1884 = vmul.f32 %v1826, %v1857
      %v1885 = vmul.f32 %v1831, %v1857
      %v1886 = vmul.f32 %v1834, %v1857
      %v1887 = vmul.f32 %v1839, %v1857
      %v1888 = vmul.f32 %v1842, %v1857
      %v1889 = vmul.f32 %v1847, %v1857
      %v1890 = vmul.f32 %v1850, %v1857
      %v1892 = vlaneseq
      %v1893 = vshrl.u32 %v1892, 7
      %v1894 = vsub.s32 0, %v1893
      %v1895 = vrot.slane %v505, %v1894
      %v1897 = vadd.f32 %v1859, %v1895
      %v1898 = vadd.f32 %v1860, %v1895
      %v1899 = vadd.f32 %v1861, %v1895
      %v1900 = vadd.f32 %v1862, %v1895
      %v1901 = vadd.f32 %v1863, %v1895
      %v1902 = vadd.f32 %v1864, %v1895
      %v1903 = vadd.f32 %v1865, %v1895
      %v1904 = vadd.f32 %v1866, %v1895
      %v1905 = vadd.f32 %v1867, %v1895
      %v1906 = vadd.f32 %v1868, %v1895
      %v1907 = vadd.f32 %v1869, %v1895
      %v1908 = vadd.f32 %v1870, %v1895
      %v1909 = vadd.f32 %v1871, %v1895
      %v1910 = vadd.f32 %v1872, %v1895
      %v1911 = vadd.f32 %v1873, %v1895
      %v1912 = vadd.f32 %v1874, %v1895
      %v1913 = vadd.f32 %v1875, %v1895
      %v1914 = vadd.f32 %v1876, %v1895
      %v1915 = vadd.f32 %v1877, %v1895
      %v1916 = vadd.f32 %v1878, %v1895
      %v1917 = vadd.f32 %v1879, %v1895
      %v1918 = vadd.f32 %v1880, %v1895
      %v1919 = vadd.f32 %v1881, %v1895
      %v1920 = vadd.f32 %v1882, %v1895
      %v1921 = vadd.f32 %v1883, %v1895
      %v1922 = vadd.f32 %v1884, %v1895
      %v1923 = vadd.f32 %v1885, %v1895
      %v1924 = vadd.f32 %v1886, %v1895
      %v1925 = vadd.f32 %v1887, %v1895
      %v1926 = vadd.f32 %v1888, %v1895
      %v1927 = vadd.f32 %v1889, %v1895
      %v1928 = vadd.f32 %v1890, %v1895
      %v1929 = vmax.f32 %v1897, 0.0
      %v1930 = vmax.f32 %v1898, 0.0
      %v1931 = vmax.f32 %v1899, 0.0
      %v1932 = vmax.f32 %v1900, 0.0
      %v1933 = vmax.f32 %v1901, 0.0
      %v1934 = vmax.f32 %v1902, 0.0
      %v1935 = vmax.f32 %v1903, 0.0
      %v1936 = vmax.f32 %v1904, 0.0
      %v1937 = vmax.f32 %v1905, 0.0
      %v1938 = vmax.f32 %v1906, 0.0
      %v1939 = vmax.f32 %v1907, 0.0
      %v1940 = vmax.f32 %v1908, 0.0
      %v1941 = vmax.f32 %v1909, 0.0
      %v1942 = vmax.f32 %v1910, 0.0
      %v1943 = vmax.f32 %v1911, 0.0
      %v1944 = vmax.f32 %v1912, 0.0
      %v1945 = vmax.f32 %v1913, 0.0
      %v1946 = vmax.f32 %v1914, 0.0
      %v1947 = vmax.f32 %v1915, 0.0
      %v1948 = vmax.f32 %v1916, 0.0
      %v1949 = vmax.f32 %v1917, 0.0
      %v1950 = vmax.f32 %v1918, 0.0
      %v1951 = vmax.f32 %v1919, 0.0
      %v1952 = vmax.f32 %v1920, 0.0
      %v1953 = vmax.f32 %v1921, 0.0
      %v1954 = vmax.f32 %v1922, 0.0
      %v1955 = vmax.f32 %v1923, 0.0
      %v1956 = vmax.f32 %v1924, 0.0
      %v1957 = vmax.f32 %v1925, 0.0
      %v1958 = vmax.f32 %v1926, 0.0
      %v1959 = vmax.f32 %v1927, 0.0
      %v1960 = vmax.f32 %v1928, 0.0
      %v1961 = vld [vmem:[%s471 + $0x1] sm:$0xff]
      %v1962 = vld [vmem:[%s471 + $0x9] sm:$0xff]
      %v1963 = vld [vmem:[%s471 + $0x19] sm:$0xff]
      %v1964 = vld [vmem:[%s471 + $0x21] sm:$0xff]
      %v1965 = vld [vmem:[%s471 + $0x31] sm:$0xff]
      %v1966 = vld [vmem:[%s471 + $0x39] sm:$0xff]
      %v1967 = vld [vmem:[%s471 + $0x49] sm:$0xff]
      %v1968 = vld [vmem:[%s471 + $0x51] sm:$0xff]
      %v1969 = vld [vmem:[%s471 + $0x61] sm:$0xff]
      %v1970 = vld [vmem:[%s471 + $0x69] sm:$0xff]
      %v1971 = vld [vmem:[%s471 + $0x79] sm:$0xff]
      %v1972 = vld [vmem:[%s471 + $0x81] sm:$0xff]
      %v1973 = vld [vmem:[%s471 + $0x91] sm:$0xff]
      %v1974 = vld [vmem:[%s471 + $0x99] sm:$0xff]
      %v1975 = vld [vmem:[%s471 + $0xa9] sm:$0xff]
      %v1976 = vld [vmem:[%s471 + $0xb1] sm:$0xff]
      %v1977 = vld [vmem:[%s471 + $0xc1] sm:$0xff]
      %v1978 = vld [vmem:[%s471 + $0xc9] sm:$0xff]
      %v1979 = vld [vmem:[%s471 + $0xd9] sm:$0xff]
      %v1980 = vld [vmem:[%s471 + $0xe1] sm:$0xff]
      %v1981 = vld [vmem:[%s471 + $0xf1] sm:$0xff]
      %v1982 = vld [vmem:[%s471 + $0xf9] sm:$0xff]
      %v1983 = vld [vmem:[%s471 + $0x109] sm:$0xff]
      %v1984 = vld [vmem:[%s471 + $0x111] sm:$0xff]
      %v1985 = vld [vmem:[%s471 + $0x121] sm:$0xff]
      %v1986 = vld [vmem:[%s471 + $0x129] sm:$0xff]
      %v1987 = vld [vmem:[%s471 + $0x139] sm:$0xff]
      %v1988 = vld [vmem:[%s471 + $0x141] sm:$0xff]
      %v1989 = vld [vmem:[%s471 + $0x151] sm:$0xff]
      %v1990 = vld [vmem:[%s471 + $0x159] sm:$0xff]
      %v1991 = vld [vmem:[%s471 + $0x169] sm:$0xff]
      %v1992 = vld [vmem:[%s471 + $0x171] sm:$0xff]
      %v1993 = vpack.c.bf16 %v1962, %v1961
      %v1994 = vpack.c.bf16 %v1964, %v1963
      %v1995 = vpack.c.bf16 %v1966, %v1965
      %v1996 = vpack.c.bf16 %v1968, %v1967
      %v1997 = vpack.c.bf16 %v1970, %v1969
      %v1998 = vpack.c.bf16 %v1972, %v1971
      %v1999 = vpack.c.bf16 %v1974, %v1973
      %v2000 = vpack.c.bf16 %v1976, %v1975
      %v2001 = vpack.c.bf16 %v1978, %v1977
      %v2002 = vpack.c.bf16 %v1980, %v1979
      %v2003 = vpack.c.bf16 %v1982, %v1981
      %v2004 = vpack.c.bf16 %v1984, %v1983
      %v2005 = vpack.c.bf16 %v1986, %v1985
      %v2006 = vpack.c.bf16 %v1988, %v1987
      %v2007 = vpack.c.bf16 %v1990, %v1989
      %v2008 = vpack.c.bf16 %v1992, %v1991
      %v2009 = vld [vmem:[%s7] sm:$0x3]
      %v2011 = vsel %vm361, %v1993, 0
      %v2014 = vsel %vm361, %v1994, 0
      %v2017 = vsel %vm361, %v1995, 0
      %v2020 = vsel %vm361, %v1996, 0
      %v2023 = vsel %vm361, %v1997, 0
      %v2026 = vsel %vm361, %v1998, 0
      %v2029 = vsel %vm361, %v1999, 0
      %v2032 = vsel %vm361, %v2000, 0
      %v2035 = vsel %vm361, %v2001, 0
      %v2038 = vsel %vm361, %v2002, 0
      %v2041 = vsel %vm361, %v2003, 0
      %v2044 = vsel %vm361, %v2004, 0
      %v2047 = vsel %vm361, %v2005, 0
      %v2050 = vsel %vm361, %v2006, 0
      %v2053 = vsel %vm361, %v2007, 0
      %v2056 = vsel %vm361, %v2008, 0
      %v2059 = vsel %vm1688, %v2009, 0
      %2061 = vmatprep.subr.bf16.mxu0 0
      %2062 = vmatpush1.bf16.msra.mxu0 %v2059
      %2063 = vmatprep.subr.bf16.mxu0 0
      %2064 = vmatpush1.bf16.msra.mxu0 0
      %2065 = vmatprep.subr.bf16.mxu0 0
      %2066 = vmatpush1.bf16.msra.mxu0 0
      %2067 = vmatprep.subr.bf16.mxu0 0
      %2068 = vmatpush1.bf16.msra.mxu0 0
      %2069 = vmatprep.subr.bf16.mxu0 0
      %2070 = vmatpush1.bf16.msra.mxu0 0
      %2071 = vmatprep.subr.bf16.mxu0 0
      %2072 = vmatpush1.bf16.msra.mxu0 0
      %2073 = vmatprep.subr.bf16.mxu0 0
      %2074 = vmatpush1.bf16.msra.mxu0 0
      %2075 = vmatprep.subr.bf16.mxu0 0
      %2076 = vmatpush1.bf16.msra.mxu0 0
      %2077 = vmatprep.subr.bf16.mxu0 0
      %2078 = vmatpush1.bf16.msra.mxu0 0
      %2079 = vmatprep.subr.bf16.mxu0 0
      %2080 = vmatpush1.bf16.msra.mxu0 0
      %2081 = vmatprep.subr.bf16.mxu0 0
      %2082 = vmatpush1.bf16.msra.mxu0 0
      %2083 = vmatprep.subr.bf16.mxu0 0
      %2084 = vmatpush1.bf16.msra.mxu0 0
      %2085 = vmatprep.subr.bf16.mxu0 0
      %2086 = vmatpush1.bf16.msra.mxu0 0
      %2087 = vmatprep.subr.bf16.mxu0 0
      %2088 = vmatpush1.bf16.msra.mxu0 0
      %2089 = vmatprep.subr.bf16.mxu0 0
      %2090 = vmatpush1.bf16.msra.mxu0 0
      %2091 = vmatprep.subr.bf16.mxu0 0
      %2092 = vmatpush1.bf16.msra.mxu0 0
      %2093 = vmatprep.mubr.bf16.mxu0 0
      %2094 = vmatmul.mubr.bf16.gmra.mrb[0].mxu0 %v2011
      %v2095 = vpop.f32.mrb[0].mxu0
      %v2096 = vadd.f32 0.0, %v2095
      %v2097 = vpop.f32.mrb[0].mxu0
      %v2098 = vpop.f32.mrb[0].mxu0
      %v2099 = vadd.f32 0.0, %v2098
      %v2100 = vpop.f32.mrb[0].mxu0
      %2101 = vmatprep.mubr.bf16.mxu0 0
      %2102 = vmatmul.mubr.bf16.gmra.mrb[0].mxu0 %v2014
      %v2103 = vpop.f32.mrb[0].mxu0
      %v2104 = vadd.f32 0.0, %v2103
      %v2105 = vpop.f32.mrb[0].mxu0
      %v2106 = vpop.f32.mrb[0].mxu0
      %v2107 = vadd.f32 0.0, %v2106
      %v2108 = vpop.f32.mrb[0].mxu0
      %2109 = vmatprep.mubr.bf16.mxu0 0
      %2110 = vmatmul.mubr.bf16.gmra.mrb[0].mxu0 %v2017
      %v2111 = vpop.f32.mrb[0].mxu0
      %v2112 = vadd.f32 0.0, %v2111
      %v2113 = vpop.f32.mrb[0].mxu0
      %v2114 = vpop.f32.mrb[0].mxu0
      %v2115 = vadd.f32 0.0, %v2114
      %v2116 = vpop.f32.mrb[0].mxu0
      %2117 = vmatprep.mubr.bf16.mxu0 0
      %2118 = vmatmul.mubr.bf16.gmra.mrb[0].mxu0 %v2020
      %v2119 = vpop.f32.mrb[0].mxu0
      %v2120 = vadd.f32 0.0, %v2119
      %v2121 = vpop.f32.mrb[0].mxu0
      %v2122 = vpop.f32.mrb[0].mxu0
      %v2123 = vadd.f32 0.0, %v2122
      %v2124 = vpop.f32.mrb[0].mxu0
      %2125 = vmatprep.mubr.bf16.mxu0 0
      %2126 = vmatmul.mubr.bf16.gmra.mrb[0].mxu0 %v2023
      %v2127 = vpop.f32.mrb[0].mxu0
      %v2128 = vadd.f32 0.0, %v2127
      %v2129 = vpop.f32.mrb[0].mxu0
      %v2130 = vpop.f32.mrb[0].mxu0
      %v2131 = vadd.f32 0.0, %v2130
      %v2132 = vpop.f32.mrb[0].mxu0
      %2133 = vmatprep.mubr.bf16.mxu0 0
      %2134 = vmatmul.mubr.bf16.gmra.mrb[0].mxu0 %v2026
      %v2135 = vpop.f32.mrb[0].mxu0
      %v2136 = vadd.f32 0.0, %v2135
      %v2137 = vpop.f32.mrb[0].mxu0
      %v2138 = vpop.f32.mrb[0].mxu0
      %v2139 = vadd.f32 0.0, %v2138
      %v2140 = vpop.f32.mrb[0].mxu0
      %2141 = vmatprep.mubr.bf16.mxu0 0
      %2142 = vmatmul.mubr.bf16.gmra.mrb[0].mxu0 %v2029
      %v2143 = vpop.f32.mrb[0].mxu0
      %v2144 = vadd.f32 0.0, %v2143
      %v2145 = vpop.f32.mrb[0].mxu0
      %v2146 = vpop.f32.mrb[0].mxu0
      %v2147 = vadd.f32 0.0, %v2146
      %v2148 = vpop.f32.mrb[0].mxu0
      %2149 = vmatprep.mubr.bf16.mxu0 0
      %2150 = vmatmul.mubr.bf16.gmra.mrb[0].mxu0 %v2032
      %v2151 = vpop.f32.mrb[0].mxu0
      %v2152 = vadd.f32 0.0, %v2151
      %v2153 = vpop.f32.mrb[0].mxu0
      %v2154 = vpop.f32.mrb[0].mxu0
      %v2155 = vadd.f32 0.0, %v2154
      %v2156 = vpop.f32.mrb[0].mxu0
      %2157 = vmatprep.mubr.bf16.mxu0 0
      %2158 = vmatmul.mubr.bf16.gmra.mrb[0].mxu0 %v2035
      %v2159 = vpop.f32.mrb[0].mxu0
      %v2160 = vadd.f32 0.0, %v2159
      %v2161 = vpop.f32.mrb[0].mxu0
      %v2162 = vpop.f32.mrb[0].mxu0
      %v2163 = vadd.f32 0.0, %v2162
      %v2164 = vpop.f32.mrb[0].mxu0
      %2165 = vmatprep.mubr.bf16.mxu0 0
      %2166 = vmatmul.mubr.bf16.gmra.mrb[0].mxu0 %v2038
      %v2167 = vpop.f32.mrb[0].mxu0
      %v2168 = vadd.f32 0.0, %v2167
      %v2169 = vpop.f32.mrb[0].mxu0
      %v2170 = vpop.f32.mrb[0].mxu0
      %v2171 = vadd.f32 0.0, %v2170
      %v2172 = vpop.f32.mrb[0].mxu0
      %2173 = vmatprep.mubr.bf16.mxu0 0
      %2174 = vmatmul.mubr.bf16.gmra.mrb[0].mxu0 %v2041
      %v2175 = vpop.f32.mrb[0].mxu0
      %v2176 = vadd.f32 0.0, %v2175
      %v2177 = vpop.f32.mrb[0].mxu0
      %v2178 = vpop.f32.mrb[0].mxu0
      %v2179 = vadd.f32 0.0, %v2178
      %v2180 = vpop.f32.mrb[0].mxu0
      %2181 = vmatprep.mubr.bf16.mxu0 0
      %2182 = vmatmul.mubr.bf16.gmra.mrb[0].mxu0 %v2044
      %v2183 = vpop.f32.mrb[0].mxu0
      %v2184 = vadd.f32 0.0, %v2183
      %v2185 = vpop.f32.mrb[0].mxu0
      %v2186 = vpop.f32.mrb[0].mxu0
      %v2187 = vadd.f32 0.0, %v2186
      %v2188 = vpop.f32.mrb[0].mxu0
      %2189 = vmatprep.mubr.bf16.mxu0 0
      %2190 = vmatmul.mubr.bf16.gmra.mrb[0].mxu0 %v2047
      %v2191 = vpop.f32.mrb[0].mxu0
      %v2192 = vadd.f32 0.0, %v2191
      %v2193 = vpop.f32.mrb[0].mxu0
      %v2194 = vpop.f32.mrb[0].mxu0
      %v2195 = vadd.f32 0.0, %v2194
      %v2196 = vpop.f32.mrb[0].mxu0
      %2197 = vmatprep.mubr.bf16.mxu0 0
      %2198 = vmatmul.mubr.bf16.gmra.mrb[0].mxu0 %v2050
      %v2199 = vpop.f32.mrb[0].mxu0
      %v2200 = vadd.f32 0.0, %v2199
      %v2201 = vpop.f32.mrb[0].mxu0
      %v2202 = vpop.f32.mrb[0].mxu0
      %v2203 = vadd.f32 0.0, %v2202
      %v2204 = vpop.f32.mrb[0].mxu0
      %2205 = vmatprep.mubr.bf16.mxu0 0
      %2206 = vmatmul.mubr.bf16.gmra.mrb[0].mxu0 %v2053
      %v2207 = vpop.f32.mrb[0].mxu0
      %v2208 = vadd.f32 0.0, %v2207
      %v2209 = vpop.f32.mrb[0].mxu0
      %v2210 = vpop.f32.mrb[0].mxu0
      %v2211 = vadd.f32 0.0, %v2210
      %v2212 = vpop.f32.mrb[0].mxu0
      %2213 = vmatprep.mubr.bf16.mxu0 0
      %2214 = vmatmul.mubr.bf16.gmra.mrb[0].mxu0 %v2056
      %v2215 = vpop.f32.mrb[0].mxu0
      %v2216 = vadd.f32 0.0, %v2215
      %v2217 = vpop.f32.mrb[0].mxu0
      %v2218 = vpop.f32.mrb[0].mxu0
      %v2219 = vadd.f32 0.0, %v2218
      %v2220 = vpop.f32.mrb[0].mxu0
      %2221 = vdwg.mxu0
      %v2222 = vld [vmem:[%s8] sm:$0x1]
      %v2224 = vlaneseq
      %v2225 = vshrl.u32 %v2224, 7
      %v2226 = vsub.s32 0, %v2225
      %v2227 = vrot.slane %v2222, %v2226
      %v2229 = vmul.f32 %v2096, %v2227
      %v2230 = vmul.f32 %v2099, %v2227
      %v2231 = vmul.f32 %v2104, %v2227
      %v2232 = vmul.f32 %v2107, %v2227
      %v2233 = vmul.f32 %v2112, %v2227
      %v2234 = vmul.f32 %v2115, %v2227
      %v2235 = vmul.f32 %v2120, %v2227
      %v2236 = vmul.f32 %v2123, %v2227
      %v2237 = vmul.f32 %v2128, %v2227
      %v2238 = vmul.f32 %v2131, %v2227
      %v2239 = vmul.f32 %v2136, %v2227
      %v2240 = vmul.f32 %v2139, %v2227
      %v2241 = vmul.f32 %v2144, %v2227
      %v2242 = vmul.f32 %v2147, %v2227
      %v2243 = vmul.f32 %v2152, %v2227
      %v2244 = vmul.f32 %v2155, %v2227
      %v2245 = vmul.f32 %v2160, %v2227
      %v2246 = vmul.f32 %v2163, %v2227
      %v2247 = vmul.f32 %v2168, %v2227
      %v2248 = vmul.f32 %v2171, %v2227
      %v2249 = vmul.f32 %v2176, %v2227
      %v2250 = vmul.f32 %v2179, %v2227
      %v2251 = vmul.f32 %v2184, %v2227
      %v2252 = vmul.f32 %v2187, %v2227
      %v2253 = vmul.f32 %v2192, %v2227
      %v2254 = vmul.f32 %v2195, %v2227
      %v2255 = vmul.f32 %v2200, %v2227
      %v2256 = vmul.f32 %v2203, %v2227
      %v2257 = vmul.f32 %v2208, %v2227
      %v2258 = vmul.f32 %v2211, %v2227
      %v2259 = vmul.f32 %v2216, %v2227
      %v2260 = vmul.f32 %v2219, %v2227
      %v2261 = vld [vmem:[%s9] sm:$0x1]
      %v2263 = vlaneseq
      %v2264 = vshrl.u32 %v2263, 7
      %v2265 = vsub.s32 0, %v2264
      %v2266 = vrot.slane %v2261, %v2265
      %v2268 = vadd.f32 %v2229, %v2266
      %v2269 = vadd.f32 %v2230, %v2266
      %v2270 = vadd.f32 %v2231, %v2266
      %v2271 = vadd.f32 %v2232, %v2266
      %v2272 = vadd.f32 %v2233, %v2266
      %v2273 = vadd.f32 %v2234, %v2266
      %v2274 = vadd.f32 %v2235, %v2266
      %v2275 = vadd.f32 %v2236, %v2266
      %v2276 = vadd.f32 %v2237, %v2266
      %v2277 = vadd.f32 %v2238, %v2266
      %v2278 = vadd.f32 %v2239, %v2266
      %v2279 = vadd.f32 %v2240, %v2266
      %v2280 = vadd.f32 %v2241, %v2266
      %v2281 = vadd.f32 %v2242, %v2266
      %v2282 = vadd.f32 %v2243, %v2266
      %v2283 = vadd.f32 %v2244, %v2266
      %v2284 = vadd.f32 %v2245, %v2266
      %v2285 = vadd.f32 %v2246, %v2266
      %v2286 = vadd.f32 %v2247, %v2266
      %v2287 = vadd.f32 %v2248, %v2266
      %v2288 = vadd.f32 %v2249, %v2266
      %v2289 = vadd.f32 %v2250, %v2266
      %v2290 = vadd.f32 %v2251, %v2266
      %v2291 = vadd.f32 %v2252, %v2266
      %v2292 = vadd.f32 %v2253, %v2266
      %v2293 = vadd.f32 %v2254, %v2266
      %v2294 = vadd.f32 %v2255, %v2266
      %v2295 = vadd.f32 %v2256, %v2266
      %v2296 = vadd.f32 %v2257, %v2266
      %v2297 = vadd.f32 %v2258, %v2266
      %v2298 = vadd.f32 %v2259, %v2266
      %v2299 = vadd.f32 %v2260, %v2266
      %vm2300 = vcmask 64512
      %2301 = vst.msk [vmem:[#allocation3] sm:$0xff] %vm2300, 0.0
      %2302 = vst.msk [vmem:[#allocation3 + $0x8] sm:$0xff] %vm2300, 0.0
      %vm2303 = vcmask 58368
      %2304 = vst.msk [vmem:[#allocation3 + $0x10] sm:$0x3] %vm2303, 0.0
      %s2305 = scalar_lea.vmem [#allocation3], 408
      %2306 = vst.msk [vmem:[%s2305] sm:$0xff] %vm2300, 0.0
      %2307 = vst.msk [vmem:[%s2305 + $0x8] sm:$0xff] %vm2300, 0.0
      %2308 = vst.msk [vmem:[%s2305 + $0x10] sm:$0x3] %vm2303, 0.0
      %vm2309 = vcmask 57344
      %2310 = vst.msk [vmem:[#allocation3] sm:$0x1] %vm2309, 0.0
      %2311 = vst.msk [vmem:[#allocation3 + $0x18] sm:$0x1] %vm2309, 0.0
      %2312 = vst.msk [vmem:[#allocation3 + $0x30] sm:$0x1] %vm2309, 0.0
      %2313 = vst.msk [vmem:[#allocation3 + $0x48] sm:$0x1] %vm2309, 0.0
      %2314 = vst.msk [vmem:[#allocation3 + $0x60] sm:$0x1] %vm2309, 0.0
      %2315 = vst.msk [vmem:[#allocation3 + $0x78] sm:$0x1] %vm2309, 0.0
      %2316 = vst.msk [vmem:[#allocation3 + $0x90] sm:$0x1] %vm2309, 0.0
      %2317 = vst.msk [vmem:[#allocation3 + $0xa8] sm:$0x1] %vm2309, 0.0
      %2318 = vst.msk [vmem:[#allocation3 + $0xc0] sm:$0x1] %vm2309, 0.0
      %2319 = vst.msk [vmem:[#allocation3 + $0xd8] sm:$0x1] %vm2309, 0.0
      %2320 = vst.msk [vmem:[#allocation3 + $0xf0] sm:$0x1] %vm2309, 0.0
      %2321 = vst.msk [vmem:[#allocation3 + $0x108] sm:$0x1] %vm2309, 0.0
      %2322 = vst.msk [vmem:[#allocation3 + $0x120] sm:$0x1] %vm2309, 0.0
      %2323 = vst.msk [vmem:[#allocation3 + $0x138] sm:$0x1] %vm2309, 0.0
      %2324 = vst.msk [vmem:[#allocation3 + $0x150] sm:$0x1] %vm2309, 0.0
      %2325 = vst.msk [vmem:[#allocation3 + $0x168] sm:$0x1] %vm2309, 0.0
      %2326 = vst.msk [vmem:[#allocation3 + $0x180] sm:$0x1] %vm2309, 0.0
      %2327 = vst.msk [vmem:[#allocation3 + $0x198] sm:$0x1] %vm2309, 0.0
      %2328 = vst.msk [vmem:[#allocation3 + $0x11] sm:$0x1] %vm2309, 0.0
      %2329 = vst.msk [vmem:[#allocation3 + $0x29] sm:$0x1] %vm2309, 0.0
      %2330 = vst.msk [vmem:[#allocation3 + $0x41] sm:$0x1] %vm2309, 0.0
      %2331 = vst.msk [vmem:[#allocation3 + $0x59] sm:$0x1] %vm2309, 0.0
      %2332 = vst.msk [vmem:[#allocation3 + $0x71] sm:$0x1] %vm2309, 0.0
      %2333 = vst.msk [vmem:[#allocation3 + $0x89] sm:$0x1] %vm2309, 0.0
      %2334 = vst.msk [vmem:[#allocation3 + $0xa1] sm:$0x1] %vm2309, 0.0
      %2335 = vst.msk [vmem:[#allocation3 + $0xb9] sm:$0x1] %vm2309, 0.0
      %2336 = vst.msk [vmem:[#allocation3 + $0xd1] sm:$0x1] %vm2309, 0.0
      %2337 = vst.msk [vmem:[#allocation3 + $0xe9] sm:$0x1] %vm2309, 0.0
      %2338 = vst.msk [vmem:[#allocation3 + $0x101] sm:$0x1] %vm2309, 0.0
      %2339 = vst.msk [vmem:[#allocation3 + $0x119] sm:$0x1] %vm2309, 0.0
      %2340 = vst.msk [vmem:[#allocation3 + $0x131] sm:$0x1] %vm2309, 0.0
      %2341 = vst.msk [vmem:[#allocation3 + $0x149] sm:$0x1] %vm2309, 0.0
      %2342 = vst.msk [vmem:[#allocation3 + $0x161] sm:$0x1] %vm2309, 0.0
      %2343 = vst.msk [vmem:[#allocation3 + $0x179] sm:$0x1] %vm2309, 0.0
      %2344 = vst.msk [vmem:[#allocation3 + $0x191] sm:$0x1] %vm2309, 0.0
      %2345 = vst.msk [vmem:[#allocation3 + $0x1a9] sm:$0x1] %vm2309, 0.0
      %s2346 = scalar_lea.vmem [#allocation3], 24
      %2347 = vst.msk [vmem:[%s2346 + $0x1] sm:$0xff] %vm2300, %v1929
      %2348 = vst.msk [vmem:[%s2346 + $0x9] sm:$0xff] %vm2300, %v1930
      %2349 = vst.msk [vmem:[%s2346 + $0x19] sm:$0xff] %vm2300, %v1931
      %2350 = vst.msk [vmem:[%s2346 + $0x21] sm:$0xff] %vm2300, %v1932
      %2351 = vst.msk [vmem:[%s2346 + $0x31] sm:$0xff] %vm2300, %v1933
      %2352 = vst.msk [vmem:[%s2346 + $0x39] sm:$0xff] %vm2300, %v1934
      %2353 = vst.msk [vmem:[%s2346 + $0x49] sm:$0xff] %vm2300, %v1935
      %2354 = vst.msk [vmem:[%s2346 + $0x51] sm:$0xff] %vm2300, %v1936
      %2355 = vst.msk [vmem:[%s2346 + $0x61] sm:$0xff] %vm2300, %v1937
      %2356 = vst.msk [vmem:[%s2346 + $0x69] sm:$0xff] %vm2300, %v1938
      %2357 = vst.msk [vmem:[%s2346 + $0x79] sm:$0xff] %vm2300, %v1939
      %2358 = vst.msk [vmem:[%s2346 + $0x81] sm:$0xff] %vm2300, %v1940
      %2359 = vst.msk [vmem:[%s2346 + $0x91] sm:$0xff] %vm2300, %v1941
      %2360 = vst.msk [vmem:[%s2346 + $0x99] sm:$0xff] %vm2300, %v1942
      %2361 = vst.msk [vmem:[%s2346 + $0xa9] sm:$0xff] %vm2300, %v1943
      %2362 = vst.msk [vmem:[%s2346 + $0xb1] sm:$0xff] %vm2300, %v1944
      %2363 = vst.msk [vmem:[%s2346 + $0xc1] sm:$0xff] %vm2300, %v1945
      %2364 = vst.msk [vmem:[%s2346 + $0xc9] sm:$0xff] %vm2300, %v1946
      %2365 = vst.msk [vmem:[%s2346 + $0xd9] sm:$0xff] %vm2300, %v1947
      %2366 = vst.msk [vmem:[%s2346 + $0xe1] sm:$0xff] %vm2300, %v1948
      %2367 = vst.msk [vmem:[%s2346 + $0xf1] sm:$0xff] %vm2300, %v1949
      %2368 = vst.msk [vmem:[%s2346 + $0xf9] sm:$0xff] %vm2300, %v1950
      %2369 = vst.msk [vmem:[%s2346 + $0x109] sm:$0xff] %vm2300, %v1951
      %2370 = vst.msk [vmem:[%s2346 + $0x111] sm:$0xff] %vm2300, %v1952
      %2371 = vst.msk [vmem:[%s2346 + $0x121] sm:$0xff] %vm2300, %v1953
      %2372 = vst.msk [vmem:[%s2346 + $0x129] sm:$0xff] %vm2300, %v1954
      %2373 = vst.msk [vmem:[%s2346 + $0x139] sm:$0xff] %vm2300, %v1955
      %2374 = vst.msk [vmem:[%s2346 + $0x141] sm:$0xff] %vm2300, %v1956
      %2375 = vst.msk [vmem:[%s2346 + $0x151] sm:$0xff] %vm2300, %v1957
      %2376 = vst.msk [vmem:[%s2346 + $0x159] sm:$0xff] %vm2300, %v1958
      %2377 = vst.msk [vmem:[%s2346 + $0x169] sm:$0xff] %vm2300, %v1959
      %2378 = vst.msk [vmem:[%s2346 + $0x171] sm:$0xff] %vm2300, %v1960
      %v2379 = vld [vmem:[%s5] sm:$0x1]
      %v2380 = vld [vmem:[%s6] sm:$0x1]
      %v2381 = vld [vmem:[#allocation3] sm:$0xff]
      %v2382 = vld [vmem:[#allocation3 + $0x8] sm:$0xff]
      %v2383 = vld [vmem:[#allocation3 + $0x18] sm:$0xff]
      %v2384 = vld [vmem:[#allocation3 + $0x20] sm:$0xff]
      %v2385 = vld [vmem:[#allocation3 + $0x30] sm:$0xff]
      %v2386 = vld [vmem:[#allocation3 + $0x38] sm:$0xff]
      %v2387 = vld [vmem:[#allocation3 + $0x48] sm:$0xff]
      %v2388 = vld [vmem:[#allocation3 + $0x50] sm:$0xff]
      %v2389 = vld [vmem:[#allocation3 + $0x60] sm:$0xff]
      %v2390 = vld [vmem:[#allocation3 + $0x68] sm:$0xff]
      %v2391 = vld [vmem:[#allocation3 + $0x78] sm:$0xff]
      %v2392 = vld [vmem:[#allocation3 + $0x80] sm:$0xff]
      %v2393 = vld [vmem:[#allocation3 + $0x90] sm:$0xff]
      %v2394 = vld [vmem:[#allocation3 + $0x98] sm:$0xff]
      %v2395 = vld [vmem:[#allocation3 + $0xa8] sm:$0xff]
      %v2396 = vld [vmem:[#allocation3 + $0xb0] sm:$0xff]
      %v2397 = vld [vmem:[#allocation3 + $0xc0] sm:$0xff]
      %v2398 = vld [vmem:[#allocation3 + $0xc8] sm:$0xff]
      %v2399 = vld [vmem:[#allocation3 + $0xd8] sm:$0xff]
      %v2400 = vld [vmem:[#allocation3 + $0xe0] sm:$0xff]
      %v2401 = vld [vmem:[#allocation3 + $0xf0] sm:$0xff]
      %v2402 = vld [vmem:[#allocation3 + $0xf8] sm:$0xff]
      %v2403 = vld [vmem:[#allocation3 + $0x108] sm:$0xff]
      %v2404 = vld [vmem:[#allocation3 + $0x110] sm:$0xff]
      %v2405 = vld [vmem:[#allocation3 + $0x120] sm:$0xff]
      %v2406 = vld [vmem:[#allocation3 + $0x128] sm:$0xff]
      %v2407 = vld [vmem:[#allocation3 + $0x138] sm:$0xff]
      %v2408 = vld [vmem:[#allocation3 + $0x140] sm:$0xff]
      %v2409 = vld [vmem:[#allocation3 + $0x150] sm:$0xff]
      %v2410 = vld [vmem:[#allocation3 + $0x158] sm:$0xff]
      %v2411 = vld [vmem:[#allocation3 + $0x168] sm:$0xff]
      %v2412 = vld [vmem:[#allocation3 + $0x170] sm:$0xff]
      %v2413 = vpack.c.bf16 %v2382, %v2381
      %v2414 = vpack.c.bf16 %v2384, %v2383
      %v2415 = vpack.c.bf16 %v2386, %v2385
      %v2416 = vpack.c.bf16 %v2388, %v2387
      %v2417 = vpack.c.bf16 %v2390, %v2389
      %v2418 = vpack.c.bf16 %v2392, %v2391
      %v2419 = vpack.c.bf16 %v2394, %v2393
      %v2420 = vpack.c.bf16 %v2396, %v2395
      %v2421 = vpack.c.bf16 %v2398, %v2397
      %v2422 = vpack.c.bf16 %v2400, %v2399
      %v2423 = vpack.c.bf16 %v2402, %v2401
      %v2424 = vpack.c.bf16 %v2404, %v2403
      %v2425 = vpack.c.bf16 %v2406, %v2405
      %v2426 = vpack.c.bf16 %v2408, %v2407
      %v2427 = vpack.c.bf16 %v2410, %v2409
      %v2428 = vpack.c.bf16 %v2412, %v2411
      %v2429 = vld [vmem:[%s4] sm:$0xf]
      %v2430 = vld [vmem:[#allocation3 + $0x1] sm:$0xff]
      %v2431 = vld [vmem:[#allocation3 + $0x9] sm:$0xff]
      %v2432 = vld [vmem:[#allocation3 + $0x19] sm:$0xff]
      %v2433 = vld [vmem:[#allocation3 + $0x21] sm:$0xff]
      %v2434 = vld [vmem:[#allocation3 + $0x31] sm:$0xff]
      %v2435 = vld [vmem:[#allocation3 + $0x39] sm:$0xff]
      %v2436 = vld [vmem:[#allocation3 + $0x49] sm:$0xff]
      %v2437 = vld [vmem:[#allocation3 + $0x51] sm:$0xff]
      %v2438 = vld [vmem:[#allocation3 + $0x61] sm:$0xff]
      %v2439 = vld [vmem:[#allocation3 + $0x69] sm:$0xff]
      %v2440 = vld [vmem:[#allocation3 + $0x79] sm:$0xff]
      %v2441 = vld [vmem:[#allocation3 + $0x81] sm:$0xff]
      %v2442 = vld [vmem:[#allocation3 + $0x91] sm:$0xff]
      %v2443 = vld [vmem:[#allocation3 + $0x99] sm:$0xff]
      %v2444 = vld [vmem:[#allocation3 + $0xa9] sm:$0xff]
      %v2445 = vld [vmem:[#allocation3 + $0xb1] sm:$0xff]
      %v2446 = vld [vmem:[#allocation3 + $0xc1] sm:$0xff]
      %v2447 = vld [vmem:[#allocation3 + $0xc9] sm:$0xff]
      %v2448 = vld [vmem:[#allocation3 + $0xd9] sm:$0xff]
      %v2449 = vld [vmem:[#allocation3 + $0xe1] sm:$0xff]
      %v2450 = vld [vmem:[#allocation3 + $0xf1] sm:$0xff]
      %v2451 = vld [vmem:[#allocation3 + $0xf9] sm:$0xff]
      %v2452 = vld [vmem:[#allocation3 + $0x109] sm:$0xff]
      %v2453 = vld [vmem:[#allocation3 + $0x111] sm:$0xff]
      %v2454 = vld [vmem:[#allocation3 + $0x121] sm:$0xff]
      %v2455 = vld [vmem:[#allocation3 + $0x129] sm:$0xff]
      %v2456 = vld [vmem:[#allocation3 + $0x139] sm:$0xff]
      %v2457 = vld [vmem:[#allocation3 + $0x141] sm:$0xff]
      %v2458 = vld [vmem:[#allocation3 + $0x151] sm:$0xff]
      %v2459 = vld [vmem:[#allocation3 + $0x159] sm:$0xff]
      %v2460 = vld [vmem:[#allocation3 + $0x169] sm:$0xff]
      %v2461 = vld [vmem:[#allocation3 + $0x171] sm:$0xff]
      %v2462 = vpack.c.bf16 %v2431, %v2430
      %v2463 = vpack.c.bf16 %v2433, %v2432
      %v2464 = vpack.c.bf16 %v2435, %v2434
      %v2465 = vpack.c.bf16 %v2437, %v2436
      %v2466 = vpack.c.bf16 %v2439, %v2438
      %v2467 = vpack.c.bf16 %v2441, %v2440
      %v2468 = vpack.c.bf16 %v2443, %v2442
      %v2469 = vpack.c.bf16 %v2445, %v2444
      %v2470 = vpack.c.bf16 %v2447, %v2446
      %v2471 = vpack.c.bf16 %v2449, %v2448
      %v2472 = vpack.c.bf16 %v2451, %v2450
      %v2473 = vpack.c.bf16 %v2453, %v2452
      %v2474 = vpack.c.bf16 %v2455, %v2454
      %v2475 = vpack.c.bf16 %v2457, %v2456
      %v2476 = vpack.c.bf16 %v2459, %v2458
      %v2477 = vpack.c.bf16 %v2461, %v2460
      %s2478 = scalar_lea.vmem %s4, 4
      %v2479 = vld [vmem:[%s2478] sm:$0xf]
      %v2481 = vsel %vm2300, %v2462, 0
      %v2484 = vsel %vm2300, %v2463, 0
      %v2487 = vsel %vm2300, %v2464, 0
      %v2490 = vsel %vm2300, %v2465, 0
      %v2493 = vsel %vm2300, %v2466, 0
      %v2496 = vsel %vm2300, %v2467, 0
      %v2499 = vsel %vm2300, %v2468, 0
      %v2502 = vsel %vm2300, %v2469, 0
      %v2505 = vsel %vm2300, %v2470, 0
      %v2508 = vsel %vm2300, %v2471, 0
      %v2511 = vsel %vm2300, %v2472, 0
      %v2514 = vsel %vm2300, %v2473, 0
      %v2517 = vsel %vm2300, %v2474, 0
      %v2520 = vsel %vm2300, %v2475, 0
      %v2523 = vsel %vm2300, %v2476, 0
      %v2526 = vsel %vm2300, %v2477, 0
      %vm2528 = vcmask 1043456
      %v2530 = vsel %vm2528, %v2479, 0
      %2532 = vmatprep.subr.bf16.mxu0 0
      %2533 = vmatpush1.bf16.msra.mxu0 %v2530
      %2534 = vmatprep.subr.bf16.mxu0 0
      %2535 = vmatpush1.bf16.msra.mxu0 0
      %2536 = vmatprep.subr.bf16.mxu0 0
      %2537 = vmatpush1.bf16.msra.mxu0 0
      %2538 = vmatprep.subr.bf16.mxu0 0
      %2539 = vmatpush1.bf16.msra.mxu0 0
      %2540 = vmatprep.subr.bf16.mxu0 0
      %2541 = vmatpush1.bf16.msra.mxu0 0
      %2542 = vmatprep.subr.bf16.mxu0 0
      %2543 = vmatpush1.bf16.msra.mxu0 0
      %2544 = vmatprep.subr.bf16.mxu0 0
      %2545 = vmatpush1.bf16.msra.mxu0 0
      %2546 = vmatprep.subr.bf16.mxu0 0
      %2547 = vmatpush1.bf16.msra.mxu0 0
      %2548 = vmatprep.subr.bf16.mxu0 0
      %2549 = vmatpush1.bf16.msra.mxu0 0
      %2550 = vmatprep.subr.bf16.mxu0 0
      %2551 = vmatpush1.bf16.msra.mxu0 0
      %2552 = vmatprep.subr.bf16.mxu0 0
      %2553 = vmatpush1.bf16.msra.mxu0 0
      %2554 = vmatprep.subr.bf16.mxu0 0
      %2555 = vmatpush1.bf16.msra.mxu0 0
      %2556 = vmatprep.subr.bf16.mxu0 0
      %2557 = vmatpush1.bf16.msra.mxu0 0
      %2558 = vmatprep.subr.bf16.mxu0 0
      %2559 = vmatpush1.bf16.msra.mxu0 0
      %2560 = vmatprep.subr.bf16.mxu0 0
      %2561 = vmatpush1.bf16.msra.mxu0 0
      %2562 = vmatprep.subr.bf16.mxu0 0
      %2563 = vmatpush1.bf16.msra.mxu0 0
      %2564 = vmatprep.mubr.bf16.mxu0 0
      %2565 = vmatmul.mubr.bf16.gmra.mrb[0].mxu0 %v2481
      %v2566 = vpop.f32.mrb[0].mxu0
      %v2567 = vadd.f32 0.0, %v2566
      %v2568 = vpop.f32.mrb[0].mxu0
      %v2569 = vpop.f32.mrb[0].mxu0
      %v2570 = vadd.f32 0.0, %v2569
      %v2571 = vpop.f32.mrb[0].mxu0
      %2572 = vmatprep.mubr.bf16.mxu0 0
      %2573 = vmatmul.mubr.bf16.gmra.mrb[0].mxu0 %v2484
      %v2574 = vpop.f32.mrb[0].mxu0
      %v2575 = vadd.f32 0.0, %v2574
      %v2576 = vpop.f32.mrb[0].mxu0
      %v2577 = vpop.f32.mrb[0].mxu0
      %v2578 = vadd.f32 0.0, %v2577
      %v2579 = vpop.f32.mrb[0].mxu0
      %2580 = vmatprep.mubr.bf16.mxu0 0
      %2581 = vmatmul.mubr.bf16.gmra.mrb[0].mxu0 %v2487
      %v2582 = vpop.f32.mrb[0].mxu0
      %v2583 = vadd.f32 0.0, %v2582
      %v2584 = vpop.f32.mrb[0].mxu0
      %v2585 = vpop.f32.mrb[0].mxu0
      %v2586 = vadd.f32 0.0, %v2585
      %v2587 = vpop.f32.mrb[0].mxu0
      %2588 = vmatprep.mubr.bf16.mxu0 0
      %2589 = vmatmul.mubr.bf16.gmra.mrb[0].mxu0 %v2490
      %v2590 = vpop.f32.mrb[0].mxu0
      %v2591 = vadd.f32 0.0, %v2590
      %v2592 = vpop.f32.mrb[0].mxu0
      %v2593 = vpop.f32.mrb[0].mxu0
      %v2594 = vadd.f32 0.0, %v2593
      %v2595 = vpop.f32.mrb[0].mxu0
      %2596 = vmatprep.mubr.bf16.mxu0 0
      %2597 = vmatmul.mubr.bf16.gmra.mrb[0].mxu0 %v2493
      %v2598 = vpop.f32.mrb[0].mxu0
      %v2599 = vadd.f32 0.0, %v2598
      %v2600 = vpop.f32.mrb[0].mxu0
      %v2601 = vpop.f32.mrb[0].mxu0
      %v2602 = vadd.f32 0.0, %v2601
      %v2603 = vpop.f32.mrb[0].mxu0
      %2604 = vmatprep.mubr.bf16.mxu0 0
      %2605 = vmatmul.mubr.bf16.gmra.mrb[0].mxu0 %v2496
      %v2606 = vpop.f32.mrb[0].mxu0
      %v2607 = vadd.f32 0.0, %v2606
      %v2608 = vpop.f32.mrb[0].mxu0
      %v2609 = vpop.f32.mrb[0].mxu0
      %v2610 = vadd.f32 0.0, %v2609
      %v2611 = vpop.f32.mrb[0].mxu0
      %2612 = vmatprep.mubr.bf16.mxu0 0
      %2613 = vmatmul.mubr.bf16.gmra.mrb[0].mxu0 %v2499
      %v2614 = vpop.f32.mrb[0].mxu0
      %v2615 = vadd.f32 0.0, %v2614
      %v2616 = vpop.f32.mrb[0].mxu0
      %v2617 = vpop.f32.mrb[0].mxu0
      %v2618 = vadd.f32 0.0, %v2617
      %v2619 = vpop.f32.mrb[0].mxu0
      %2620 = vmatprep.mubr.bf16.mxu0 0
      %2621 = vmatmul.mubr.bf16.gmra.mrb[0].mxu0 %v2502
      %v2622 = vpop.f32.mrb[0].mxu0
      %v2623 = vadd.f32 0.0, %v2622
      %v2624 = vpop.f32.mrb[0].mxu0
      %v2625 = vpop.f32.mrb[0].mxu0
      %v2626 = vadd.f32 0.0, %v2625
      %v2627 = vpop.f32.mrb[0].mxu0
      %2628 = vmatprep.mubr.bf16.mxu0 0
      %2629 = vmatmul.mubr.bf16.gmra.mrb[0].mxu0 %v2505
      %v2630 = vpop.f32.mrb[0].mxu0
      %v2631 = vadd.f32 0.0, %v2630
      %v2632 = vpop.f32.mrb[0].mxu0
      %v2633 = vpop.f32.mrb[0].mxu0
      %v2634 = vadd.f32 0.0, %v2633
      %v2635 = vpop.f32.mrb[0].mxu0
      %2636 = vmatprep.mubr.bf16.mxu0 0
      %2637 = vmatmul.mubr.bf16.gmra.mrb[0].mxu0 %v2508
      %v2638 = vpop.f32.mrb[0].mxu0
      %v2639 = vadd.f32 0.0, %v2638
      %v2640 = vpop.f32.mrb[0].mxu0
      %v2641 = vpop.f32.mrb[0].mxu0
      %v2642 = vadd.f32 0.0, %v2641
      %v2643 = vpop.f32.mrb[0].mxu0
      %2644 = vmatprep.mubr.bf16.mxu0 0
      %2645 = vmatmul.mubr.bf16.gmra.mrb[0].mxu0 %v2511
      %v2646 = vpop.f32.mrb[0].mxu0
      %v2647 = vadd.f32 0.0, %v2646
      %v2648 = vpop.f32.mrb[0].mxu0
      %v2649 = vpop.f32.mrb[0].mxu0
      %v2650 = vadd.f32 0.0, %v2649
      %v2651 = vpop.f32.mrb[0].mxu0
      %2652 = vmatprep.mubr.bf16.mxu0 0
      %2653 = vmatmul.mubr.bf16.gmra.mrb[0].mxu0 %v2514
      %v2654 = vpop.f32.mrb[0].mxu0
      %v2655 = vadd.f32 0.0, %v2654
      %v2656 = vpop.f32.mrb[0].mxu0
      %v2657 = vpop.f32.mrb[0].mxu0
      %v2658 = vadd.f32 0.0, %v2657
      %v2659 = vpop.f32.mrb[0].mxu0
      %2660 = vmatprep.mubr.bf16.mxu0 0
      %2661 = vmatmul.mubr.bf16.gmra.mrb[0].mxu0 %v2517
      %v2662 = vpop.f32.mrb[0].mxu0
      %v2663 = vadd.f32 0.0, %v2662
      %v2664 = vpop.f32.mrb[0].mxu0
      %v2665 = vpop.f32.mrb[0].mxu0
      %v2666 = vadd.f32 0.0, %v2665
      %v2667 = vpop.f32.mrb[0].mxu0
      %2668 = vmatprep.mubr.bf16.mxu0 0
      %2669 = vmatmul.mubr.bf16.gmra.mrb[0].mxu0 %v2520
      %v2670 = vpop.f32.mrb[0].mxu0
      %v2671 = vadd.f32 0.0, %v2670
      %v2672 = vpop.f32.mrb[0].mxu0
      %v2673 = vpop.f32.mrb[0].mxu0
      %v2674 = vadd.f32 0.0, %v2673
      %v2675 = vpop.f32.mrb[0].mxu0
      %2676 = vmatprep.mubr.bf16.mxu0 0
      %2677 = vmatmul.mubr.bf16.gmra.mrb[0].mxu0 %v2523
      %v2678 = vpop.f32.mrb[0].mxu0
      %v2679 = vadd.f32 0.0, %v2678
      %v2680 = vpop.f32.mrb[0].mxu0
      %v2681 = vpop.f32.mrb[0].mxu0
      %v2682 = vadd.f32 0.0, %v2681
      %v2683 = vpop.f32.mrb[0].mxu0
      %2684 = vmatprep.mubr.bf16.mxu0 0
      %2685 = vmatmul.mubr.bf16.gmra.mrb[0].mxu0 %v2526
      %v2686 = vpop.f32.mrb[0].mxu0
      %v2687 = vadd.f32 0.0, %v2686
      %v2688 = vpop.f32.mrb[0].mxu0
      %v2689 = vpop.f32.mrb[0].mxu0
      %v2690 = vadd.f32 0.0, %v2689
      %v2691 = vpop.f32.mrb[0].mxu0
      %2692 = vdwg.mxu0
      %v2694 = vsel %vm2300, %v2413, 0
      %v2697 = vsel %vm2300, %v2414, 0
      %v2700 = vsel %vm2300, %v2415, 0
      %v2703 = vsel %vm2300, %v2416, 0
      %v2706 = vsel %vm2300, %v2417, 0
      %v2709 = vsel %vm2300, %v2418, 0
      %v2712 = vsel %vm2300, %v2419, 0
      %v2715 = vsel %vm2300, %v2420, 0
      %v2718 = vsel %vm2300, %v2421, 0
      %v2721 = vsel %vm2300, %v2422, 0
      %v2724 = vsel %vm2300, %v2423, 0
      %v2727 = vsel %vm2300, %v2424, 0
      %v2730 = vsel %vm2300, %v2425, 0
      %v2733 = vsel %vm2300, %v2426, 0
      %v2736 = vsel %vm2300, %v2427, 0
      %v2739 = vsel %vm2300, %v2428, 0
      %v2742 = vsel %vm2528, %v2429, 0
      %2744 = vmatprep.subr.bf16.mxu0 0
      %2745 = vmatpush1.bf16.msra.mxu0 %v2742
      %2746 = vmatprep.subr.bf16.mxu0 0
      %2747 = vmatpush1.bf16.msra.mxu0 0
      %2748 = vmatprep.subr.bf16.mxu0 0
      %2749 = vmatpush1.bf16.msra.mxu0 0
      %2750 = vmatprep.subr.bf16.mxu0 0
      %2751 = vmatpush1.bf16.msra.mxu0 0
      %2752 = vmatprep.subr.bf16.mxu0 0
      %2753 = vmatpush1.bf16.msra.mxu0 0
      %2754 = vmatprep.subr.bf16.mxu0 0
      %2755 = vmatpush1.bf16.msra.mxu0 0
      %2756 = vmatprep.subr.bf16.mxu0 0
      %2757 = vmatpush1.bf16.msra.mxu0 0
      %2758 = vmatprep.subr.bf16.mxu0 0
      %2759 = vmatpush1.bf16.msra.mxu0 0
      %2760 = vmatprep.subr.bf16.mxu0 0
      %2761 = vmatpush1.bf16.msra.mxu0 0
      %2762 = vmatprep.subr.bf16.mxu0 0
      %2763 = vmatpush1.bf16.msra.mxu0 0
      %2764 = vmatprep.subr.bf16.mxu0 0
      %2765 = vmatpush1.bf16.msra.mxu0 0
      %2766 = vmatprep.subr.bf16.mxu0 0
      %2767 = vmatpush1.bf16.msra.mxu0 0
      %2768 = vmatprep.subr.bf16.mxu0 0
      %2769 = vmatpush1.bf16.msra.mxu0 0
      %2770 = vmatprep.subr.bf16.mxu0 0
      %2771 = vmatpush1.bf16.msra.mxu0 0
      %2772 = vmatprep.subr.bf16.mxu0 0
      %2773 = vmatpush1.bf16.msra.mxu0 0
      %2774 = vmatprep.subr.bf16.mxu0 0
      %2775 = vmatpush1.bf16.msra.mxu0 0
      %2776 = vmatprep.mubr.bf16.mxu0 0
      %2777 = vmatmul.mubr.bf16.gmra.mrb[0].mxu0 %v2694
      %v2778 = vpop.f32.mrb[0].mxu0
      %v2779 = vadd.f32 %v2567, %v2778
      %v2780 = vpop.f32.mrb[0].mxu0
      %v2781 = vpop.f32.mrb[0].mxu0
      %v2782 = vadd.f32 %v2570, %v2781
      %v2783 = vpop.f32.mrb[0].mxu0
      %2784 = vmatprep.mubr.bf16.mxu0 0
      %2785 = vmatmul.mubr.bf16.gmra.mrb[0].mxu0 %v2697
      %v2786 = vpop.f32.mrb[0].mxu0
      %v2787 = vadd.f32 %v2575, %v2786
      %v2788 = vpop.f32.mrb[0].mxu0
      %v2789 = vpop.f32.mrb[0].mxu0
      %v2790 = vadd.f32 %v2578, %v2789
      %v2791 = vpop.f32.mrb[0].mxu0
      %2792 = vmatprep.mubr.bf16.mxu0 0
      %2793 = vmatmul.mubr.bf16.gmra.mrb[0].mxu0 %v2700
      %v2794 = vpop.f32.mrb[0].mxu0
      %v2795 = vadd.f32 %v2583, %v2794
      %v2796 = vpop.f32.mrb[0].mxu0
      %v2797 = vpop.f32.mrb[0].mxu0
      %v2798 = vadd.f32 %v2586, %v2797
      %v2799 = vpop.f32.mrb[0].mxu0
      %2800 = vmatprep.mubr.bf16.mxu0 0
      %2801 = vmatmul.mubr.bf16.gmra.mrb[0].mxu0 %v2703
      %v2802 = vpop.f32.mrb[0].mxu0
      %v2803 = vadd.f32 %v2591, %v2802
      %v2804 = vpop.f32.mrb[0].mxu0
      %v2805 = vpop.f32.mrb[0].mxu0
      %v2806 = vadd.f32 %v2594, %v2805
      %v2807 = vpop.f32.mrb[0].mxu0
      %2808 = vmatprep.mubr.bf16.mxu0 0
      %2809 = vmatmul.mubr.bf16.gmra.mrb[0].mxu0 %v2706
      %v2810 = vpop.f32.mrb[0].mxu0
      %v2811 = vadd.f32 %v2599, %v2810
      %v2812 = vpop.f32.mrb[0].mxu0
      %v2813 = vpop.f32.mrb[0].mxu0
      %v2814 = vadd.f32 %v2602, %v2813
      %v2815 = vpop.f32.mrb[0].mxu0
      %2816 = vmatprep.mubr.bf16.mxu0 0
      %2817 = vmatmul.mubr.bf16.gmra.mrb[0].mxu0 %v2709
      %v2818 = vpop.f32.mrb[0].mxu0
      %v2819 = vadd.f32 %v2607, %v2818
      %v2820 = vpop.f32.mrb[0].mxu0
      %v2821 = vpop.f32.mrb[0].mxu0
      %v2822 = vadd.f32 %v2610, %v2821
      %v2823 = vpop.f32.mrb[0].mxu0
      %2824 = vmatprep.mubr.bf16.mxu0 0
      %2825 = vmatmul.mubr.bf16.gmra.mrb[0].mxu0 %v2712
      %v2826 = vpop.f32.mrb[0].mxu0
      %v2827 = vadd.f32 %v2615, %v2826
      %v2828 = vpop.f32.mrb[0].mxu0
      %v2829 = vpop.f32.mrb[0].mxu0
      %v2830 = vadd.f32 %v2618, %v2829
      %v2831 = vpop.f32.mrb[0].mxu0
      %2832 = vmatprep.mubr.bf16.mxu0 0
      %2833 = vmatmul.mubr.bf16.gmra.mrb[0].mxu0 %v2715
      %v2834 = vpop.f32.mrb[0].mxu0
      %v2835 = vadd.f32 %v2623, %v2834
      %v2836 = vpop.f32.mrb[0].mxu0
      %v2837 = vpop.f32.mrb[0].mxu0
      %v2838 = vadd.f32 %v2626, %v2837
      %v2839 = vpop.f32.mrb[0].mxu0
      %2840 = vmatprep.mubr.bf16.mxu0 0
      %2841 = vmatmul.mubr.bf16.gmra.mrb[0].mxu0 %v2718
      %v2842 = vpop.f32.mrb[0].mxu0
      %v2843 = vadd.f32 %v2631, %v2842
      %v2844 = vpop.f32.mrb[0].mxu0
      %v2845 = vpop.f32.mrb[0].mxu0
      %v2846 = vadd.f32 %v2634, %v2845
      %v2847 = vpop.f32.mrb[0].mxu0
      %2848 = vmatprep.mubr.bf16.mxu0 0
      %2849 = vmatmul.mubr.bf16.gmra.mrb[0].mxu0 %v2721
      %v2850 = vpop.f32.mrb[0].mxu0
      %v2851 = vadd.f32 %v2639, %v2850
      %v2852 = vpop.f32.mrb[0].mxu0
      %v2853 = vpop.f32.mrb[0].mxu0
      %v2854 = vadd.f32 %v2642, %v2853
      %v2855 = vpop.f32.mrb[0].mxu0
      %2856 = vmatprep.mubr.bf16.mxu0 0
      %2857 = vmatmul.mubr.bf16.gmra.mrb[0].mxu0 %v2724
      %v2858 = vpop.f32.mrb[0].mxu0
      %v2859 = vadd.f32 %v2647, %v2858
      %v2860 = vpop.f32.mrb[0].mxu0
      %v2861 = vpop.f32.mrb[0].mxu0
      %v2862 = vadd.f32 %v2650, %v2861
      %v2863 = vpop.f32.mrb[0].mxu0
      %2864 = vmatprep.mubr.bf16.mxu0 0
      %2865 = vmatmul.mubr.bf16.gmra.mrb[0].mxu0 %v2727
      %v2866 = vpop.f32.mrb[0].mxu0
      %v2867 = vadd.f32 %v2655, %v2866
      %v2868 = vpop.f32.mrb[0].mxu0
      %v2869 = vpop.f32.mrb[0].mxu0
      %v2870 = vadd.f32 %v2658, %v2869
      %v2871 = vpop.f32.mrb[0].mxu0
      %2872 = vmatprep.mubr.bf16.mxu0 0
      %2873 = vmatmul.mubr.bf16.gmra.mrb[0].mxu0 %v2730
      %v2874 = vpop.f32.mrb[0].mxu0
      %v2875 = vadd.f32 %v2663, %v2874
      %v2876 = vpop.f32.mrb[0].mxu0
      %v2877 = vpop.f32.mrb[0].mxu0
      %v2878 = vadd.f32 %v2666, %v2877
      %v2879 = vpop.f32.mrb[0].mxu0
      %2880 = vmatprep.mubr.bf16.mxu0 0
      %2881 = vmatmul.mubr.bf16.gmra.mrb[0].mxu0 %v2733
      %v2882 = vpop.f32.mrb[0].mxu0
      %v2883 = vadd.f32 %v2671, %v2882
      %v2884 = vpop.f32.mrb[0].mxu0
      %v2885 = vpop.f32.mrb[0].mxu0
      %v2886 = vadd.f32 %v2674, %v2885
      %v2887 = vpop.f32.mrb[0].mxu0
      %2888 = vmatprep.mubr.bf16.mxu0 0
      %2889 = vmatmul.mubr.bf16.gmra.mrb[0].mxu0 %v2736
      %v2890 = vpop.f32.mrb[0].mxu0
      %v2891 = vadd.f32 %v2679, %v2890
      %v2892 = vpop.f32.mrb[0].mxu0
      %v2893 = vpop.f32.mrb[0].mxu0
      %v2894 = vadd.f32 %v2682, %v2893
      %v2895 = vpop.f32.mrb[0].mxu0
      %2896 = vmatprep.mubr.bf16.mxu0 0
      %2897 = vmatmul.mubr.bf16.gmra.mrb[0].mxu0 %v2739
      %v2898 = vpop.f32.mrb[0].mxu0
      %v2899 = vadd.f32 %v2687, %v2898
      %v2900 = vpop.f32.mrb[0].mxu0
      %v2901 = vpop.f32.mrb[0].mxu0
      %v2902 = vadd.f32 %v2690, %v2901
      %v2903 = vpop.f32.mrb[0].mxu0
      %2904 = vdwg.mxu0
      %v2905 = vld [vmem:[#allocation3 + $0x2] sm:$0xff]
      %v2906 = vld [vmem:[#allocation3 + $0xa] sm:$0xff]
      %v2907 = vld [vmem:[#allocation3 + $0x1a] sm:$0xff]
      %v2908 = vld [vmem:[#allocation3 + $0x22] sm:$0xff]
      %v2909 = vld [vmem:[#allocation3 + $0x32] sm:$0xff]
      %v2910 = vld [vmem:[#allocation3 + $0x3a] sm:$0xff]
      %v2911 = vld [vmem:[#allocation3 + $0x4a] sm:$0xff]
      %v2912 = vld [vmem:[#allocation3 + $0x52] sm:$0xff]
      %v2913 = vld [vmem:[#allocation3 + $0x62] sm:$0xff]
      %v2914 = vld [vmem:[#allocation3 + $0x6a] sm:$0xff]
      %v2915 = vld [vmem:[#allocation3 + $0x7a] sm:$0xff]
      %v2916 = vld [vmem:[#allocation3 + $0x82] sm:$0xff]
      %v2917 = vld [vmem:[#allocation3 + $0x92] sm:$0xff]
      %v2918 = vld [vmem:[#allocation3 + $0x9a] sm:$0xff]
      %v2919 = vld [vmem:[#allocation3 + $0xaa] sm:$0xff]
      %v2920 = vld [vmem:[#allocation3 + $0xb2] sm:$0xff]
      %v2921 = vld [vmem:[#allocation3 + $0xc2] sm:$0xff]
      %v2922 = vld [vmem:[#allocation3 + $0xca] sm:$0xff]
      %v2923 = vld [vmem:[#allocation3 + $0xda] sm:$0xff]
      %v2924 = vld [vmem:[#allocation3 + $0xe2] sm:$0xff]
      %v2925 = vld [vmem:[#allocation3 + $0xf2] sm:$0xff]
      %v2926 = vld [vmem:[#allocation3 + $0xfa] sm:$0xff]
      %v2927 = vld [vmem:[#allocation3 + $0x10a] sm:$0xff]
      %v2928 = vld [vmem:[#allocation3 + $0x112] sm:$0xff]
      %v2929 = vld [vmem:[#allocation3 + $0x122] sm:$0xff]
      %v2930 = vld [vmem:[#allocation3 + $0x12a] sm:$0xff]
      %v2931 = vld [vmem:[#allocation3 + $0x13a] sm:$0xff]
      %v2932 = vld [vmem:[#allocation3 + $0x142] sm:$0xff]
      %v2933 = vld [vmem:[#allocation3 + $0x152] sm:$0xff]
      %v2934 = vld [vmem:[#allocation3 + $0x15a] sm:$0xff]
      %v2935 = vld [vmem:[#allocation3 + $0x16a] sm:$0xff]
      %v2936 = vld [vmem:[#allocation3 + $0x172] sm:$0xff]
      %v2937 = vpack.c.bf16 %v2906, %v2905
      %v2938 = vpack.c.bf16 %v2908, %v2907
      %v2939 = vpack.c.bf16 %v2910, %v2909
      %v2940 = vpack.c.bf16 %v2912, %v2911
      %v2941 = vpack.c.bf16 %v2914, %v2913
      %v2942 = vpack.c.bf16 %v2916, %v2915
      %v2943 = vpack.c.bf16 %v2918, %v2917
      %v2944 = vpack.c.bf16 %v2920, %v2919
      %v2945 = vpack.c.bf16 %v2922, %v2921
      %v2946 = vpack.c.bf16 %v2924, %v2923
      %v2947 = vpack.c.bf16 %v2926, %v2925
      %v2948 = vpack.c.bf16 %v2928, %v2927
      %v2949 = vpack.c.bf16 %v2930, %v2929
      %v2950 = vpack.c.bf16 %v2932, %v2931
      %v2951 = vpack.c.bf16 %v2934, %v2933
      %v2952 = vpack.c.bf16 %v2936, %v2935
      %s2953 = scalar_lea.vmem %s4, 8
      %v2954 = vld [vmem:[%s2953] sm:$0xf]
      %v2956 = vsel %vm2300, %v2937, 0
      %v2959 = vsel %vm2300, %v2938, 0
      %v2962 = vsel %vm2300, %v2939, 0
      %v2965 = vsel %vm2300, %v2940, 0
      %v2968 = vsel %vm2300, %v2941, 0
      %v2971 = vsel %vm2300, %v2942, 0
      %v2974 = vsel %vm2300, %v2943, 0
      %v2977 = vsel %vm2300, %v2944, 0
      %v2980 = vsel %vm2300, %v2945, 0
      %v2983 = vsel %vm2300, %v2946, 0
      %v2986 = vsel %vm2300, %v2947, 0
      %v2989 = vsel %vm2300, %v2948, 0
      %v2992 = vsel %vm2300, %v2949, 0
      %v2995 = vsel %vm2300, %v2950, 0
      %v2998 = vsel %vm2300, %v2951, 0
      %v3001 = vsel %vm2300, %v2952, 0
      %v3004 = vsel %vm2528, %v2954, 0
      %3006 = vmatprep.subr.bf16.mxu0 0
      %3007 = vmatpush1.bf16.msra.mxu0 %v3004
      %3008 = vmatprep.subr.bf16.mxu0 0
      %3009 = vmatpush1.bf16.msra.mxu0 0
      %3010 = vmatprep.subr.bf16.mxu0 0
      %3011 = vmatpush1.bf16.msra.mxu0 0
      %3012 = vmatprep.subr.bf16.mxu0 0
      %3013 = vmatpush1.bf16.msra.mxu0 0
      %3014 = vmatprep.subr.bf16.mxu0 0
      %3015 = vmatpush1.bf16.msra.mxu0 0
      %3016 = vmatprep.subr.bf16.mxu0 0
      %3017 = vmatpush1.bf16.msra.mxu0 0
      %3018 = vmatprep.subr.bf16.mxu0 0
      %3019 = vmatpush1.bf16.msra.mxu0 0
      %3020 = vmatprep.subr.bf16.mxu0 0
      %3021 = vmatpush1.bf16.msra.mxu0 0
      %3022 = vmatprep.subr.bf16.mxu0 0
      %3023 = vmatpush1.bf16.msra.mxu0 0
      %3024 = vmatprep.subr.bf16.mxu0 0
      %3025 = vmatpush1.bf16.msra.mxu0 0
      %3026 = vmatprep.subr.bf16.mxu0 0
      %3027 = vmatpush1.bf16.msra.mxu0 0
      %3028 = vmatprep.subr.bf16.mxu0 0
      %3029 = vmatpush1.bf16.msra.mxu0 0
      %3030 = vmatprep.subr.bf16.mxu0 0
      %3031 = vmatpush1.bf16.msra.mxu0 0
      %3032 = vmatprep.subr.bf16.mxu0 0
      %3033 = vmatpush1.bf16.msra.mxu0 0
      %3034 = vmatprep.subr.bf16.mxu0 0
      %3035 = vmatpush1.bf16.msra.mxu0 0
      %3036 = vmatprep.subr.bf16.mxu0 0
      %3037 = vmatpush1.bf16.msra.mxu0 0
      %3038 = vmatprep.mubr.bf16.mxu0 0
      %3039 = vmatmul.mubr.bf16.gmra.mrb[0].mxu0 %v2956
      %v3040 = vpop.f32.mrb[0].mxu0
      %v3041 = vadd.f32 0.0, %v3040
      %v3042 = vpop.f32.mrb[0].mxu0
      %v3043 = vpop.f32.mrb[0].mxu0
      %v3044 = vadd.f32 0.0, %v3043
      %v3045 = vpop.f32.mrb[0].mxu0
      %3046 = vmatprep.mubr.bf16.mxu0 0
      %3047 = vmatmul.mubr.bf16.gmra.mrb[0].mxu0 %v2959
      %v3048 = vpop.f32.mrb[0].mxu0
      %v3049 = vadd.f32 0.0, %v3048
      %v3050 = vpop.f32.mrb[0].mxu0
      %v3051 = vpop.f32.mrb[0].mxu0
      %v3052 = vadd.f32 0.0, %v3051
      %v3053 = vpop.f32.mrb[0].mxu0
      %3054 = vmatprep.mubr.bf16.mxu0 0
      %3055 = vmatmul.mubr.bf16.gmra.mrb[0].mxu0 %v2962
      %v3056 = vpop.f32.mrb[0].mxu0
      %v3057 = vadd.f32 0.0, %v3056
      %v3058 = vpop.f32.mrb[0].mxu0
      %v3059 = vpop.f32.mrb[0].mxu0
      %v3060 = vadd.f32 0.0, %v3059
      %v3061 = vpop.f32.mrb[0].mxu0
      %3062 = vmatprep.mubr.bf16.mxu0 0
      %3063 = vmatmul.mubr.bf16.gmra.mrb[0].mxu0 %v2965
      %v3064 = vpop.f32.mrb[0].mxu0
      %v3065 = vadd.f32 0.0, %v3064
      %v3066 = vpop.f32.mrb[0].mxu0
      %v3067 = vpop.f32.mrb[0].mxu0
      %v3068 = vadd.f32 0.0, %v3067
      %v3069 = vpop.f32.mrb[0].mxu0
      %3070 = vmatprep.mubr.bf16.mxu0 0
      %3071 = vmatmul.mubr.bf16.gmra.mrb[0].mxu0 %v2968
      %v3072 = vpop.f32.mrb[0].mxu0
      %v3073 = vadd.f32 0.0, %v3072
      %v3074 = vpop.f32.mrb[0].mxu0
      %v3075 = vpop.f32.mrb[0].mxu0
      %v3076 = vadd.f32 0.0, %v3075
      %v3077 = vpop.f32.mrb[0].mxu0
      %3078 = vmatprep.mubr.bf16.mxu0 0
      %3079 = vmatmul.mubr.bf16.gmra.mrb[0].mxu0 %v2971
      %v3080 = vpop.f32.mrb[0].mxu0
      %v3081 = vadd.f32 0.0, %v3080
      %v3082 = vpop.f32.mrb[0].mxu0
      %v3083 = vpop.f32.mrb[0].mxu0
      %v3084 = vadd.f32 0.0, %v3083
      %v3085 = vpop.f32.mrb[0].mxu0
      %3086 = vmatprep.mubr.bf16.mxu0 0
      %3087 = vmatmul.mubr.bf16.gmra.mrb[0].mxu0 %v2974
      %v3088 = vpop.f32.mrb[0].mxu0
      %v3089 = vadd.f32 0.0, %v3088
      %v3090 = vpop.f32.mrb[0].mxu0
      %v3091 = vpop.f32.mrb[0].mxu0
      %v3092 = vadd.f32 0.0, %v3091
      %v3093 = vpop.f32.mrb[0].mxu0
      %3094 = vmatprep.mubr.bf16.mxu0 0
      %3095 = vmatmul.mubr.bf16.gmra.mrb[0].mxu0 %v2977
      %v3096 = vpop.f32.mrb[0].mxu0
      %v3097 = vadd.f32 0.0, %v3096
      %v3098 = vpop.f32.mrb[0].mxu0
      %v3099 = vpop.f32.mrb[0].mxu0
      %v3100 = vadd.f32 0.0, %v3099
      %v3101 = vpop.f32.mrb[0].mxu0
      %3102 = vmatprep.mubr.bf16.mxu0 0
      %3103 = vmatmul.mubr.bf16.gmra.mrb[0].mxu0 %v2980
      %v3104 = vpop.f32.mrb[0].mxu0
      %v3105 = vadd.f32 0.0, %v3104
      %v3106 = vpop.f32.mrb[0].mxu0
      %v3107 = vpop.f32.mrb[0].mxu0
      %v3108 = vadd.f32 0.0, %v3107
      %v3109 = vpop.f32.mrb[0].mxu0
      %3110 = vmatprep.mubr.bf16.mxu0 0
      %3111 = vmatmul.mubr.bf16.gmra.mrb[0].mxu0 %v2983
      %v3112 = vpop.f32.mrb[0].mxu0
      %v3113 = vadd.f32 0.0, %v3112
      %v3114 = vpop.f32.mrb[0].mxu0
      %v3115 = vpop.f32.mrb[0].mxu0
      %v3116 = vadd.f32 0.0, %v3115
      %v3117 = vpop.f32.mrb[0].mxu0
      %3118 = vmatprep.mubr.bf16.mxu0 0
      %3119 = vmatmul.mubr.bf16.gmra.mrb[0].mxu0 %v2986
      %v3120 = vpop.f32.mrb[0].mxu0
      %v3121 = vadd.f32 0.0, %v3120
      %v3122 = vpop.f32.mrb[0].mxu0
      %v3123 = vpop.f32.mrb[0].mxu0
      %v3124 = vadd.f32 0.0, %v3123
      %v3125 = vpop.f32.mrb[0].mxu0
      %3126 = vmatprep.mubr.bf16.mxu0 0
      %3127 = vmatmul.mubr.bf16.gmra.mrb[0].mxu0 %v2989
      %v3128 = vpop.f32.mrb[0].mxu0
      %v3129 = vadd.f32 0.0, %v3128
      %v3130 = vpop.f32.mrb[0].mxu0
      %v3131 = vpop.f32.mrb[0].mxu0
      %v3132 = vadd.f32 0.0, %v3131
      %v3133 = vpop.f32.mrb[0].mxu0
      %3134 = vmatprep.mubr.bf16.mxu0 0
      %3135 = vmatmul.mubr.bf16.gmra.mrb[0].mxu0 %v2992
      %v3136 = vpop.f32.mrb[0].mxu0
      %v3137 = vadd.f32 0.0, %v3136
      %v3138 = vpop.f32.mrb[0].mxu0
      %v3139 = vpop.f32.mrb[0].mxu0
      %v3140 = vadd.f32 0.0, %v3139
      %v3141 = vpop.f32.mrb[0].mxu0
      %3142 = vmatprep.mubr.bf16.mxu0 0
      %3143 = vmatmul.mubr.bf16.gmra.mrb[0].mxu0 %v2995
      %v3144 = vpop.f32.mrb[0].mxu0
      %v3145 = vadd.f32 0.0, %v3144
      %v3146 = vpop.f32.mrb[0].mxu0
      %v3147 = vpop.f32.mrb[0].mxu0
      %v3148 = vadd.f32 0.0, %v3147
      %v3149 = vpop.f32.mrb[0].mxu0
      %3150 = vmatprep.mubr.bf16.mxu0 0
      %3151 = vmatmul.mubr.bf16.gmra.mrb[0].mxu0 %v2998
      %v3152 = vpop.f32.mrb[0].mxu0
      %v3153 = vadd.f32 0.0, %v3152
      %v3154 = vpop.f32.mrb[0].mxu0
      %v3155 = vpop.f32.mrb[0].mxu0
      %v3156 = vadd.f32 0.0, %v3155
      %v3157 = vpop.f32.mrb[0].mxu0
      %3158 = vmatprep.mubr.bf16.mxu0 0
      %3159 = vmatmul.mubr.bf16.gmra.mrb[0].mxu0 %v3001
      %v3160 = vpop.f32.mrb[0].mxu0
      %v3161 = vadd.f32 0.0, %v3160
      %v3162 = vpop.f32.mrb[0].mxu0
      %v3163 = vpop.f32.mrb[0].mxu0
      %v3164 = vadd.f32 0.0, %v3163
      %v3165 = vpop.f32.mrb[0].mxu0
      %3166 = vdwg.mxu0
      %v3167 = vadd.f32 %v2779, %v3041
      %v3168 = vadd.f32 %v2782, %v3044
      %v3169 = vadd.f32 %v2787, %v3049
      %v3170 = vadd.f32 %v2790, %v3052
      %v3171 = vadd.f32 %v2795, %v3057
      %v3172 = vadd.f32 %v2798, %v3060
      %v3173 = vadd.f32 %v2803, %v3065
      %v3174 = vadd.f32 %v2806, %v3068
      %v3175 = vadd.f32 %v2811, %v3073
      %v3176 = vadd.f32 %v2814, %v3076
      %v3177 = vadd.f32 %v2819, %v3081
      %v3178 = vadd.f32 %v2822, %v3084
      %v3179 = vadd.f32 %v2827, %v3089
      %v3180 = vadd.f32 %v2830, %v3092
      %v3181 = vadd.f32 %v2835, %v3097
      %v3182 = vadd.f32 %v2838, %v3100
      %v3183 = vadd.f32 %v2843, %v3105
      %v3184 = vadd.f32 %v2846, %v3108
      %v3185 = vadd.f32 %v2851, %v3113
      %v3186 = vadd.f32 %v2854, %v3116
      %v3187 = vadd.f32 %v2859, %v3121
      %v3188 = vadd.f32 %v2862, %v3124
      %v3189 = vadd.f32 %v2867, %v3129
      %v3190 = vadd.f32 %v2870, %v3132
      %v3191 = vadd.f32 %v2875, %v3137
      %v3192 = vadd.f32 %v2878, %v3140
      %v3193 = vadd.f32 %v2883, %v3145
      %v3194 = vadd.f32 %v2886, %v3148
      %v3195 = vadd.f32 %v2891, %v3153
      %v3196 = vadd.f32 %v2894, %v3156
      %v3197 = vadd.f32 %v2899, %v3161
      %v3198 = vadd.f32 %v2902, %v3164
      %v3199 = vld [vmem:[%s2346] sm:$0xff]
      %v3200 = vld [vmem:[%s2346 + $0x8] sm:$0xff]
      %v3201 = vld [vmem:[%s2346 + $0x18] sm:$0xff]
      %v3202 = vld [vmem:[%s2346 + $0x20] sm:$0xff]
      %v3203 = vld [vmem:[%s2346 + $0x30] sm:$0xff]
      %v3204 = vld [vmem:[%s2346 + $0x38] sm:$0xff]
      %v3205 = vld [vmem:[%s2346 + $0x48] sm:$0xff]
      %v3206 = vld [vmem:[%s2346 + $0x50] sm:$0xff]
      %v3207 = vld [vmem:[%s2346 + $0x60] sm:$0xff]
      %v3208 = vld [vmem:[%s2346 + $0x68] sm:$0xff]
      %v3209 = vld [vmem:[%s2346 + $0x78] sm:$0xff]
      %v3210 = vld [vmem:[%s2346 + $0x80] sm:$0xff]
      %v3211 = vld [vmem:[%s2346 + $0x90] sm:$0xff]
      %v3212 = vld [vmem:[%s2346 + $0x98] sm:$0xff]
      %v3213 = vld [vmem:[%s2346 + $0xa8] sm:$0xff]
      %v3214 = vld [vmem:[%s2346 + $0xb0] sm:$0xff]
      %v3215 = vld [vmem:[%s2346 + $0xc0] sm:$0xff]
      %v3216 = vld [vmem:[%s2346 + $0xc8] sm:$0xff]
      %v3217 = vld [vmem:[%s2346 + $0xd8] sm:$0xff]
      %v3218 = vld [vmem:[%s2346 + $0xe0] sm:$0xff]
      %v3219 = vld [vmem:[%s2346 + $0xf0] sm:$0xff]
      %v3220 = vld [vmem:[%s2346 + $0xf8] sm:$0xff]
      %v3221 = vld [vmem:[%s2346 + $0x108] sm:$0xff]
      %v3222 = vld [vmem:[%s2346 + $0x110] sm:$0xff]
      %v3223 = vld [vmem:[%s2346 + $0x120] sm:$0xff]
      %v3224 = vld [vmem:[%s2346 + $0x128] sm:$0xff]
      %v3225 = vld [vmem:[%s2346 + $0x138] sm:$0xff]
      %v3226 = vld [vmem:[%s2346 + $0x140] sm:$0xff]
      %v3227 = vld [vmem:[%s2346 + $0x150] sm:$0xff]
      %v3228 = vld [vmem:[%s2346 + $0x158] sm:$0xff]
      %v3229 = vld [vmem:[%s2346 + $0x168] sm:$0xff]
      %v3230 = vld [vmem:[%s2346 + $0x170] sm:$0xff]
      %v3231 = vpack.c.bf16 %v3200, %v3199
      %v3232 = vpack.c.bf16 %v3202, %v3201
      %v3233 = vpack.c.bf16 %v3204, %v3203
      %v3234 = vpack.c.bf16 %v3206, %v3205
      %v3235 = vpack.c.bf16 %v3208, %v3207
      %v3236 = vpack.c.bf16 %v3210, %v3209
      %v3237 = vpack.c.bf16 %v3212, %v3211
      %v3238 = vpack.c.bf16 %v3214, %v3213
      %v3239 = vpack.c.bf16 %v3216, %v3215
      %v3240 = vpack.c.bf16 %v3218, %v3217
      %v3241 = vpack.c.bf16 %v3220, %v3219
      %v3242 = vpack.c.bf16 %v3222, %v3221
      %v3243 = vpack.c.bf16 %v3224, %v3223
      %v3244 = vpack.c.bf16 %v3226, %v3225
      %v3245 = vpack.c.bf16 %v3228, %v3227
      %v3246 = vpack.c.bf16 %v3230, %v3229
      %s3247 = scalar_lea.vmem %s4, 12
      %v3248 = vld [vmem:[%s3247] sm:$0xf]
      %v3250 = vsel %vm2300, %v3231, 0
      %v3253 = vsel %vm2300, %v3232, 0
      %v3256 = vsel %vm2300, %v3233, 0
      %v3259 = vsel %vm2300, %v3234, 0
      %v3262 = vsel %vm2300, %v3235, 0
      %v3265 = vsel %vm2300, %v3236, 0
      %v3268 = vsel %vm2300, %v3237, 0
      %v3271 = vsel %vm2300, %v3238, 0
      %v3274 = vsel %vm2300, %v3239, 0
      %v3277 = vsel %vm2300, %v3240, 0
      %v3280 = vsel %vm2300, %v3241, 0
      %v3283 = vsel %vm2300, %v3242, 0
      %v3286 = vsel %vm2300, %v3243, 0
      %v3289 = vsel %vm2300, %v3244, 0
      %v3292 = vsel %vm2300, %v3245, 0
      %v3295 = vsel %vm2300, %v3246, 0
      %v3298 = vsel %vm2528, %v3248, 0
      %3300 = vmatprep.subr.bf16.mxu0 0
      %3301 = vmatpush1.bf16.msra.mxu0 %v3298
      %3302 = vmatprep.subr.bf16.mxu0 0
      %3303 = vmatpush1.bf16.msra.mxu0 0
      %3304 = vmatprep.subr.bf16.mxu0 0
      %3305 = vmatpush1.bf16.msra.mxu0 0
      %3306 = vmatprep.subr.bf16.mxu0 0
      %3307 = vmatpush1.bf16.msra.mxu0 0
      %3308 = vmatprep.subr.bf16.mxu0 0
      %3309 = vmatpush1.bf16.msra.mxu0 0
      %3310 = vmatprep.subr.bf16.mxu0 0
      %3311 = vmatpush1.bf16.msra.mxu0 0
      %3312 = vmatprep.subr.bf16.mxu0 0
      %3313 = vmatpush1.bf16.msra.mxu0 0
      %3314 = vmatprep.subr.bf16.mxu0 0
      %3315 = vmatpush1.bf16.msra.mxu0 0
      %3316 = vmatprep.subr.bf16.mxu0 0
      %3317 = vmatpush1.bf16.msra.mxu0 0
      %3318 = vmatprep.subr.bf16.mxu0 0
      %3319 = vmatpush1.bf16.msra.mxu0 0
      %3320 = vmatprep.subr.bf16.mxu0 0
      %3321 = vmatpush1.bf16.msra.mxu0 0
      %3322 = vmatprep.subr.bf16.mxu0 0
      %3323 = vmatpush1.bf16.msra.mxu0 0
      %3324 = vmatprep.subr.bf16.mxu0 0
      %3325 = vmatpush1.bf16.msra.mxu0 0
      %3326 = vmatprep.subr.bf16.mxu0 0
      %3327 = vmatpush1.bf16.msra.mxu0 0
      %3328 = vmatprep.subr.bf16.mxu0 0
      %3329 = vmatpush1.bf16.msra.mxu0 0
      %3330 = vmatprep.subr.bf16.mxu0 0
      %3331 = vmatpush1.bf16.msra.mxu0 0
      %3332 = vmatprep.mubr.bf16.mxu0 0
      %3333 = vmatmul.mubr.bf16.gmra.mrb[0].mxu0 %v3250
      %v3334 = vpop.f32.mrb[0].mxu0
      %v3335 = vadd.f32 0.0, %v3334
      %v3336 = vpop.f32.mrb[0].mxu0
      %v3337 = vpop.f32.mrb[0].mxu0
      %v3338 = vadd.f32 0.0, %v3337
      %v3339 = vpop.f32.mrb[0].mxu0
      %3340 = vmatprep.mubr.bf16.mxu0 0
      %3341 = vmatmul.mubr.bf16.gmra.mrb[0].mxu0 %v3253
      %v3342 = vpop.f32.mrb[0].mxu0
      %v3343 = vadd.f32 0.0, %v3342
      %v3344 = vpop.f32.mrb[0].mxu0
      %v3345 = vpop.f32.mrb[0].mxu0
      %v3346 = vadd.f32 0.0, %v3345
      %v3347 = vpop.f32.mrb[0].mxu0
      %3348 = vmatprep.mubr.bf16.mxu0 0
      %3349 = vmatmul.mubr.bf16.gmra.mrb[0].mxu0 %v3256
      %v3350 = vpop.f32.mrb[0].mxu0
      %v3351 = vadd.f32 0.0, %v3350
      %v3352 = vpop.f32.mrb[0].mxu0
      %v3353 = vpop.f32.mrb[0].mxu0
      %v3354 = vadd.f32 0.0, %v3353
      %v3355 = vpop.f32.mrb[0].mxu0
      %3356 = vmatprep.mubr.bf16.mxu0 0
      %3357 = vmatmul.mubr.bf16.gmra.mrb[0].mxu0 %v3259
      %v3358 = vpop.f32.mrb[0].mxu0
      %v3359 = vadd.f32 0.0, %v3358
      %v3360 = vpop.f32.mrb[0].mxu0
      %v3361 = vpop.f32.mrb[0].mxu0
      %v3362 = vadd.f32 0.0, %v3361
      %v3363 = vpop.f32.mrb[0].mxu0
      %3364 = vmatprep.mubr.bf16.mxu0 0
      %3365 = vmatmul.mubr.bf16.gmra.mrb[0].mxu0 %v3262
      %v3366 = vpop.f32.mrb[0].mxu0
      %v3367 = vadd.f32 0.0, %v3366
      %v3368 = vpop.f32.mrb[0].mxu0
      %v3369 = vpop.f32.mrb[0].mxu0
      %v3370 = vadd.f32 0.0, %v3369
      %v3371 = vpop.f32.mrb[0].mxu0
      %3372 = vmatprep.mubr.bf16.mxu0 0
      %3373 = vmatmul.mubr.bf16.gmra.mrb[0].mxu0 %v3265
      %v3374 = vpop.f32.mrb[0].mxu0
      %v3375 = vadd.f32 0.0, %v3374
      %v3376 = vpop.f32.mrb[0].mxu0
      %v3377 = vpop.f32.mrb[0].mxu0
      %v3378 = vadd.f32 0.0, %v3377
      %v3379 = vpop.f32.mrb[0].mxu0
      %3380 = vmatprep.mubr.bf16.mxu0 0
      %3381 = vmatmul.mubr.bf16.gmra.mrb[0].mxu0 %v3268
      %v3382 = vpop.f32.mrb[0].mxu0
      %v3383 = vadd.f32 0.0, %v3382
      %v3384 = vpop.f32.mrb[0].mxu0
      %v3385 = vpop.f32.mrb[0].mxu0
      %v3386 = vadd.f32 0.0, %v3385
      %v3387 = vpop.f32.mrb[0].mxu0
      %3388 = vmatprep.mubr.bf16.mxu0 0
      %3389 = vmatmul.mubr.bf16.gmra.mrb[0].mxu0 %v3271
      %v3390 = vpop.f32.mrb[0].mxu0
      %v3391 = vadd.f32 0.0, %v3390
      %v3392 = vpop.f32.mrb[0].mxu0
      %v3393 = vpop.f32.mrb[0].mxu0
      %v3394 = vadd.f32 0.0, %v3393
      %v3395 = vpop.f32.mrb[0].mxu0
      %3396 = vmatprep.mubr.bf16.mxu0 0
      %3397 = vmatmul.mubr.bf16.gmra.mrb[0].mxu0 %v3274
      %v3398 = vpop.f32.mrb[0].mxu0
      %v3399 = vadd.f32 0.0, %v3398
      %v3400 = vpop.f32.mrb[0].mxu0
      %v3401 = vpop.f32.mrb[0].mxu0
      %v3402 = vadd.f32 0.0, %v3401
      %v3403 = vpop.f32.mrb[0].mxu0
      %3404 = vmatprep.mubr.bf16.mxu0 0
      %3405 = vmatmul.mubr.bf16.gmra.mrb[0].mxu0 %v3277
      %v3406 = vpop.f32.mrb[0].mxu0
      %v3407 = vadd.f32 0.0, %v3406
      %v3408 = vpop.f32.mrb[0].mxu0
      %v3409 = vpop.f32.mrb[0].mxu0
      %v3410 = vadd.f32 0.0, %v3409
      %v3411 = vpop.f32.mrb[0].mxu0
      %3412 = vmatprep.mubr.bf16.mxu0 0
      %3413 = vmatmul.mubr.bf16.gmra.mrb[0].mxu0 %v3280
      %v3414 = vpop.f32.mrb[0].mxu0
      %v3415 = vadd.f32 0.0, %v3414
      %v3416 = vpop.f32.mrb[0].mxu0
      %v3417 = vpop.f32.mrb[0].mxu0
      %v3418 = vadd.f32 0.0, %v3417
      %v3419 = vpop.f32.mrb[0].mxu0
      %3420 = vmatprep.mubr.bf16.mxu0 0
      %3421 = vmatmul.mubr.bf16.gmra.mrb[0].mxu0 %v3283
      %v3422 = vpop.f32.mrb[0].mxu0
      %v3423 = vadd.f32 0.0, %v3422
      %v3424 = vpop.f32.mrb[0].mxu0
      %v3425 = vpop.f32.mrb[0].mxu0
      %v3426 = vadd.f32 0.0, %v3425
      %v3427 = vpop.f32.mrb[0].mxu0
      %3428 = vmatprep.mubr.bf16.mxu0 0
      %3429 = vmatmul.mubr.bf16.gmra.mrb[0].mxu0 %v3286
      %v3430 = vpop.f32.mrb[0].mxu0
      %v3431 = vadd.f32 0.0, %v3430
      %v3432 = vpop.f32.mrb[0].mxu0
      %v3433 = vpop.f32.mrb[0].mxu0
      %v3434 = vadd.f32 0.0, %v3433
      %v3435 = vpop.f32.mrb[0].mxu0
      %3436 = vmatprep.mubr.bf16.mxu0 0
      %3437 = vmatmul.mubr.bf16.gmra.mrb[0].mxu0 %v3289
      %v3438 = vpop.f32.mrb[0].mxu0
      %v3439 = vadd.f32 0.0, %v3438
      %v3440 = vpop.f32.mrb[0].mxu0
      %v3441 = vpop.f32.mrb[0].mxu0
      %v3442 = vadd.f32 0.0, %v3441
      %v3443 = vpop.f32.mrb[0].mxu0
      %3444 = vmatprep.mubr.bf16.mxu0 0
      %3445 = vmatmul.mubr.bf16.gmra.mrb[0].mxu0 %v3292
      %v3446 = vpop.f32.mrb[0].mxu0
      %v3447 = vadd.f32 0.0, %v3446
      %v3448 = vpop.f32.mrb[0].mxu0
      %v3449 = vpop.f32.mrb[0].mxu0
      %v3450 = vadd.f32 0.0, %v3449
      %v3451 = vpop.f32.mrb[0].mxu0
      %3452 = vmatprep.mubr.bf16.mxu0 0
      %3453 = vmatmul.mubr.bf16.gmra.mrb[0].mxu0 %v3295
      %v3454 = vpop.f32.mrb[0].mxu0
      %v3455 = vadd.f32 0.0, %v3454
      %v3456 = vpop.f32.mrb[0].mxu0
      %v3457 = vpop.f32.mrb[0].mxu0
      %v3458 = vadd.f32 0.0, %v3457
      %v3459 = vpop.f32.mrb[0].mxu0
      %3460 = vdwg.mxu0
      %v3461 = vadd.f32 %v3167, %v3335
      %v3462 = vadd.f32 %v3168, %v3338
      %v3463 = vadd.f32 %v3169, %v3343
      %v3464 = vadd.f32 %v3170, %v3346
      %v3465 = vadd.f32 %v3171, %v3351
      %v3466 = vadd.f32 %v3172, %v3354
      %v3467 = vadd.f32 %v3173, %v3359
      %v3468 = vadd.f32 %v3174, %v3362
      %v3469 = vadd.f32 %v3175, %v3367
      %v3470 = vadd.f32 %v3176, %v3370
      %v3471 = vadd.f32 %v3177, %v3375
      %v3472 = vadd.f32 %v3178, %v3378
      %v3473 = vadd.f32 %v3179, %v3383
      %v3474 = vadd.f32 %v3180, %v3386
      %v3475 = vadd.f32 %v3181, %v3391
      %v3476 = vadd.f32 %v3182, %v3394
      %v3477 = vadd.f32 %v3183, %v3399
      %v3478 = vadd.f32 %v3184, %v3402
      %v3479 = vadd.f32 %v3185, %v3407
      %v3480 = vadd.f32 %v3186, %v3410
      %v3481 = vadd.f32 %v3187, %v3415
      %v3482 = vadd.f32 %v3188, %v3418
      %v3483 = vadd.f32 %v3189, %v3423
      %v3484 = vadd.f32 %v3190, %v3426
      %v3485 = vadd.f32 %v3191, %v3431
      %v3486 = vadd.f32 %v3192, %v3434
      %v3487 = vadd.f32 %v3193, %v3439
      %v3488 = vadd.f32 %v3194, %v3442
      %v3489 = vadd.f32 %v3195, %v3447
      %v3490 = vadd.f32 %v3196, %v3450
      %v3491 = vadd.f32 %v3197, %v3455
      %v3492 = vadd.f32 %v3198, %v3458
      %v3493 = vld [vmem:[%s2346 + $0x1] sm:$0xff]
      %v3494 = vld [vmem:[%s2346 + $0x9] sm:$0xff]
      %v3495 = vld [vmem:[%s2346 + $0x19] sm:$0xff]
      %v3496 = vld [vmem:[%s2346 + $0x21] sm:$0xff]
      %v3497 = vld [vmem:[%s2346 + $0x31] sm:$0xff]
      %v3498 = vld [vmem:[%s2346 + $0x39] sm:$0xff]
      %v3499 = vld [vmem:[%s2346 + $0x49] sm:$0xff]
      %v3500 = vld [vmem:[%s2346 + $0x51] sm:$0xff]
      %v3501 = vld [vmem:[%s2346 + $0x61] sm:$0xff]
      %v3502 = vld [vmem:[%s2346 + $0x69] sm:$0xff]
      %v3503 = vld [vmem:[%s2346 + $0x79] sm:$0xff]
      %v3504 = vld [vmem:[%s2346 + $0x81] sm:$0xff]
      %v3505 = vld [vmem:[%s2346 + $0x91] sm:$0xff]
      %v3506 = vld [vmem:[%s2346 + $0x99] sm:$0xff]
      %v3507 = vld [vmem:[%s2346 + $0xa9] sm:$0xff]
      %v3508 = vld [vmem:[%s2346 + $0xb1] sm:$0xff]
      %v3509 = vld [vmem:[%s2346 + $0xc1] sm:$0xff]
      %v3510 = vld [vmem:[%s2346 + $0xc9] sm:$0xff]
      %v3511 = vld [vmem:[%s2346 + $0xd9] sm:$0xff]
      %v3512 = vld [vmem:[%s2346 + $0xe1] sm:$0xff]
      %v3513 = vld [vmem:[%s2346 + $0xf1] sm:$0xff]
      %v3514 = vld [vmem:[%s2346 + $0xf9] sm:$0xff]
      %v3515 = vld [vmem:[%s2346 + $0x109] sm:$0xff]
      %v3516 = vld [vmem:[%s2346 + $0x111] sm:$0xff]
      %v3517 = vld [vmem:[%s2346 + $0x121] sm:$0xff]
      %v3518 = vld [vmem:[%s2346 + $0x129] sm:$0xff]
      %v3519 = vld [vmem:[%s2346 + $0x139] sm:$0xff]
      %v3520 = vld [vmem:[%s2346 + $0x141] sm:$0xff]
      %v3521 = vld [vmem:[%s2346 + $0x151] sm:$0xff]
      %v3522 = vld [vmem:[%s2346 + $0x159] sm:$0xff]
      %v3523 = vld [vmem:[%s2346 + $0x169] sm:$0xff]
      %v3524 = vld [vmem:[%s2346 + $0x171] sm:$0xff]
      %v3525 = vpack.c.bf16 %v3494, %v3493
      %v3526 = vpack.c.bf16 %v3496, %v3495
      %v3527 = vpack.c.bf16 %v3498, %v3497
      %v3528 = vpack.c.bf16 %v3500, %v3499
      %v3529 = vpack.c.bf16 %v3502, %v3501
      %v3530 = vpack.c.bf16 %v3504, %v3503
      %v3531 = vpack.c.bf16 %v3506, %v3505
      %v3532 = vpack.c.bf16 %v3508, %v3507
      %v3533 = vpack.c.bf16 %v3510, %v3509
      %v3534 = vpack.c.bf16 %v3512, %v3511
      %v3535 = vpack.c.bf16 %v3514, %v3513
      %v3536 = vpack.c.bf16 %v3516, %v3515
      %v3537 = vpack.c.bf16 %v3518, %v3517
      %v3538 = vpack.c.bf16 %v3520, %v3519
      %v3539 = vpack.c.bf16 %v3522, %v3521
      %v3540 = vpack.c.bf16 %v3524, %v3523
      %s3541 = scalar_lea.vmem %s4, 16
      %v3542 = vld [vmem:[%s3541] sm:$0xf]
      %v3544 = vsel %vm2300, %v3525, 0
      %v3547 = vsel %vm2300, %v3526, 0
      %v3550 = vsel %vm2300, %v3527, 0
      %v3553 = vsel %vm2300, %v3528, 0
      %v3556 = vsel %vm2300, %v3529, 0
      %v3559 = vsel %vm2300, %v3530, 0
      %v3562 = vsel %vm2300, %v3531, 0
      %v3565 = vsel %vm2300, %v3532, 0
      %v3568 = vsel %vm2300, %v3533, 0
      %v3571 = vsel %vm2300, %v3534, 0
      %v3574 = vsel %vm2300, %v3535, 0
      %v3577 = vsel %vm2300, %v3536, 0
      %v3580 = vsel %vm2300, %v3537, 0
      %v3583 = vsel %vm2300, %v3538, 0
      %v3586 = vsel %vm2300, %v3539, 0
      %v3589 = vsel %vm2300, %v3540, 0
      %v3592 = vsel %vm2528, %v3542, 0
      %3594 = vmatprep.subr.bf16.mxu0 0
      %3595 = vmatpush1.bf16.msra.mxu0 %v3592
      %3596 = vmatprep.subr.bf16.mxu0 0
      %3597 = vmatpush1.bf16.msra.mxu0 0
      %3598 = vmatprep.subr.bf16.mxu0 0
      %3599 = vmatpush1.bf16.msra.mxu0 0
      %3600 = vmatprep.subr.bf16.mxu0 0
      %3601 = vmatpush1.bf16.msra.mxu0 0
      %3602 = vmatprep.subr.bf16.mxu0 0
      %3603 = vmatpush1.bf16.msra.mxu0 0
      %3604 = vmatprep.subr.bf16.mxu0 0
      %3605 = vmatpush1.bf16.msra.mxu0 0
      %3606 = vmatprep.subr.bf16.mxu0 0
      %3607 = vmatpush1.bf16.msra.mxu0 0
      %3608 = vmatprep.subr.bf16.mxu0 0
      %3609 = vmatpush1.bf16.msra.mxu0 0
      %3610 = vmatprep.subr.bf16.mxu0 0
      %3611 = vmatpush1.bf16.msra.mxu0 0
      %3612 = vmatprep.subr.bf16.mxu0 0
      %3613 = vmatpush1.bf16.msra.mxu0 0
      %3614 = vmatprep.subr.bf16.mxu0 0
      %3615 = vmatpush1.bf16.msra.mxu0 0
      %3616 = vmatprep.subr.bf16.mxu0 0
      %3617 = vmatpush1.bf16.msra.mxu0 0
      %3618 = vmatprep.subr.bf16.mxu0 0
      %3619 = vmatpush1.bf16.msra.mxu0 0
      %3620 = vmatprep.subr.bf16.mxu0 0
      %3621 = vmatpush1.bf16.msra.mxu0 0
      %3622 = vmatprep.subr.bf16.mxu0 0
      %3623 = vmatpush1.bf16.msra.mxu0 0
      %3624 = vmatprep.subr.bf16.mxu0 0
      %3625 = vmatpush1.bf16.msra.mxu0 0
      %3626 = vmatprep.mubr.bf16.mxu0 0
      %3627 = vmatmul.mubr.bf16.gmra.mrb[0].mxu0 %v3544
      %v3628 = vpop.f32.mrb[0].mxu0
      %v3629 = vadd.f32 0.0, %v3628
      %v3630 = vpop.f32.mrb[0].mxu0
      %v3631 = vpop.f32.mrb[0].mxu0
      %v3632 = vadd.f32 0.0, %v3631
      %v3633 = vpop.f32.mrb[0].mxu0
      %3634 = vmatprep.mubr.bf16.mxu0 0
      %3635 = vmatmul.mubr.bf16.gmra.mrb[0].mxu0 %v3547
      %v3636 = vpop.f32.mrb[0].mxu0
      %v3637 = vadd.f32 0.0, %v3636
      %v3638 = vpop.f32.mrb[0].mxu0
      %v3639 = vpop.f32.mrb[0].mxu0
      %v3640 = vadd.f32 0.0, %v3639
      %v3641 = vpop.f32.mrb[0].mxu0
      %3642 = vmatprep.mubr.bf16.mxu0 0
      %3643 = vmatmul.mubr.bf16.gmra.mrb[0].mxu0 %v3550
      %v3644 = vpop.f32.mrb[0].mxu0
      %v3645 = vadd.f32 0.0, %v3644
      %v3646 = vpop.f32.mrb[0].mxu0
      %v3647 = vpop.f32.mrb[0].mxu0
      %v3648 = vadd.f32 0.0, %v3647
      %v3649 = vpop.f32.mrb[0].mxu0
      %3650 = vmatprep.mubr.bf16.mxu0 0
      %3651 = vmatmul.mubr.bf16.gmra.mrb[0].mxu0 %v3553
      %v3652 = vpop.f32.mrb[0].mxu0
      %v3653 = vadd.f32 0.0, %v3652
      %v3654 = vpop.f32.mrb[0].mxu0
      %v3655 = vpop.f32.mrb[0].mxu0
      %v3656 = vadd.f32 0.0, %v3655
      %v3657 = vpop.f32.mrb[0].mxu0
      %3658 = vmatprep.mubr.bf16.mxu0 0
      %3659 = vmatmul.mubr.bf16.gmra.mrb[0].mxu0 %v3556
      %v3660 = vpop.f32.mrb[0].mxu0
      %v3661 = vadd.f32 0.0, %v3660
      %v3662 = vpop.f32.mrb[0].mxu0
      %v3663 = vpop.f32.mrb[0].mxu0
      %v3664 = vadd.f32 0.0, %v3663
      %v3665 = vpop.f32.mrb[0].mxu0
      %3666 = vmatprep.mubr.bf16.mxu0 0
      %3667 = vmatmul.mubr.bf16.gmra.mrb[0].mxu0 %v3559
      %v3668 = vpop.f32.mrb[0].mxu0
      %v3669 = vadd.f32 0.0, %v3668
      %v3670 = vpop.f32.mrb[0].mxu0
      %v3671 = vpop.f32.mrb[0].mxu0
      %v3672 = vadd.f32 0.0, %v3671
      %v3673 = vpop.f32.mrb[0].mxu0
      %3674 = vmatprep.mubr.bf16.mxu0 0
      %3675 = vmatmul.mubr.bf16.gmra.mrb[0].mxu0 %v3562
      %v3676 = vpop.f32.mrb[0].mxu0
      %v3677 = vadd.f32 0.0, %v3676
      %v3678 = vpop.f32.mrb[0].mxu0
      %v3679 = vpop.f32.mrb[0].mxu0
      %v3680 = vadd.f32 0.0, %v3679
      %v3681 = vpop.f32.mrb[0].mxu0
      %3682 = vmatprep.mubr.bf16.mxu0 0
      %3683 = vmatmul.mubr.bf16.gmra.mrb[0].mxu0 %v3565
      %v3684 = vpop.f32.mrb[0].mxu0
      %v3685 = vadd.f32 0.0, %v3684
      %v3686 = vpop.f32.mrb[0].mxu0
      %v3687 = vpop.f32.mrb[0].mxu0
      %v3688 = vadd.f32 0.0, %v3687
      %v3689 = vpop.f32.mrb[0].mxu0
      %3690 = vmatprep.mubr.bf16.mxu0 0
      %3691 = vmatmul.mubr.bf16.gmra.mrb[0].mxu0 %v3568
      %v3692 = vpop.f32.mrb[0].mxu0
      %v3693 = vadd.f32 0.0, %v3692
      %v3694 = vpop.f32.mrb[0].mxu0
      %v3695 = vpop.f32.mrb[0].mxu0
      %v3696 = vadd.f32 0.0, %v3695
      %v3697 = vpop.f32.mrb[0].mxu0
      %3698 = vmatprep.mubr.bf16.mxu0 0
      %3699 = vmatmul.mubr.bf16.gmra.mrb[0].mxu0 %v3571
      %v3700 = vpop.f32.mrb[0].mxu0
      %v3701 = vadd.f32 0.0, %v3700
      %v3702 = vpop.f32.mrb[0].mxu0
      %v3703 = vpop.f32.mrb[0].mxu0
      %v3704 = vadd.f32 0.0, %v3703
      %v3705 = vpop.f32.mrb[0].mxu0
      %3706 = vmatprep.mubr.bf16.mxu0 0
      %3707 = vmatmul.mubr.bf16.gmra.mrb[0].mxu0 %v3574
      %v3708 = vpop.f32.mrb[0].mxu0
      %v3709 = vadd.f32 0.0, %v3708
      %v3710 = vpop.f32.mrb[0].mxu0
      %v3711 = vpop.f32.mrb[0].mxu0
      %v3712 = vadd.f32 0.0, %v3711
      %v3713 = vpop.f32.mrb[0].mxu0
      %3714 = vmatprep.mubr.bf16.mxu0 0
      %3715 = vmatmul.mubr.bf16.gmra.mrb[0].mxu0 %v3577
      %v3716 = vpop.f32.mrb[0].mxu0
      %v3717 = vadd.f32 0.0, %v3716
      %v3718 = vpop.f32.mrb[0].mxu0
      %v3719 = vpop.f32.mrb[0].mxu0
      %v3720 = vadd.f32 0.0, %v3719
      %v3721 = vpop.f32.mrb[0].mxu0
      %3722 = vmatprep.mubr.bf16.mxu0 0
      %3723 = vmatmul.mubr.bf16.gmra.mrb[0].mxu0 %v3580
      %v3724 = vpop.f32.mrb[0].mxu0
      %v3725 = vadd.f32 0.0, %v3724
      %v3726 = vpop.f32.mrb[0].mxu0
      %v3727 = vpop.f32.mrb[0].mxu0
      %v3728 = vadd.f32 0.0, %v3727
      %v3729 = vpop.f32.mrb[0].mxu0
      %3730 = vmatprep.mubr.bf16.mxu0 0
      %3731 = vmatmul.mubr.bf16.gmra.mrb[0].mxu0 %v3583
      %v3732 = vpop.f32.mrb[0].mxu0
      %v3733 = vadd.f32 0.0, %v3732
      %v3734 = vpop.f32.mrb[0].mxu0
      %v3735 = vpop.f32.mrb[0].mxu0
      %v3736 = vadd.f32 0.0, %v3735
      %v3737 = vpop.f32.mrb[0].mxu0
      %3738 = vmatprep.mubr.bf16.mxu0 0
      %3739 = vmatmul.mubr.bf16.gmra.mrb[0].mxu0 %v3586
      %v3740 = vpop.f32.mrb[0].mxu0
      %v3741 = vadd.f32 0.0, %v3740
      %v3742 = vpop.f32.mrb[0].mxu0
      %v3743 = vpop.f32.mrb[0].mxu0
      %v3744 = vadd.f32 0.0, %v3743
      %v3745 = vpop.f32.mrb[0].mxu0
      %3746 = vmatprep.mubr.bf16.mxu0 0
      %3747 = vmatmul.mubr.bf16.gmra.mrb[0].mxu0 %v3589
      %v3748 = vpop.f32.mrb[0].mxu0
      %v3749 = vadd.f32 0.0, %v3748
      %v3750 = vpop.f32.mrb[0].mxu0
      %v3751 = vpop.f32.mrb[0].mxu0
      %v3752 = vadd.f32 0.0, %v3751
      %v3753 = vpop.f32.mrb[0].mxu0
      %3754 = vdwg.mxu0
      %v3755 = vadd.f32 %v3461, %v3629
      %v3756 = vadd.f32 %v3462, %v3632
      %v3757 = vadd.f32 %v3463, %v3637
      %v3758 = vadd.f32 %v3464, %v3640
      %v3759 = vadd.f32 %v3465, %v3645
      %v3760 = vadd.f32 %v3466, %v3648
      %v3761 = vadd.f32 %v3467, %v3653
      %v3762 = vadd.f32 %v3468, %v3656
      %v3763 = vadd.f32 %v3469, %v3661
      %v3764 = vadd.f32 %v3470, %v3664
      %v3765 = vadd.f32 %v3471, %v3669
      %v3766 = vadd.f32 %v3472, %v3672
      %v3767 = vadd.f32 %v3473, %v3677
      %v3768 = vadd.f32 %v3474, %v3680
      %v3769 = vadd.f32 %v3475, %v3685
      %v3770 = vadd.f32 %v3476, %v3688
      %v3771 = vadd.f32 %v3477, %v3693
      %v3772 = vadd.f32 %v3478, %v3696
      %v3773 = vadd.f32 %v3479, %v3701
      %v3774 = vadd.f32 %v3480, %v3704
      %v3775 = vadd.f32 %v3481, %v3709
      %v3776 = vadd.f32 %v3482, %v3712
      %v3777 = vadd.f32 %v3483, %v3717
      %v3778 = vadd.f32 %v3484, %v3720
      %v3779 = vadd.f32 %v3485, %v3725
      %v3780 = vadd.f32 %v3486, %v3728
      %v3781 = vadd.f32 %v3487, %v3733
      %v3782 = vadd.f32 %v3488, %v3736
      %v3783 = vadd.f32 %v3489, %v3741
      %v3784 = vadd.f32 %v3490, %v3744
      %v3785 = vadd.f32 %v3491, %v3749
      %v3786 = vadd.f32 %v3492, %v3752
      %v3787 = vld [vmem:[%s2346 + $0x2] sm:$0xff]
      %v3788 = vld [vmem:[%s2346 + $0xa] sm:$0xff]
      %v3789 = vld [vmem:[%s2346 + $0x1a] sm:$0xff]
      %v3790 = vld [vmem:[%s2346 + $0x22] sm:$0xff]
      %v3791 = vld [vmem:[%s2346 + $0x32] sm:$0xff]
      %v3792 = vld [vmem:[%s2346 + $0x3a] sm:$0xff]
      %v3793 = vld [vmem:[%s2346 + $0x4a] sm:$0xff]
      %v3794 = vld [vmem:[%s2346 + $0x52] sm:$0xff]
      %v3795 = vld [vmem:[%s2346 + $0x62] sm:$0xff]
      %v3796 = vld [vmem:[%s2346 + $0x6a] sm:$0xff]
      %v3797 = vld [vmem:[%s2346 + $0x7a] sm:$0xff]
      %v3798 = vld [vmem:[%s2346 + $0x82] sm:$0xff]
      %v3799 = vld [vmem:[%s2346 + $0x92] sm:$0xff]
      %v3800 = vld [vmem:[%s2346 + $0x9a] sm:$0xff]
      %v3801 = vld [vmem:[%s2346 + $0xaa] sm:$0xff]
      %v3802 = vld [vmem:[%s2346 + $0xb2] sm:$0xff]
      %v3803 = vld [vmem:[%s2346 + $0xc2] sm:$0xff]
      %v3804 = vld [vmem:[%s2346 + $0xca] sm:$0xff]
      %v3805 = vld [vmem:[%s2346 + $0xda] sm:$0xff]
      %v3806 = vld [vmem:[%s2346 + $0xe2] sm:$0xff]
      %v3807 = vld [vmem:[%s2346 + $0xf2] sm:$0xff]
      %v3808 = vld [vmem:[%s2346 + $0xfa] sm:$0xff]
      %v3809 = vld [vmem:[%s2346 + $0x10a] sm:$0xff]
      %v3810 = vld [vmem:[%s2346 + $0x112] sm:$0xff]
      %v3811 = vld [vmem:[%s2346 + $0x122] sm:$0xff]
      %v3812 = vld [vmem:[%s2346 + $0x12a] sm:$0xff]
      %v3813 = vld [vmem:[%s2346 + $0x13a] sm:$0xff]
      %v3814 = vld [vmem:[%s2346 + $0x142] sm:$0xff]
      %v3815 = vld [vmem:[%s2346 + $0x152] sm:$0xff]
      %v3816 = vld [vmem:[%s2346 + $0x15a] sm:$0xff]
      %v3817 = vld [vmem:[%s2346 + $0x16a] sm:$0xff]
      %v3818 = vld [vmem:[%s2346 + $0x172] sm:$0xff]
      %v3819 = vpack.c.bf16 %v3788, %v3787
      %v3820 = vpack.c.bf16 %v3790, %v3789
      %v3821 = vpack.c.bf16 %v3792, %v3791
      %v3822 = vpack.c.bf16 %v3794, %v3793
      %v3823 = vpack.c.bf16 %v3796, %v3795
      %v3824 = vpack.c.bf16 %v3798, %v3797
      %v3825 = vpack.c.bf16 %v3800, %v3799
      %v3826 = vpack.c.bf16 %v3802, %v3801
      %v3827 = vpack.c.bf16 %v3804, %v3803
      %v3828 = vpack.c.bf16 %v3806, %v3805
      %v3829 = vpack.c.bf16 %v3808, %v3807
      %v3830 = vpack.c.bf16 %v3810, %v3809
      %v3831 = vpack.c.bf16 %v3812, %v3811
      %v3832 = vpack.c.bf16 %v3814, %v3813
      %v3833 = vpack.c.bf16 %v3816, %v3815
      %v3834 = vpack.c.bf16 %v3818, %v3817
      %s3835 = scalar_lea.vmem %s4, 20
      %v3836 = vld [vmem:[%s3835] sm:$0xf]
      %v3838 = vsel %vm2300, %v3819, 0
      %v3841 = vsel %vm2300, %v3820, 0
      %v3844 = vsel %vm2300, %v3821, 0
      %v3847 = vsel %vm2300, %v3822, 0
      %v3850 = vsel %vm2300, %v3823, 0
      %v3853 = vsel %vm2300, %v3824, 0
      %v3856 = vsel %vm2300, %v3825, 0
      %v3859 = vsel %vm2300, %v3826, 0
      %v3862 = vsel %vm2300, %v3827, 0
      %v3865 = vsel %vm2300, %v3828, 0
      %v3868 = vsel %vm2300, %v3829, 0
      %v3871 = vsel %vm2300, %v3830, 0
      %v3874 = vsel %vm2300, %v3831, 0
      %v3877 = vsel %vm2300, %v3832, 0
      %v3880 = vsel %vm2300, %v3833, 0
      %v3883 = vsel %vm2300, %v3834, 0
      %v3886 = vsel %vm2528, %v3836, 0
      %3888 = vmatprep.subr.bf16.mxu0 0
      %3889 = vmatpush1.bf16.msra.mxu0 %v3886
      %3890 = vmatprep.subr.bf16.mxu0 0
      %3891 = vmatpush1.bf16.msra.mxu0 0
      %3892 = vmatprep.subr.bf16.mxu0 0
      %3893 = vmatpush1.bf16.msra.mxu0 0
      %3894 = vmatprep.subr.bf16.mxu0 0
      %3895 = vmatpush1.bf16.msra.mxu0 0
      %3896 = vmatprep.subr.bf16.mxu0 0
      %3897 = vmatpush1.bf16.msra.mxu0 0
      %3898 = vmatprep.subr.bf16.mxu0 0
      %3899 = vmatpush1.bf16.msra.mxu0 0
      %3900 = vmatprep.subr.bf16.mxu0 0
      %3901 = vmatpush1.bf16.msra.mxu0 0
      %3902 = vmatprep.subr.bf16.mxu0 0
      %3903 = vmatpush1.bf16.msra.mxu0 0
      %3904 = vmatprep.subr.bf16.mxu0 0
      %3905 = vmatpush1.bf16.msra.mxu0 0
      %3906 = vmatprep.subr.bf16.mxu0 0
      %3907 = vmatpush1.bf16.msra.mxu0 0
      %3908 = vmatprep.subr.bf16.mxu0 0
      %3909 = vmatpush1.bf16.msra.mxu0 0
      %3910 = vmatprep.subr.bf16.mxu0 0
      %3911 = vmatpush1.bf16.msra.mxu0 0
      %3912 = vmatprep.subr.bf16.mxu0 0
      %3913 = vmatpush1.bf16.msra.mxu0 0
      %3914 = vmatprep.subr.bf16.mxu0 0
      %3915 = vmatpush1.bf16.msra.mxu0 0
      %3916 = vmatprep.subr.bf16.mxu0 0
      %3917 = vmatpush1.bf16.msra.mxu0 0
      %3918 = vmatprep.subr.bf16.mxu0 0
      %3919 = vmatpush1.bf16.msra.mxu0 0
      %3920 = vmatprep.mubr.bf16.mxu0 0
      %3921 = vmatmul.mubr.bf16.gmra.mrb[0].mxu0 %v3838
      %v3922 = vpop.f32.mrb[0].mxu0
      %v3923 = vadd.f32 0.0, %v3922
      %v3924 = vpop.f32.mrb[0].mxu0
      %v3925 = vpop.f32.mrb[0].mxu0
      %v3926 = vadd.f32 0.0, %v3925
      %v3927 = vpop.f32.mrb[0].mxu0
      %3928 = vmatprep.mubr.bf16.mxu0 0
      %3929 = vmatmul.mubr.bf16.gmra.mrb[0].mxu0 %v3841
      %v3930 = vpop.f32.mrb[0].mxu0
      %v3931 = vadd.f32 0.0, %v3930
      %v3932 = vpop.f32.mrb[0].mxu0
      %v3933 = vpop.f32.mrb[0].mxu0
      %v3934 = vadd.f32 0.0, %v3933
      %v3935 = vpop.f32.mrb[0].mxu0
      %3936 = vmatprep.mubr.bf16.mxu0 0
      %3937 = vmatmul.mubr.bf16.gmra.mrb[0].mxu0 %v3844
      %v3938 = vpop.f32.mrb[0].mxu0
      %v3939 = vadd.f32 0.0, %v3938
      %v3940 = vpop.f32.mrb[0].mxu0
      %v3941 = vpop.f32.mrb[0].mxu0
      %v3942 = vadd.f32 0.0, %v3941
      %v3943 = vpop.f32.mrb[0].mxu0
      %3944 = vmatprep.mubr.bf16.mxu0 0
      %3945 = vmatmul.mubr.bf16.gmra.mrb[0].mxu0 %v3847
      %v3946 = vpop.f32.mrb[0].mxu0
      %v3947 = vadd.f32 0.0, %v3946
      %v3948 = vpop.f32.mrb[0].mxu0
      %v3949 = vpop.f32.mrb[0].mxu0
      %v3950 = vadd.f32 0.0, %v3949
      %v3951 = vpop.f32.mrb[0].mxu0
      %3952 = vmatprep.mubr.bf16.mxu0 0
      %3953 = vmatmul.mubr.bf16.gmra.mrb[0].mxu0 %v3850
      %v3954 = vpop.f32.mrb[0].mxu0
      %v3955 = vadd.f32 0.0, %v3954
      %v3956 = vpop.f32.mrb[0].mxu0
      %v3957 = vpop.f32.mrb[0].mxu0
      %v3958 = vadd.f32 0.0, %v3957
      %v3959 = vpop.f32.mrb[0].mxu0
      %3960 = vmatprep.mubr.bf16.mxu0 0
      %3961 = vmatmul.mubr.bf16.gmra.mrb[0].mxu0 %v3853
      %v3962 = vpop.f32.mrb[0].mxu0
      %v3963 = vadd.f32 0.0, %v3962
      %v3964 = vpop.f32.mrb[0].mxu0
      %v3965 = vpop.f32.mrb[0].mxu0
      %v3966 = vadd.f32 0.0, %v3965
      %v3967 = vpop.f32.mrb[0].mxu0
      %3968 = vmatprep.mubr.bf16.mxu0 0
      %3969 = vmatmul.mubr.bf16.gmra.mrb[0].mxu0 %v3856
      %v3970 = vpop.f32.mrb[0].mxu0
      %v3971 = vadd.f32 0.0, %v3970
      %v3972 = vpop.f32.mrb[0].mxu0
      %v3973 = vpop.f32.mrb[0].mxu0
      %v3974 = vadd.f32 0.0, %v3973
      %v3975 = vpop.f32.mrb[0].mxu0
      %3976 = vmatprep.mubr.bf16.mxu0 0
      %3977 = vmatmul.mubr.bf16.gmra.mrb[0].mxu0 %v3859
      %v3978 = vpop.f32.mrb[0].mxu0
      %v3979 = vadd.f32 0.0, %v3978
      %v3980 = vpop.f32.mrb[0].mxu0
      %v3981 = vpop.f32.mrb[0].mxu0
      %v3982 = vadd.f32 0.0, %v3981
      %v3983 = vpop.f32.mrb[0].mxu0
      %3984 = vmatprep.mubr.bf16.mxu0 0
      %3985 = vmatmul.mubr.bf16.gmra.mrb[0].mxu0 %v3862
      %v3986 = vpop.f32.mrb[0].mxu0
      %v3987 = vadd.f32 0.0, %v3986
      %v3988 = vpop.f32.mrb[0].mxu0
      %v3989 = vpop.f32.mrb[0].mxu0
      %v3990 = vadd.f32 0.0, %v3989
      %v3991 = vpop.f32.mrb[0].mxu0
      %3992 = vmatprep.mubr.bf16.mxu0 0
      %3993 = vmatmul.mubr.bf16.gmra.mrb[0].mxu0 %v3865
      %v3994 = vpop.f32.mrb[0].mxu0
      %v3995 = vadd.f32 0.0, %v3994
      %v3996 = vpop.f32.mrb[0].mxu0
      %v3997 = vpop.f32.mrb[0].mxu0
      %v3998 = vadd.f32 0.0, %v3997
      %v3999 = vpop.f32.mrb[0].mxu0
      %4000 = vmatprep.mubr.bf16.mxu0 0
      %4001 = vmatmul.mubr.bf16.gmra.mrb[0].mxu0 %v3868
      %v4002 = vpop.f32.mrb[0].mxu0
      %v4003 = vadd.f32 0.0, %v4002
      %v4004 = vpop.f32.mrb[0].mxu0
      %v4005 = vpop.f32.mrb[0].mxu0
      %v4006 = vadd.f32 0.0, %v4005
      %v4007 = vpop.f32.mrb[0].mxu0
      %4008 = vmatprep.mubr.bf16.mxu0 0
      %4009 = vmatmul.mubr.bf16.gmra.mrb[0].mxu0 %v3871
      %v4010 = vpop.f32.mrb[0].mxu0
      %v4011 = vadd.f32 0.0, %v4010
      %v4012 = vpop.f32.mrb[0].mxu0
      %v4013 = vpop.f32.mrb[0].mxu0
      %v4014 = vadd.f32 0.0, %v4013
      %v4015 = vpop.f32.mrb[0].mxu0
      %4016 = vmatprep.mubr.bf16.mxu0 0
      %4017 = vmatmul.mubr.bf16.gmra.mrb[0].mxu0 %v3874
      %v4018 = vpop.f32.mrb[0].mxu0
      %v4019 = vadd.f32 0.0, %v4018
      %v4020 = vpop.f32.mrb[0].mxu0
      %v4021 = vpop.f32.mrb[0].mxu0
      %v4022 = vadd.f32 0.0, %v4021
      %v4023 = vpop.f32.mrb[0].mxu0
      %4024 = vmatprep.mubr.bf16.mxu0 0
      %4025 = vmatmul.mubr.bf16.gmra.mrb[0].mxu0 %v3877
      %v4026 = vpop.f32.mrb[0].mxu0
      %v4027 = vadd.f32 0.0, %v4026
      %v4028 = vpop.f32.mrb[0].mxu0
      %v4029 = vpop.f32.mrb[0].mxu0
      %v4030 = vadd.f32 0.0, %v4029
      %v4031 = vpop.f32.mrb[0].mxu0
      %4032 = vmatprep.mubr.bf16.mxu0 0
      %4033 = vmatmul.mubr.bf16.gmra.mrb[0].mxu0 %v3880
      %v4034 = vpop.f32.mrb[0].mxu0
      %v4035 = vadd.f32 0.0, %v4034
      %v4036 = vpop.f32.mrb[0].mxu0
      %v4037 = vpop.f32.mrb[0].mxu0
      %v4038 = vadd.f32 0.0, %v4037
      %v4039 = vpop.f32.mrb[0].mxu0
      %4040 = vmatprep.mubr.bf16.mxu0 0
      %4041 = vmatmul.mubr.bf16.gmra.mrb[0].mxu0 %v3883
      %v4042 = vpop.f32.mrb[0].mxu0
      %v4043 = vadd.f32 0.0, %v4042
      %v4044 = vpop.f32.mrb[0].mxu0
      %v4045 = vpop.f32.mrb[0].mxu0
      %v4046 = vadd.f32 0.0, %v4045
      %v4047 = vpop.f32.mrb[0].mxu0
      %4048 = vdwg.mxu0
      %v4049 = vadd.f32 %v3755, %v3923
      %v4050 = vadd.f32 %v3756, %v3926
      %v4051 = vadd.f32 %v3757, %v3931
      %v4052 = vadd.f32 %v3758, %v3934
      %v4053 = vadd.f32 %v3759, %v3939
      %v4054 = vadd.f32 %v3760, %v3942
      %v4055 = vadd.f32 %v3761, %v3947
      %v4056 = vadd.f32 %v3762, %v3950
      %v4057 = vadd.f32 %v3763, %v3955
      %v4058 = vadd.f32 %v3764, %v3958
      %v4059 = vadd.f32 %v3765, %v3963
      %v4060 = vadd.f32 %v3766, %v3966
      %v4061 = vadd.f32 %v3767, %v3971
      %v4062 = vadd.f32 %v3768, %v3974
      %v4063 = vadd.f32 %v3769, %v3979
      %v4064 = vadd.f32 %v3770, %v3982
      %v4065 = vadd.f32 %v3771, %v3987
      %v4066 = vadd.f32 %v3772, %v3990
      %v4067 = vadd.f32 %v3773, %v3995
      %v4068 = vadd.f32 %v3774, %v3998
      %v4069 = vadd.f32 %v3775, %v4003
      %v4070 = vadd.f32 %v3776, %v4006
      %v4071 = vadd.f32 %v3777, %v4011
      %v4072 = vadd.f32 %v3778, %v4014
      %v4073 = vadd.f32 %v3779, %v4019
      %v4074 = vadd.f32 %v3780, %v4022
      %v4075 = vadd.f32 %v3781, %v4027
      %v4076 = vadd.f32 %v3782, %v4030
      %v4077 = vadd.f32 %v3783, %v4035
      %v4078 = vadd.f32 %v3784, %v4038
      %v4079 = vadd.f32 %v3785, %v4043
      %v4080 = vadd.f32 %v3786, %v4046
      %s4081 = scalar_lea.vmem [#allocation3], 48
      %v4082 = vld [vmem:[%s4081] sm:$0xff]
      %v4083 = vld [vmem:[%s4081 + $0x8] sm:$0xff]
      %v4084 = vld [vmem:[%s4081 + $0x18] sm:$0xff]
      %v4085 = vld [vmem:[%s4081 + $0x20] sm:$0xff]
      %v4086 = vld [vmem:[%s4081 + $0x30] sm:$0xff]
      %v4087 = vld [vmem:[%s4081 + $0x38] sm:$0xff]
      %v4088 = vld [vmem:[%s4081 + $0x48] sm:$0xff]
      %v4089 = vld [vmem:[%s4081 + $0x50] sm:$0xff]
      %v4090 = vld [vmem:[%s4081 + $0x60] sm:$0xff]
      %v4091 = vld [vmem:[%s4081 + $0x68] sm:$0xff]
      %v4092 = vld [vmem:[%s4081 + $0x78] sm:$0xff]
      %v4093 = vld [vmem:[%s4081 + $0x80] sm:$0xff]
      %v4094 = vld [vmem:[%s4081 + $0x90] sm:$0xff]
      %v4095 = vld [vmem:[%s4081 + $0x98] sm:$0xff]
      %v4096 = vld [vmem:[%s4081 + $0xa8] sm:$0xff]
      %v4097 = vld [vmem:[%s4081 + $0xb0] sm:$0xff]
      %v4098 = vld [vmem:[%s4081 + $0xc0] sm:$0xff]
      %v4099 = vld [vmem:[%s4081 + $0xc8] sm:$0xff]
      %v4100 = vld [vmem:[%s4081 + $0xd8] sm:$0xff]
      %v4101 = vld [vmem:[%s4081 + $0xe0] sm:$0xff]
      %v4102 = vld [vmem:[%s4081 + $0xf0] sm:$0xff]
      %v4103 = vld [vmem:[%s4081 + $0xf8] sm:$0xff]
      %v4104 = vld [vmem:[%s4081 + $0x108] sm:$0xff]
      %v4105 = vld [vmem:[%s4081 + $0x110] sm:$0xff]
      %v4106 = vld [vmem:[%s4081 + $0x120] sm:$0xff]
      %v4107 = vld [vmem:[%s4081 + $0x128] sm:$0xff]
      %v4108 = vld [vmem:[%s4081 + $0x138] sm:$0xff]
      %v4109 = vld [vmem:[%s4081 + $0x140] sm:$0xff]
      %v4110 = vld [vmem:[%s4081 + $0x150] sm:$0xff]
      %v4111 = vld [vmem:[%s4081 + $0x158] sm:$0xff]
      %v4112 = vld [vmem:[%s4081 + $0x168] sm:$0xff]
      %v4113 = vld [vmem:[%s4081 + $0x170] sm:$0xff]
      %v4114 = vpack.c.bf16 %v4083, %v4082
      %v4115 = vpack.c.bf16 %v4085, %v4084
      %v4116 = vpack.c.bf16 %v4087, %v4086
      %v4117 = vpack.c.bf16 %v4089, %v4088
      %v4118 = vpack.c.bf16 %v4091, %v4090
      %v4119 = vpack.c.bf16 %v4093, %v4092
      %v4120 = vpack.c.bf16 %v4095, %v4094
      %v4121 = vpack.c.bf16 %v4097, %v4096
      %v4122 = vpack.c.bf16 %v4099, %v4098
      %v4123 = vpack.c.bf16 %v4101, %v4100
      %v4124 = vpack.c.bf16 %v4103, %v4102
      %v4125 = vpack.c.bf16 %v4105, %v4104
      %v4126 = vpack.c.bf16 %v4107, %v4106
      %v4127 = vpack.c.bf16 %v4109, %v4108
      %v4128 = vpack.c.bf16 %v4111, %v4110
      %v4129 = vpack.c.bf16 %v4113, %v4112
      %s4130 = scalar_lea.vmem %s4, 24
      %v4131 = vld [vmem:[%s4130] sm:$0xf]
      %v4133 = vsel %vm2300, %v4114, 0
      %v4136 = vsel %vm2300, %v4115, 0
      %v4139 = vsel %vm2300, %v4116, 0
      %v4142 = vsel %vm2300, %v4117, 0
      %v4145 = vsel %vm2300, %v4118, 0
      %v4148 = vsel %vm2300, %v4119, 0
      %v4151 = vsel %vm2300, %v4120, 0
      %v4154 = vsel %vm2300, %v4121, 0
      %v4157 = vsel %vm2300, %v4122, 0
      %v4160 = vsel %vm2300, %v4123, 0
      %v4163 = vsel %vm2300, %v4124, 0
      %v4166 = vsel %vm2300, %v4125, 0
      %v4169 = vsel %vm2300, %v4126, 0
      %v4172 = vsel %vm2300, %v4127, 0
      %v4175 = vsel %vm2300, %v4128, 0
      %v4178 = vsel %vm2300, %v4129, 0
      %v4181 = vsel %vm2528, %v4131, 0
      %4183 = vmatprep.subr.bf16.mxu0 0
      %4184 = vmatpush1.bf16.msra.mxu0 %v4181
      %4185 = vmatprep.subr.bf16.mxu0 0
      %4186 = vmatpush1.bf16.msra.mxu0 0
      %4187 = vmatprep.subr.bf16.mxu0 0
      %4188 = vmatpush1.bf16.msra.mxu0 0
      %4189 = vmatprep.subr.bf16.mxu0 0
      %4190 = vmatpush1.bf16.msra.mxu0 0
      %4191 = vmatprep.subr.bf16.mxu0 0
      %4192 = vmatpush1.bf16.msra.mxu0 0
      %4193 = vmatprep.subr.bf16.mxu0 0
      %4194 = vmatpush1.bf16.msra.mxu0 0
      %4195 = vmatprep.subr.bf16.mxu0 0
      %4196 = vmatpush1.bf16.msra.mxu0 0
      %4197 = vmatprep.subr.bf16.mxu0 0
      %4198 = vmatpush1.bf16.msra.mxu0 0
      %4199 = vmatprep.subr.bf16.mxu0 0
      %4200 = vmatpush1.bf16.msra.mxu0 0
      %4201 = vmatprep.subr.bf16.mxu0 0
      %4202 = vmatpush1.bf16.msra.mxu0 0
      %4203 = vmatprep.subr.bf16.mxu0 0
      %4204 = vmatpush1.bf16.msra.mxu0 0
      %4205 = vmatprep.subr.bf16.mxu0 0
      %4206 = vmatpush1.bf16.msra.mxu0 0
      %4207 = vmatprep.subr.bf16.mxu0 0
      %4208 = vmatpush1.bf16.msra.mxu0 0
      %4209 = vmatprep.subr.bf16.mxu0 0
      %4210 = vmatpush1.bf16.msra.mxu0 0
      %4211 = vmatprep.subr.bf16.mxu0 0
      %4212 = vmatpush1.bf16.msra.mxu0 0
      %4213 = vmatprep.subr.bf16.mxu0 0
      %4214 = vmatpush1.bf16.msra.mxu0 0
      %4215 = vmatprep.mubr.bf16.mxu0 0
      %4216 = vmatmul.mubr.bf16.gmra.mrb[0].mxu0 %v4133
      %v4217 = vpop.f32.mrb[0].mxu0
      %v4218 = vadd.f32 0.0, %v4217
      %v4219 = vpop.f32.mrb[0].mxu0
      %v4220 = vpop.f32.mrb[0].mxu0
      %v4221 = vadd.f32 0.0, %v4220
      %v4222 = vpop.f32.mrb[0].mxu0
      %4223 = vmatprep.mubr.bf16.mxu0 0
      %4224 = vmatmul.mubr.bf16.gmra.mrb[0].mxu0 %v4136
      %v4225 = vpop.f32.mrb[0].mxu0
      %v4226 = vadd.f32 0.0, %v4225
      %v4227 = vpop.f32.mrb[0].mxu0
      %v4228 = vpop.f32.mrb[0].mxu0
      %v4229 = vadd.f32 0.0, %v4228
      %v4230 = vpop.f32.mrb[0].mxu0
      %4231 = vmatprep.mubr.bf16.mxu0 0
      %4232 = vmatmul.mubr.bf16.gmra.mrb[0].mxu0 %v4139
      %v4233 = vpop.f32.mrb[0].mxu0
      %v4234 = vadd.f32 0.0, %v4233
      %v4235 = vpop.f32.mrb[0].mxu0
      %v4236 = vpop.f32.mrb[0].mxu0
      %v4237 = vadd.f32 0.0, %v4236
      %v4238 = vpop.f32.mrb[0].mxu0
      %4239 = vmatprep.mubr.bf16.mxu0 0
      %4240 = vmatmul.mubr.bf16.gmra.mrb[0].mxu0 %v4142
      %v4241 = vpop.f32.mrb[0].mxu0
      %v4242 = vadd.f32 0.0, %v4241
      %v4243 = vpop.f32.mrb[0].mxu0
      %v4244 = vpop.f32.mrb[0].mxu0
      %v4245 = vadd.f32 0.0, %v4244
      %v4246 = vpop.f32.mrb[0].mxu0
      %4247 = vmatprep.mubr.bf16.mxu0 0
      %4248 = vmatmul.mubr.bf16.gmra.mrb[0].mxu0 %v4145
      %v4249 = vpop.f32.mrb[0].mxu0
      %v4250 = vadd.f32 0.0, %v4249
      %v4251 = vpop.f32.mrb[0].mxu0
      %v4252 = vpop.f32.mrb[0].mxu0
      %v4253 = vadd.f32 0.0, %v4252
      %v4254 = vpop.f32.mrb[0].mxu0
      %4255 = vmatprep.mubr.bf16.mxu0 0
      %4256 = vmatmul.mubr.bf16.gmra.mrb[0].mxu0 %v4148
      %v4257 = vpop.f32.mrb[0].mxu0
      %v4258 = vadd.f32 0.0, %v4257
      %v4259 = vpop.f32.mrb[0].mxu0
      %v4260 = vpop.f32.mrb[0].mxu0
      %v4261 = vadd.f32 0.0, %v4260
      %v4262 = vpop.f32.mrb[0].mxu0
      %4263 = vmatprep.mubr.bf16.mxu0 0
      %4264 = vmatmul.mubr.bf16.gmra.mrb[0].mxu0 %v4151
      %v4265 = vpop.f32.mrb[0].mxu0
      %v4266 = vadd.f32 0.0, %v4265
      %v4267 = vpop.f32.mrb[0].mxu0
      %v4268 = vpop.f32.mrb[0].mxu0
      %v4269 = vadd.f32 0.0, %v4268
      %v4270 = vpop.f32.mrb[0].mxu0
      %4271 = vmatprep.mubr.bf16.mxu0 0
      %4272 = vmatmul.mubr.bf16.gmra.mrb[0].mxu0 %v4154
      %v4273 = vpop.f32.mrb[0].mxu0
      %v4274 = vadd.f32 0.0, %v4273
      %v4275 = vpop.f32.mrb[0].mxu0
      %v4276 = vpop.f32.mrb[0].mxu0
      %v4277 = vadd.f32 0.0, %v4276
      %v4278 = vpop.f32.mrb[0].mxu0
      %4279 = vmatprep.mubr.bf16.mxu0 0
      %4280 = vmatmul.mubr.bf16.gmra.mrb[0].mxu0 %v4157
      %v4281 = vpop.f32.mrb[0].mxu0
      %v4282 = vadd.f32 0.0, %v4281
      %v4283 = vpop.f32.mrb[0].mxu0
      %v4284 = vpop.f32.mrb[0].mxu0
      %v4285 = vadd.f32 0.0, %v4284
      %v4286 = vpop.f32.mrb[0].mxu0
      %4287 = vmatprep.mubr.bf16.mxu0 0
      %4288 = vmatmul.mubr.bf16.gmra.mrb[0].mxu0 %v4160
      %v4289 = vpop.f32.mrb[0].mxu0
      %v4290 = vadd.f32 0.0, %v4289
      %v4291 = vpop.f32.mrb[0].mxu0
      %v4292 = vpop.f32.mrb[0].mxu0
      %v4293 = vadd.f32 0.0, %v4292
      %v4294 = vpop.f32.mrb[0].mxu0
      %4295 = vmatprep.mubr.bf16.mxu0 0
      %4296 = vmatmul.mubr.bf16.gmra.mrb[0].mxu0 %v4163
      %v4297 = vpop.f32.mrb[0].mxu0
      %v4298 = vadd.f32 0.0, %v4297
      %v4299 = vpop.f32.mrb[0].mxu0
      %v4300 = vpop.f32.mrb[0].mxu0
      %v4301 = vadd.f32 0.0, %v4300
      %v4302 = vpop.f32.mrb[0].mxu0
      %4303 = vmatprep.mubr.bf16.mxu0 0
      %4304 = vmatmul.mubr.bf16.gmra.mrb[0].mxu0 %v4166
      %v4305 = vpop.f32.mrb[0].mxu0
      %v4306 = vadd.f32 0.0, %v4305
      %v4307 = vpop.f32.mrb[0].mxu0
      %v4308 = vpop.f32.mrb[0].mxu0
      %v4309 = vadd.f32 0.0, %v4308
      %v4310 = vpop.f32.mrb[0].mxu0
      %4311 = vmatprep.mubr.bf16.mxu0 0
      %4312 = vmatmul.mubr.bf16.gmra.mrb[0].mxu0 %v4169
      %v4313 = vpop.f32.mrb[0].mxu0
      %v4314 = vadd.f32 0.0, %v4313
      %v4315 = vpop.f32.mrb[0].mxu0
      %v4316 = vpop.f32.mrb[0].mxu0
      %v4317 = vadd.f32 0.0, %v4316
      %v4318 = vpop.f32.mrb[0].mxu0
      %4319 = vmatprep.mubr.bf16.mxu0 0
      %4320 = vmatmul.mubr.bf16.gmra.mrb[0].mxu0 %v4172
      %v4321 = vpop.f32.mrb[0].mxu0
      %v4322 = vadd.f32 0.0, %v4321
      %v4323 = vpop.f32.mrb[0].mxu0
      %v4324 = vpop.f32.mrb[0].mxu0
      %v4325 = vadd.f32 0.0, %v4324
      %v4326 = vpop.f32.mrb[0].mxu0
      %4327 = vmatprep.mubr.bf16.mxu0 0
      %4328 = vmatmul.mubr.bf16.gmra.mrb[0].mxu0 %v4175
      %v4329 = vpop.f32.mrb[0].mxu0
      %v4330 = vadd.f32 0.0, %v4329
      %v4331 = vpop.f32.mrb[0].mxu0
      %v4332 = vpop.f32.mrb[0].mxu0
      %v4333 = vadd.f32 0.0, %v4332
      %v4334 = vpop.f32.mrb[0].mxu0
      %4335 = vmatprep.mubr.bf16.mxu0 0
      %4336 = vmatmul.mubr.bf16.gmra.mrb[0].mxu0 %v4178
      %v4337 = vpop.f32.mrb[0].mxu0
      %v4338 = vadd.f32 0.0, %v4337
      %v4339 = vpop.f32.mrb[0].mxu0
      %v4340 = vpop.f32.mrb[0].mxu0
      %v4341 = vadd.f32 0.0, %v4340
      %v4342 = vpop.f32.mrb[0].mxu0
      %4343 = vdwg.mxu0
      %v4344 = vadd.f32 %v4049, %v4218
      %v4345 = vadd.f32 %v4050, %v4221
      %v4346 = vadd.f32 %v4051, %v4226
      %v4347 = vadd.f32 %v4052, %v4229
      %v4348 = vadd.f32 %v4053, %v4234
      %v4349 = vadd.f32 %v4054, %v4237
      %v4350 = vadd.f32 %v4055, %v4242
      %v4351 = vadd.f32 %v4056, %v4245
      %v4352 = vadd.f32 %v4057, %v4250
      %v4353 = vadd.f32 %v4058, %v4253
      %v4354 = vadd.f32 %v4059, %v4258
      %v4355 = vadd.f32 %v4060, %v4261
      %v4356 = vadd.f32 %v4061, %v4266
      %v4357 = vadd.f32 %v4062, %v4269
      %v4358 = vadd.f32 %v4063, %v4274
      %v4359 = vadd.f32 %v4064, %v4277
      %v4360 = vadd.f32 %v4065, %v4282
      %v4361 = vadd.f32 %v4066, %v4285
      %v4362 = vadd.f32 %v4067, %v4290
      %v4363 = vadd.f32 %v4068, %v4293
      %v4364 = vadd.f32 %v4069, %v4298
      %v4365 = vadd.f32 %v4070, %v4301
      %v4366 = vadd.f32 %v4071, %v4306
      %v4367 = vadd.f32 %v4072, %v4309
      %v4368 = vadd.f32 %v4073, %v4314
      %v4369 = vadd.f32 %v4074, %v4317
      %v4370 = vadd.f32 %v4075, %v4322
      %v4371 = vadd.f32 %v4076, %v4325
      %v4372 = vadd.f32 %v4077, %v4330
      %v4373 = vadd.f32 %v4078, %v4333
      %v4374 = vadd.f32 %v4079, %v4338
      %v4375 = vadd.f32 %v4080, %v4341
      %v4376 = vld [vmem:[%s4081 + $0x1] sm:$0xff]
      %v4377 = vld [vmem:[%s4081 + $0x9] sm:$0xff]
      %v4378 = vld [vmem:[%s4081 + $0x19] sm:$0xff]
      %v4379 = vld [vmem:[%s4081 + $0x21] sm:$0xff]
      %v4380 = vld [vmem:[%s4081 + $0x31] sm:$0xff]
      %v4381 = vld [vmem:[%s4081 + $0x39] sm:$0xff]
      %v4382 = vld [vmem:[%s4081 + $0x49] sm:$0xff]
      %v4383 = vld [vmem:[%s4081 + $0x51] sm:$0xff]
      %v4384 = vld [vmem:[%s4081 + $0x61] sm:$0xff]
      %v4385 = vld [vmem:[%s4081 + $0x69] sm:$0xff]
      %v4386 = vld [vmem:[%s4081 + $0x79] sm:$0xff]
      %v4387 = vld [vmem:[%s4081 + $0x81] sm:$0xff]
      %v4388 = vld [vmem:[%s4081 + $0x91] sm:$0xff]
      %v4389 = vld [vmem:[%s4081 + $0x99] sm:$0xff]
      %v4390 = vld [vmem:[%s4081 + $0xa9] sm:$0xff]
      %v4391 = vld [vmem:[%s4081 + $0xb1] sm:$0xff]
      %v4392 = vld [vmem:[%s4081 + $0xc1] sm:$0xff]
      %v4393 = vld [vmem:[%s4081 + $0xc9] sm:$0xff]
      %v4394 = vld [vmem:[%s4081 + $0xd9] sm:$0xff]
      %v4395 = vld [vmem:[%s4081 + $0xe1] sm:$0xff]
      %v4396 = vld [vmem:[%s4081 + $0xf1] sm:$0xff]
      %v4397 = vld [vmem:[%s4081 + $0xf9] sm:$0xff]
      %v4398 = vld [vmem:[%s4081 + $0x109] sm:$0xff]
      %v4399 = vld [vmem:[%s4081 + $0x111] sm:$0xff]
      %v4400 = vld [vmem:[%s4081 + $0x121] sm:$0xff]
      %v4401 = vld [vmem:[%s4081 + $0x129] sm:$0xff]
      %v4402 = vld [vmem:[%s4081 + $0x139] sm:$0xff]
      %v4403 = vld [vmem:[%s4081 + $0x141] sm:$0xff]
      %v4404 = vld [vmem:[%s4081 + $0x151] sm:$0xff]
      %v4405 = vld [vmem:[%s4081 + $0x159] sm:$0xff]
      %v4406 = vld [vmem:[%s4081 + $0x169] sm:$0xff]
      %v4407 = vld [vmem:[%s4081 + $0x171] sm:$0xff]
      %v4408 = vpack.c.bf16 %v4377, %v4376
      %v4409 = vpack.c.bf16 %v4379, %v4378
      %v4410 = vpack.c.bf16 %v4381, %v4380
      %v4411 = vpack.c.bf16 %v4383, %v4382
      %v4412 = vpack.c.bf16 %v4385, %v4384
      %v4413 = vpack.c.bf16 %v4387, %v4386
      %v4414 = vpack.c.bf16 %v4389, %v4388
      %v4415 = vpack.c.bf16 %v4391, %v4390
      %v4416 = vpack.c.bf16 %v4393, %v4392
      %v4417 = vpack.c.bf16 %v4395, %v4394
      %v4418 = vpack.c.bf16 %v4397, %v4396
      %v4419 = vpack.c.bf16 %v4399, %v4398
      %v4420 = vpack.c.bf16 %v4401, %v4400
      %v4421 = vpack.c.bf16 %v4403, %v4402
      %v4422 = vpack.c.bf16 %v4405, %v4404
      %v4423 = vpack.c.bf16 %v4407, %v4406
      %s4424 = scalar_lea.vmem %s4, 28
      %v4425 = vld [vmem:[%s4424] sm:$0xf]
      %v4427 = vsel %vm2300, %v4408, 0
      %v4430 = vsel %vm2300, %v4409, 0
      %v4433 = vsel %vm2300, %v4410, 0
      %v4436 = vsel %vm2300, %v4411, 0
      %v4439 = vsel %vm2300, %v4412, 0
      %v4442 = vsel %vm2300, %v4413, 0
      %v4445 = vsel %vm2300, %v4414, 0
      %v4448 = vsel %vm2300, %v4415, 0
      %v4451 = vsel %vm2300, %v4416, 0
      %v4454 = vsel %vm2300, %v4417, 0
      %v4457 = vsel %vm2300, %v4418, 0
      %v4460 = vsel %vm2300, %v4419, 0
      %v4463 = vsel %vm2300, %v4420, 0
      %v4466 = vsel %vm2300, %v4421, 0
      %v4469 = vsel %vm2300, %v4422, 0
      %v4472 = vsel %vm2300, %v4423, 0
      %v4475 = vsel %vm2528, %v4425, 0
      %4477 = vmatprep.subr.bf16.mxu0 0
      %4478 = vmatpush1.bf16.msra.mxu0 %v4475
      %4479 = vmatprep.subr.bf16.mxu0 0
      %4480 = vmatpush1.bf16.msra.mxu0 0
      %4481 = vmatprep.subr.bf16.mxu0 0
      %4482 = vmatpush1.bf16.msra.mxu0 0
      %4483 = vmatprep.subr.bf16.mxu0 0
      %4484 = vmatpush1.bf16.msra.mxu0 0
      %4485 = vmatprep.subr.bf16.mxu0 0
      %4486 = vmatpush1.bf16.msra.mxu0 0
      %4487 = vmatprep.subr.bf16.mxu0 0
      %4488 = vmatpush1.bf16.msra.mxu0 0
      %4489 = vmatprep.subr.bf16.mxu0 0
      %4490 = vmatpush1.bf16.msra.mxu0 0
      %4491 = vmatprep.subr.bf16.mxu0 0
      %4492 = vmatpush1.bf16.msra.mxu0 0
      %4493 = vmatprep.subr.bf16.mxu0 0
      %4494 = vmatpush1.bf16.msra.mxu0 0
      %4495 = vmatprep.subr.bf16.mxu0 0
      %4496 = vmatpush1.bf16.msra.mxu0 0
      %4497 = vmatprep.subr.bf16.mxu0 0
      %4498 = vmatpush1.bf16.msra.mxu0 0
      %4499 = vmatprep.subr.bf16.mxu0 0
      %4500 = vmatpush1.bf16.msra.mxu0 0
      %4501 = vmatprep.subr.bf16.mxu0 0
      %4502 = vmatpush1.bf16.msra.mxu0 0
      %4503 = vmatprep.subr.bf16.mxu0 0
      %4504 = vmatpush1.bf16.msra.mxu0 0
      %4505 = vmatprep.subr.bf16.mxu0 0
      %4506 = vmatpush1.bf16.msra.mxu0 0
      %4507 = vmatprep.subr.bf16.mxu0 0
      %4508 = vmatpush1.bf16.msra.mxu0 0
      %4509 = vmatprep.mubr.bf16.mxu0 0
      %4510 = vmatmul.mubr.bf16.gmra.mrb[0].mxu0 %v4427
      %v4511 = vpop.f32.mrb[0].mxu0
      %v4512 = vadd.f32 0.0, %v4511
      %v4513 = vpop.f32.mrb[0].mxu0
      %v4514 = vpop.f32.mrb[0].mxu0
      %v4515 = vadd.f32 0.0, %v4514
      %v4516 = vpop.f32.mrb[0].mxu0
      %4517 = vmatprep.mubr.bf16.mxu0 0
      %4518 = vmatmul.mubr.bf16.gmra.mrb[0].mxu0 %v4430
      %v4519 = vpop.f32.mrb[0].mxu0
      %v4520 = vadd.f32 0.0, %v4519
      %v4521 = vpop.f32.mrb[0].mxu0
      %v4522 = vpop.f32.mrb[0].mxu0
      %v4523 = vadd.f32 0.0, %v4522
      %v4524 = vpop.f32.mrb[0].mxu0
      %4525 = vmatprep.mubr.bf16.mxu0 0
      %4526 = vmatmul.mubr.bf16.gmra.mrb[0].mxu0 %v4433
      %v4527 = vpop.f32.mrb[0].mxu0
      %v4528 = vadd.f32 0.0, %v4527
      %v4529 = vpop.f32.mrb[0].mxu0
      %v4530 = vpop.f32.mrb[0].mxu0
      %v4531 = vadd.f32 0.0, %v4530
      %v4532 = vpop.f32.mrb[0].mxu0
      %4533 = vmatprep.mubr.bf16.mxu0 0
      %4534 = vmatmul.mubr.bf16.gmra.mrb[0].mxu0 %v4436
      %v4535 = vpop.f32.mrb[0].mxu0
      %v4536 = vadd.f32 0.0, %v4535
      %v4537 = vpop.f32.mrb[0].mxu0
      %v4538 = vpop.f32.mrb[0].mxu0
      %v4539 = vadd.f32 0.0, %v4538
      %v4540 = vpop.f32.mrb[0].mxu0
      %4541 = vmatprep.mubr.bf16.mxu0 0
      %4542 = vmatmul.mubr.bf16.gmra.mrb[0].mxu0 %v4439
      %v4543 = vpop.f32.mrb[0].mxu0
      %v4544 = vadd.f32 0.0, %v4543
      %v4545 = vpop.f32.mrb[0].mxu0
      %v4546 = vpop.f32.mrb[0].mxu0
      %v4547 = vadd.f32 0.0, %v4546
      %v4548 = vpop.f32.mrb[0].mxu0
      %4549 = vmatprep.mubr.bf16.mxu0 0
      %4550 = vmatmul.mubr.bf16.gmra.mrb[0].mxu0 %v4442
      %v4551 = vpop.f32.mrb[0].mxu0
      %v4552 = vadd.f32 0.0, %v4551
      %v4553 = vpop.f32.mrb[0].mxu0
      %v4554 = vpop.f32.mrb[0].mxu0
      %v4555 = vadd.f32 0.0, %v4554
      %v4556 = vpop.f32.mrb[0].mxu0
      %4557 = vmatprep.mubr.bf16.mxu0 0
      %4558 = vmatmul.mubr.bf16.gmra.mrb[0].mxu0 %v4445
      %v4559 = vpop.f32.mrb[0].mxu0
      %v4560 = vadd.f32 0.0, %v4559
      %v4561 = vpop.f32.mrb[0].mxu0
      %v4562 = vpop.f32.mrb[0].mxu0
      %v4563 = vadd.f32 0.0, %v4562
      %v4564 = vpop.f32.mrb[0].mxu0
      %4565 = vmatprep.mubr.bf16.mxu0 0
      %4566 = vmatmul.mubr.bf16.gmra.mrb[0].mxu0 %v4448
      %v4567 = vpop.f32.mrb[0].mxu0
      %v4568 = vadd.f32 0.0, %v4567
      %v4569 = vpop.f32.mrb[0].mxu0
      %v4570 = vpop.f32.mrb[0].mxu0
      %v4571 = vadd.f32 0.0, %v4570
      %v4572 = vpop.f32.mrb[0].mxu0
      %4573 = vmatprep.mubr.bf16.mxu0 0
      %4574 = vmatmul.mubr.bf16.gmra.mrb[0].mxu0 %v4451
      %v4575 = vpop.f32.mrb[0].mxu0
      %v4576 = vadd.f32 0.0, %v4575
      %v4577 = vpop.f32.mrb[0].mxu0
      %v4578 = vpop.f32.mrb[0].mxu0
      %v4579 = vadd.f32 0.0, %v4578
      %v4580 = vpop.f32.mrb[0].mxu0
      %4581 = vmatprep.mubr.bf16.mxu0 0
      %4582 = vmatmul.mubr.bf16.gmra.mrb[0].mxu0 %v4454
      %v4583 = vpop.f32.mrb[0].mxu0
      %v4584 = vadd.f32 0.0, %v4583
      %v4585 = vpop.f32.mrb[0].mxu0
      %v4586 = vpop.f32.mrb[0].mxu0
      %v4587 = vadd.f32 0.0, %v4586
      %v4588 = vpop.f32.mrb[0].mxu0
      %4589 = vmatprep.mubr.bf16.mxu0 0
      %4590 = vmatmul.mubr.bf16.gmra.mrb[0].mxu0 %v4457
      %v4591 = vpop.f32.mrb[0].mxu0
      %v4592 = vadd.f32 0.0, %v4591
      %v4593 = vpop.f32.mrb[0].mxu0
      %v4594 = vpop.f32.mrb[0].mxu0
      %v4595 = vadd.f32 0.0, %v4594
      %v4596 = vpop.f32.mrb[0].mxu0
      %4597 = vmatprep.mubr.bf16.mxu0 0
      %4598 = vmatmul.mubr.bf16.gmra.mrb[0].mxu0 %v4460
      %v4599 = vpop.f32.mrb[0].mxu0
      %v4600 = vadd.f32 0.0, %v4599
      %v4601 = vpop.f32.mrb[0].mxu0
      %v4602 = vpop.f32.mrb[0].mxu0
      %v4603 = vadd.f32 0.0, %v4602
      %v4604 = vpop.f32.mrb[0].mxu0
      %4605 = vmatprep.mubr.bf16.mxu0 0
      %4606 = vmatmul.mubr.bf16.gmra.mrb[0].mxu0 %v4463
      %v4607 = vpop.f32.mrb[0].mxu0
      %v4608 = vadd.f32 0.0, %v4607
      %v4609 = vpop.f32.mrb[0].mxu0
      %v4610 = vpop.f32.mrb[0].mxu0
      %v4611 = vadd.f32 0.0, %v4610
      %v4612 = vpop.f32.mrb[0].mxu0
      %4613 = vmatprep.mubr.bf16.mxu0 0
      %4614 = vmatmul.mubr.bf16.gmra.mrb[0].mxu0 %v4466
      %v4615 = vpop.f32.mrb[0].mxu0
      %v4616 = vadd.f32 0.0, %v4615
      %v4617 = vpop.f32.mrb[0].mxu0
      %v4618 = vpop.f32.mrb[0].mxu0
      %v4619 = vadd.f32 0.0, %v4618
      %v4620 = vpop.f32.mrb[0].mxu0
      %4621 = vmatprep.mubr.bf16.mxu0 0
      %4622 = vmatmul.mubr.bf16.gmra.mrb[0].mxu0 %v4469
      %v4623 = vpop.f32.mrb[0].mxu0
      %v4624 = vadd.f32 0.0, %v4623
      %v4625 = vpop.f32.mrb[0].mxu0
      %v4626 = vpop.f32.mrb[0].mxu0
      %v4627 = vadd.f32 0.0, %v4626
      %v4628 = vpop.f32.mrb[0].mxu0
      %4629 = vmatprep.mubr.bf16.mxu0 0
      %4630 = vmatmul.mubr.bf16.gmra.mrb[0].mxu0 %v4472
      %v4631 = vpop.f32.mrb[0].mxu0
      %v4632 = vadd.f32 0.0, %v4631
      %v4633 = vpop.f32.mrb[0].mxu0
      %v4634 = vpop.f32.mrb[0].mxu0
      %v4635 = vadd.f32 0.0, %v4634
      %v4636 = vpop.f32.mrb[0].mxu0
      %4637 = vdwg.mxu0
      %v4638 = vadd.f32 %v4344, %v4512
      %v4639 = vadd.f32 %v4345, %v4515
      %v4640 = vadd.f32 %v4346, %v4520
      %v4641 = vadd.f32 %v4347, %v4523
      %v4642 = vadd.f32 %v4348, %v4528
      %v4643 = vadd.f32 %v4349, %v4531
      %v4644 = vadd.f32 %v4350, %v4536
      %v4645 = vadd.f32 %v4351, %v4539
      %v4646 = vadd.f32 %v4352, %v4544
      %v4647 = vadd.f32 %v4353, %v4547
      %v4648 = vadd.f32 %v4354, %v4552
      %v4649 = vadd.f32 %v4355, %v4555
      %v4650 = vadd.f32 %v4356, %v4560
      %v4651 = vadd.f32 %v4357, %v4563
      %v4652 = vadd.f32 %v4358, %v4568
      %v4653 = vadd.f32 %v4359, %v4571
      %v4654 = vadd.f32 %v4360, %v4576
      %v4655 = vadd.f32 %v4361, %v4579
      %v4656 = vadd.f32 %v4362, %v4584
      %v4657 = vadd.f32 %v4363, %v4587
      %v4658 = vadd.f32 %v4364, %v4592
      %v4659 = vadd.f32 %v4365, %v4595
      %v4660 = vadd.f32 %v4366, %v4600
      %v4661 = vadd.f32 %v4367, %v4603
      %v4662 = vadd.f32 %v4368, %v4608
      %v4663 = vadd.f32 %v4369, %v4611
      %v4664 = vadd.f32 %v4370, %v4616
      %v4665 = vadd.f32 %v4371, %v4619
      %v4666 = vadd.f32 %v4372, %v4624
      %v4667 = vadd.f32 %v4373, %v4627
      %v4668 = vadd.f32 %v4374, %v4632
      %v4669 = vadd.f32 %v4375, %v4635
      %v4670 = vld [vmem:[%s4081 + $0x2] sm:$0xff]
      %v4671 = vld [vmem:[%s4081 + $0xa] sm:$0xff]
      %v4672 = vld [vmem:[%s4081 + $0x1a] sm:$0xff]
      %v4673 = vld [vmem:[%s4081 + $0x22] sm:$0xff]
      %v4674 = vld [vmem:[%s4081 + $0x32] sm:$0xff]
      %v4675 = vld [vmem:[%s4081 + $0x3a] sm:$0xff]
      %v4676 = vld [vmem:[%s4081 + $0x4a] sm:$0xff]
      %v4677 = vld [vmem:[%s4081 + $0x52] sm:$0xff]
      %v4678 = vld [vmem:[%s4081 + $0x62] sm:$0xff]
      %v4679 = vld [vmem:[%s4081 + $0x6a] sm:$0xff]
      %v4680 = vld [vmem:[%s4081 + $0x7a] sm:$0xff]
      %v4681 = vld [vmem:[%s4081 + $0x82] sm:$0xff]
      %v4682 = vld [vmem:[%s4081 + $0x92] sm:$0xff]
      %v4683 = vld [vmem:[%s4081 + $0x9a] sm:$0xff]
      %v4684 = vld [vmem:[%s4081 + $0xaa] sm:$0xff]
      %v4685 = vld [vmem:[%s4081 + $0xb2] sm:$0xff]
      %v4686 = vld [vmem:[%s4081 + $0xc2] sm:$0xff]
      %v4687 = vld [vmem:[%s4081 + $0xca] sm:$0xff]
      %v4688 = vld [vmem:[%s4081 + $0xda] sm:$0xff]
      %v4689 = vld [vmem:[%s4081 + $0xe2] sm:$0xff]
      %v4690 = vld [vmem:[%s4081 + $0xf2] sm:$0xff]
      %v4691 = vld [vmem:[%s4081 + $0xfa] sm:$0xff]
      %v4692 = vld [vmem:[%s4081 + $0x10a] sm:$0xff]
      %v4693 = vld [vmem:[%s4081 + $0x112] sm:$0xff]
      %v4694 = vld [vmem:[%s4081 + $0x122] sm:$0xff]
      %v4695 = vld [vmem:[%s4081 + $0x12a] sm:$0xff]
      %v4696 = vld [vmem:[%s4081 + $0x13a] sm:$0xff]
      %v4697 = vld [vmem:[%s4081 + $0x142] sm:$0xff]
      %v4698 = vld [vmem:[%s4081 + $0x152] sm:$0xff]
      %v4699 = vld [vmem:[%s4081 + $0x15a] sm:$0xff]
      %v4700 = vld [vmem:[%s4081 + $0x16a] sm:$0xff]
      %v4701 = vld [vmem:[%s4081 + $0x172] sm:$0xff]
      %v4702 = vpack.c.bf16 %v4671, %v4670
      %v4703 = vpack.c.bf16 %v4673, %v4672
      %v4704 = vpack.c.bf16 %v4675, %v4674
      %v4705 = vpack.c.bf16 %v4677, %v4676
      %v4706 = vpack.c.bf16 %v4679, %v4678
      %v4707 = vpack.c.bf16 %v4681, %v4680
      %v4708 = vpack.c.bf16 %v4683, %v4682
      %v4709 = vpack.c.bf16 %v4685, %v4684
      %v4710 = vpack.c.bf16 %v4687, %v4686
      %v4711 = vpack.c.bf16 %v4689, %v4688
      %v4712 = vpack.c.bf16 %v4691, %v4690
      %v4713 = vpack.c.bf16 %v4693, %v4692
      %v4714 = vpack.c.bf16 %v4695, %v4694
      %v4715 = vpack.c.bf16 %v4697, %v4696
      %v4716 = vpack.c.bf16 %v4699, %v4698
      %v4717 = vpack.c.bf16 %v4701, %v4700
      %s4718 = scalar_lea.vmem %s4, 32
      %v4719 = vld [vmem:[%s4718] sm:$0xf]
      %v4721 = vsel %vm2300, %v4702, 0
      %v4724 = vsel %vm2300, %v4703, 0
      %v4727 = vsel %vm2300, %v4704, 0
      %v4730 = vsel %vm2300, %v4705, 0
      %v4733 = vsel %vm2300, %v4706, 0
      %v4736 = vsel %vm2300, %v4707, 0
      %v4739 = vsel %vm2300, %v4708, 0
      %v4742 = vsel %vm2300, %v4709, 0
      %v4745 = vsel %vm2300, %v4710, 0
      %v4748 = vsel %vm2300, %v4711, 0
      %v4751 = vsel %vm2300, %v4712, 0
      %v4754 = vsel %vm2300, %v4713, 0
      %v4757 = vsel %vm2300, %v4714, 0
      %v4760 = vsel %vm2300, %v4715, 0
      %v4763 = vsel %vm2300, %v4716, 0
      %v4766 = vsel %vm2300, %v4717, 0
      %v4769 = vsel %vm2528, %v4719, 0
      %4771 = vmatprep.subr.bf16.mxu0 0
      %4772 = vmatpush1.bf16.msra.mxu0 %v4769
      %4773 = vmatprep.subr.bf16.mxu0 0
      %4774 = vmatpush1.bf16.msra.mxu0 0
      %4775 = vmatprep.subr.bf16.mxu0 0
      %4776 = vmatpush1.bf16.msra.mxu0 0
      %4777 = vmatprep.subr.bf16.mxu0 0
      %4778 = vmatpush1.bf16.msra.mxu0 0
      %4779 = vmatprep.subr.bf16.mxu0 0
      %4780 = vmatpush1.bf16.msra.mxu0 0
      %4781 = vmatprep.subr.bf16.mxu0 0
      %4782 = vmatpush1.bf16.msra.mxu0 0
      %4783 = vmatprep.subr.bf16.mxu0 0
      %4784 = vmatpush1.bf16.msra.mxu0 0
      %4785 = vmatprep.subr.bf16.mxu0 0
      %4786 = vmatpush1.bf16.msra.mxu0 0
      %4787 = vmatprep.subr.bf16.mxu0 0
      %4788 = vmatpush1.bf16.msra.mxu0 0
      %4789 = vmatprep.subr.bf16.mxu0 0
      %4790 = vmatpush1.bf16.msra.mxu0 0
      %4791 = vmatprep.subr.bf16.mxu0 0
      %4792 = vmatpush1.bf16.msra.mxu0 0
      %4793 = vmatprep.subr.bf16.mxu0 0
      %4794 = vmatpush1.bf16.msra.mxu0 0
      %4795 = vmatprep.subr.bf16.mxu0 0
      %4796 = vmatpush1.bf16.msra.mxu0 0
      %4797 = vmatprep.subr.bf16.mxu0 0
      %4798 = vmatpush1.bf16.msra.mxu0 0
      %4799 = vmatprep.subr.bf16.mxu0 0
      %4800 = vmatpush1.bf16.msra.mxu0 0
      %4801 = vmatprep.subr.bf16.mxu0 0
      %4802 = vmatpush1.bf16.msra.mxu0 0
      %4803 = vmatprep.mubr.bf16.mxu0 0
      %4804 = vmatmul.mubr.bf16.gmra.mrb[0].mxu0 %v4721
      %v4805 = vpop.f32.mrb[0].mxu0
      %v4806 = vadd.f32 0.0, %v4805
      %v4807 = vpop.f32.mrb[0].mxu0
      %v4808 = vpop.f32.mrb[0].mxu0
      %v4809 = vadd.f32 0.0, %v4808
      %v4810 = vpop.f32.mrb[0].mxu0
      %4811 = vmatprep.mubr.bf16.mxu0 0
      %4812 = vmatmul.mubr.bf16.gmra.mrb[0].mxu0 %v4724
      %v4813 = vpop.f32.mrb[0].mxu0
      %v4814 = vadd.f32 0.0, %v4813
      %v4815 = vpop.f32.mrb[0].mxu0
      %v4816 = vpop.f32.mrb[0].mxu0
      %v4817 = vadd.f32 0.0, %v4816
      %v4818 = vpop.f32.mrb[0].mxu0
      %4819 = vmatprep.mubr.bf16.mxu0 0
      %4820 = vmatmul.mubr.bf16.gmra.mrb[0].mxu0 %v4727
      %v4821 = vpop.f32.mrb[0].mxu0
      %v4822 = vadd.f32 0.0, %v4821
      %v4823 = vpop.f32.mrb[0].mxu0
      %v4824 = vpop.f32.mrb[0].mxu0
      %v4825 = vadd.f32 0.0, %v4824
      %v4826 = vpop.f32.mrb[0].mxu0
      %4827 = vmatprep.mubr.bf16.mxu0 0
      %4828 = vmatmul.mubr.bf16.gmra.mrb[0].mxu0 %v4730
      %v4829 = vpop.f32.mrb[0].mxu0
      %v4830 = vadd.f32 0.0, %v4829
      %v4831 = vpop.f32.mrb[0].mxu0
      %v4832 = vpop.f32.mrb[0].mxu0
      %v4833 = vadd.f32 0.0, %v4832
      %v4834 = vpop.f32.mrb[0].mxu0
      %4835 = vmatprep.mubr.bf16.mxu0 0
      %4836 = vmatmul.mubr.bf16.gmra.mrb[0].mxu0 %v4733
      %v4837 = vpop.f32.mrb[0].mxu0
      %v4838 = vadd.f32 0.0, %v4837
      %v4839 = vpop.f32.mrb[0].mxu0
      %v4840 = vpop.f32.mrb[0].mxu0
      %v4841 = vadd.f32 0.0, %v4840
      %v4842 = vpop.f32.mrb[0].mxu0
      %4843 = vmatprep.mubr.bf16.mxu0 0
      %4844 = vmatmul.mubr.bf16.gmra.mrb[0].mxu0 %v4736
      %v4845 = vpop.f32.mrb[0].mxu0
      %v4846 = vadd.f32 0.0, %v4845
      %v4847 = vpop.f32.mrb[0].mxu0
      %v4848 = vpop.f32.mrb[0].mxu0
      %v4849 = vadd.f32 0.0, %v4848
      %v4850 = vpop.f32.mrb[0].mxu0
      %4851 = vmatprep.mubr.bf16.mxu0 0
      %4852 = vmatmul.mubr.bf16.gmra.mrb[0].mxu0 %v4739
      %v4853 = vpop.f32.mrb[0].mxu0
      %v4854 = vadd.f32 0.0, %v4853
      %v4855 = vpop.f32.mrb[0].mxu0
      %v4856 = vpop.f32.mrb[0].mxu0
      %v4857 = vadd.f32 0.0, %v4856
      %v4858 = vpop.f32.mrb[0].mxu0
      %4859 = vmatprep.mubr.bf16.mxu0 0
      %4860 = vmatmul.mubr.bf16.gmra.mrb[0].mxu0 %v4742
      %v4861 = vpop.f32.mrb[0].mxu0
      %v4862 = vadd.f32 0.0, %v4861
      %v4863 = vpop.f32.mrb[0].mxu0
      %v4864 = vpop.f32.mrb[0].mxu0
      %v4865 = vadd.f32 0.0, %v4864
      %v4866 = vpop.f32.mrb[0].mxu0
      %4867 = vmatprep.mubr.bf16.mxu0 0
      %4868 = vmatmul.mubr.bf16.gmra.mrb[0].mxu0 %v4745
      %v4869 = vpop.f32.mrb[0].mxu0
      %v4870 = vadd.f32 0.0, %v4869
      %v4871 = vpop.f32.mrb[0].mxu0
      %v4872 = vpop.f32.mrb[0].mxu0
      %v4873 = vadd.f32 0.0, %v4872
      %v4874 = vpop.f32.mrb[0].mxu0
      %4875 = vmatprep.mubr.bf16.mxu0 0
      %4876 = vmatmul.mubr.bf16.gmra.mrb[0].mxu0 %v4748
      %v4877 = vpop.f32.mrb[0].mxu0
      %v4878 = vadd.f32 0.0, %v4877
      %v4879 = vpop.f32.mrb[0].mxu0
      %v4880 = vpop.f32.mrb[0].mxu0
      %v4881 = vadd.f32 0.0, %v4880
      %v4882 = vpop.f32.mrb[0].mxu0
      %4883 = vmatprep.mubr.bf16.mxu0 0
      %4884 = vmatmul.mubr.bf16.gmra.mrb[0].mxu0 %v4751
      %v4885 = vpop.f32.mrb[0].mxu0
      %v4886 = vadd.f32 0.0, %v4885
      %v4887 = vpop.f32.mrb[0].mxu0
      %v4888 = vpop.f32.mrb[0].mxu0
      %v4889 = vadd.f32 0.0, %v4888
      %v4890 = vpop.f32.mrb[0].mxu0
      %4891 = vmatprep.mubr.bf16.mxu0 0
      %4892 = vmatmul.mubr.bf16.gmra.mrb[0].mxu0 %v4754
      %v4893 = vpop.f32.mrb[0].mxu0
      %v4894 = vadd.f32 0.0, %v4893
      %v4895 = vpop.f32.mrb[0].mxu0
      %v4896 = vpop.f32.mrb[0].mxu0
      %v4897 = vadd.f32 0.0, %v4896
      %v4898 = vpop.f32.mrb[0].mxu0
      %4899 = vmatprep.mubr.bf16.mxu0 0
      %4900 = vmatmul.mubr.bf16.gmra.mrb[0].mxu0 %v4757
      %v4901 = vpop.f32.mrb[0].mxu0
      %v4902 = vadd.f32 0.0, %v4901
      %v4903 = vpop.f32.mrb[0].mxu0
      %v4904 = vpop.f32.mrb[0].mxu0
      %v4905 = vadd.f32 0.0, %v4904
      %v4906 = vpop.f32.mrb[0].mxu0
      %4907 = vmatprep.mubr.bf16.mxu0 0
      %4908 = vmatmul.mubr.bf16.gmra.mrb[0].mxu0 %v4760
      %v4909 = vpop.f32.mrb[0].mxu0
      %v4910 = vadd.f32 0.0, %v4909
      %v4911 = vpop.f32.mrb[0].mxu0
      %v4912 = vpop.f32.mrb[0].mxu0
      %v4913 = vadd.f32 0.0, %v4912
      %v4914 = vpop.f32.mrb[0].mxu0
      %4915 = vmatprep.mubr.bf16.mxu0 0
      %4916 = vmatmul.mubr.bf16.gmra.mrb[0].mxu0 %v4763
      %v4917 = vpop.f32.mrb[0].mxu0
      %v4918 = vadd.f32 0.0, %v4917
      %v4919 = vpop.f32.mrb[0].mxu0
      %v4920 = vpop.f32.mrb[0].mxu0
      %v4921 = vadd.f32 0.0, %v4920
      %v4922 = vpop.f32.mrb[0].mxu0
      %4923 = vmatprep.mubr.bf16.mxu0 0
      %4924 = vmatmul.mubr.bf16.gmra.mrb[0].mxu0 %v4766
      %v4925 = vpop.f32.mrb[0].mxu0
      %v4926 = vadd.f32 0.0, %v4925
      %v4927 = vpop.f32.mrb[0].mxu0
      %v4928 = vpop.f32.mrb[0].mxu0
      %v4929 = vadd.f32 0.0, %v4928
      %v4930 = vpop.f32.mrb[0].mxu0
      %4931 = vdwg.mxu0
      %v4932 = vadd.f32 %v4638, %v4806
      %v4933 = vadd.f32 %v4639, %v4809
      %v4934 = vadd.f32 %v4640, %v4814
      %v4935 = vadd.f32 %v4641, %v4817
      %v4936 = vadd.f32 %v4642, %v4822
      %v4937 = vadd.f32 %v4643, %v4825
      %v4938 = vadd.f32 %v4644, %v4830
      %v4939 = vadd.f32 %v4645, %v4833
      %v4940 = vadd.f32 %v4646, %v4838
      %v4941 = vadd.f32 %v4647, %v4841
      %v4942 = vadd.f32 %v4648, %v4846
      %v4943 = vadd.f32 %v4649, %v4849
      %v4944 = vadd.f32 %v4650, %v4854
      %v4945 = vadd.f32 %v4651, %v4857
      %v4946 = vadd.f32 %v4652, %v4862
      %v4947 = vadd.f32 %v4653, %v4865
      %v4948 = vadd.f32 %v4654, %v4870
      %v4949 = vadd.f32 %v4655, %v4873
      %v4950 = vadd.f32 %v4656, %v4878
      %v4951 = vadd.f32 %v4657, %v4881
      %v4952 = vadd.f32 %v4658, %v4886
      %v4953 = vadd.f32 %v4659, %v4889
      %v4954 = vadd.f32 %v4660, %v4894
      %v4955 = vadd.f32 %v4661, %v4897
      %v4956 = vadd.f32 %v4662, %v4902
      %v4957 = vadd.f32 %v4663, %v4905
      %v4958 = vadd.f32 %v4664, %v4910
      %v4959 = vadd.f32 %v4665, %v4913
      %v4960 = vadd.f32 %v4666, %v4918
      %v4961 = vadd.f32 %v4667, %v4921
      %v4962 = vadd.f32 %v4668, %v4926
      %v4963 = vadd.f32 %v4669, %v4929
      %v4965 = vlaneseq
      %v4966 = vshrl.u32 %v4965, 7
      %v4967 = vsub.s32 0, %v4966
      %v4968 = vrot.slane %v2379, %v4967
      %v4970 = vmul.f32 %v4932, %v4968
      %v4971 = vmul.f32 %v4933, %v4968
      %v4972 = vmul.f32 %v4934, %v4968
      %v4973 = vmul.f32 %v4935, %v4968
      %v4974 = vmul.f32 %v4936, %v4968
      %v4975 = vmul.f32 %v4937, %v4968
      %v4976 = vmul.f32 %v4938, %v4968
      %v4977 = vmul.f32 %v4939, %v4968
      %v4978 = vmul.f32 %v4940, %v4968
      %v4979 = vmul.f32 %v4941, %v4968
      %v4980 = vmul.f32 %v4942, %v4968
      %v4981 = vmul.f32 %v4943, %v4968
      %v4982 = vmul.f32 %v4944, %v4968
      %v4983 = vmul.f32 %v4945, %v4968
      %v4984 = vmul.f32 %v4946, %v4968
      %v4985 = vmul.f32 %v4947, %v4968
      %v4986 = vmul.f32 %v4948, %v4968
      %v4987 = vmul.f32 %v4949, %v4968
      %v4988 = vmul.f32 %v4950, %v4968
      %v4989 = vmul.f32 %v4951, %v4968
      %v4990 = vmul.f32 %v4952, %v4968
      %v4991 = vmul.f32 %v4953, %v4968
      %v4992 = vmul.f32 %v4954, %v4968
      %v4993 = vmul.f32 %v4955, %v4968
      %v4994 = vmul.f32 %v4956, %v4968
      %v4995 = vmul.f32 %v4957, %v4968
      %v4996 = vmul.f32 %v4958, %v4968
      %v4997 = vmul.f32 %v4959, %v4968
      %v4998 = vmul.f32 %v4960, %v4968
      %v4999 = vmul.f32 %v4961, %v4968
      %v5000 = vmul.f32 %v4962, %v4968
      %v5001 = vmul.f32 %v4963, %v4968
      %v5003 = vlaneseq
      %v5004 = vshrl.u32 %v5003, 7
      %v5005 = vsub.s32 0, %v5004
      %v5006 = vrot.slane %v2380, %v5005
      %v5008 = vadd.f32 %v4970, %v5006
      %v5009 = vadd.f32 %v4971, %v5006
      %v5010 = vadd.f32 %v4972, %v5006
      %v5011 = vadd.f32 %v4973, %v5006
      %v5012 = vadd.f32 %v4974, %v5006
      %v5013 = vadd.f32 %v4975, %v5006
      %v5014 = vadd.f32 %v4976, %v5006
      %v5015 = vadd.f32 %v4977, %v5006
      %v5016 = vadd.f32 %v4978, %v5006
      %v5017 = vadd.f32 %v4979, %v5006
      %v5018 = vadd.f32 %v4980, %v5006
      %v5019 = vadd.f32 %v4981, %v5006
      %v5020 = vadd.f32 %v4982, %v5006
      %v5021 = vadd.f32 %v4983, %v5006
      %v5022 = vadd.f32 %v4984, %v5006
      %v5023 = vadd.f32 %v4985, %v5006
      %v5024 = vadd.f32 %v4986, %v5006
      %v5025 = vadd.f32 %v4987, %v5006
      %v5026 = vadd.f32 %v4988, %v5006
      %v5027 = vadd.f32 %v4989, %v5006
      %v5028 = vadd.f32 %v4990, %v5006
      %v5029 = vadd.f32 %v4991, %v5006
      %v5030 = vadd.f32 %v4992, %v5006
      %v5031 = vadd.f32 %v4993, %v5006
      %v5032 = vadd.f32 %v4994, %v5006
      %v5033 = vadd.f32 %v4995, %v5006
      %v5034 = vadd.f32 %v4996, %v5006
      %v5035 = vadd.f32 %v4997, %v5006
      %v5036 = vadd.f32 %v4998, %v5006
      %v5037 = vadd.f32 %v4999, %v5006
      %v5038 = vadd.f32 %v5000, %v5006
      %v5039 = vadd.f32 %v5001, %v5006
      %v5040 = vadd.f32 %v5008, %v2268
      %v5041 = vadd.f32 %v5009, %v2269
      %v5042 = vadd.f32 %v5010, %v2270
      %v5043 = vadd.f32 %v5011, %v2271
      %v5044 = vadd.f32 %v5012, %v2272
      %v5045 = vadd.f32 %v5013, %v2273
      %v5046 = vadd.f32 %v5014, %v2274
      %v5047 = vadd.f32 %v5015, %v2275
      %v5048 = vadd.f32 %v5016, %v2276
      %v5049 = vadd.f32 %v5017, %v2277
      %v5050 = vadd.f32 %v5018, %v2278
      %v5051 = vadd.f32 %v5019, %v2279
      %v5052 = vadd.f32 %v5020, %v2280
      %v5053 = vadd.f32 %v5021, %v2281
      %v5054 = vadd.f32 %v5022, %v2282
      %v5055 = vadd.f32 %v5023, %v2283
      %v5056 = vadd.f32 %v5024, %v2284
      %v5057 = vadd.f32 %v5025, %v2285
      %v5058 = vadd.f32 %v5026, %v2286
      %v5059 = vadd.f32 %v5027, %v2287
      %v5060 = vadd.f32 %v5028, %v2288
      %v5061 = vadd.f32 %v5029, %v2289
      %v5062 = vadd.f32 %v5030, %v2290
      %v5063 = vadd.f32 %v5031, %v2291
      %v5064 = vadd.f32 %v5032, %v2292
      %v5065 = vadd.f32 %v5033, %v2293
      %v5066 = vadd.f32 %v5034, %v2294
      %v5067 = vadd.f32 %v5035, %v2295
      %v5068 = vadd.f32 %v5036, %v2296
      %v5069 = vadd.f32 %v5037, %v2297
      %v5070 = vadd.f32 %v5038, %v2298
      %v5071 = vadd.f32 %v5039, %v2299
      %v5072 = vmax.f32 %v5040, 0.0
      %v5073 = vmax.f32 %v5041, 0.0
      %v5074 = vmax.f32 %v5042, 0.0
      %v5075 = vmax.f32 %v5043, 0.0
      %v5076 = vmax.f32 %v5044, 0.0
      %v5077 = vmax.f32 %v5045, 0.0
      %v5078 = vmax.f32 %v5046, 0.0
      %v5079 = vmax.f32 %v5047, 0.0
      %v5080 = vmax.f32 %v5048, 0.0
      %v5081 = vmax.f32 %v5049, 0.0
      %v5082 = vmax.f32 %v5050, 0.0
      %v5083 = vmax.f32 %v5051, 0.0
      %v5084 = vmax.f32 %v5052, 0.0
      %v5085 = vmax.f32 %v5053, 0.0
      %v5086 = vmax.f32 %v5054, 0.0
      %v5087 = vmax.f32 %v5055, 0.0
      %v5088 = vmax.f32 %v5056, 0.0
      %v5089 = vmax.f32 %v5057, 0.0
      %v5090 = vmax.f32 %v5058, 0.0
      %v5091 = vmax.f32 %v5059, 0.0
      %v5092 = vmax.f32 %v5060, 0.0
      %v5093 = vmax.f32 %v5061, 0.0
      %v5094 = vmax.f32 %v5062, 0.0
      %v5095 = vmax.f32 %v5063, 0.0
      %v5096 = vmax.f32 %v5064, 0.0
      %v5097 = vmax.f32 %v5065, 0.0
      %v5098 = vmax.f32 %v5066, 0.0
      %v5099 = vmax.f32 %v5067, 0.0
      %v5100 = vmax.f32 %v5068, 0.0
      %v5101 = vmax.f32 %v5069, 0.0
      %v5102 = vmax.f32 %v5070, 0.0
      %v5103 = vmax.f32 %v5071, 0.0
      %v5104 = vpack.c.bf16 %v5073, %v5072
      %v5105 = vpack.c.bf16 %v5075, %v5074
      %v5106 = vpack.c.bf16 %v5077, %v5076
      %v5107 = vpack.c.bf16 %v5079, %v5078
      %v5108 = vpack.c.bf16 %v5081, %v5080
      %v5109 = vpack.c.bf16 %v5083, %v5082
      %v5110 = vpack.c.bf16 %v5085, %v5084
      %v5111 = vpack.c.bf16 %v5087, %v5086
      %v5112 = vpack.c.bf16 %v5089, %v5088
      %v5113 = vpack.c.bf16 %v5091, %v5090
      %v5114 = vpack.c.bf16 %v5093, %v5092
      %v5115 = vpack.c.bf16 %v5095, %v5094
      %v5116 = vpack.c.bf16 %v5097, %v5096
      %v5117 = vpack.c.bf16 %v5099, %v5098
      %v5118 = vpack.c.bf16 %v5101, %v5100
      %v5119 = vpack.c.bf16 %v5103, %v5102
      %v5136 = vunpack.c.l.b16 %v5104
      %v5137 = vunpack.c.h.b16 %v5104
      %v5138 = vunpack.c.l.b16 %v5105
      %v5139 = vunpack.c.h.b16 %v5105
      %v5140 = vunpack.c.l.b16 %v5106
      %v5141 = vunpack.c.h.b16 %v5106
      %v5142 = vunpack.c.l.b16 %v5107
      %v5143 = vunpack.c.h.b16 %v5107
      %v5144 = vunpack.c.l.b16 %v5108
      %v5145 = vunpack.c.h.b16 %v5108
      %v5146 = vunpack.c.l.b16 %v5109
      %v5147 = vunpack.c.h.b16 %v5109
      %v5148 = vunpack.c.l.b16 %v5110
      %v5149 = vunpack.c.h.b16 %v5110
      %v5150 = vunpack.c.l.b16 %v5111
      %v5151 = vunpack.c.h.b16 %v5111
      %v5152 = vunpack.c.l.b16 %v5112
      %v5153 = vunpack.c.h.b16 %v5112
      %v5154 = vunpack.c.l.b16 %v5113
      %v5155 = vunpack.c.h.b16 %v5113
      %v5156 = vunpack.c.l.b16 %v5114
      %v5157 = vunpack.c.h.b16 %v5114
      %v5158 = vunpack.c.l.b16 %v5115
      %v5159 = vunpack.c.h.b16 %v5115
      %v5160 = vunpack.c.l.b16 %v5116
      %v5161 = vunpack.c.h.b16 %v5116
      %v5162 = vunpack.c.l.b16 %v5117
      %v5163 = vunpack.c.h.b16 %v5117
      %v5164 = vunpack.c.l.b16 %v5118
      %v5165 = vunpack.c.h.b16 %v5118
      %v5166 = vunpack.c.l.b16 %v5119
      %v5167 = vunpack.c.h.b16 %v5119
      %v5168 = vpack.c.b16 %v5136, %v5136
      %v5169 = vpack.c.b16 %v5137, %v5137
      %v5170 = vpack.c.b16 %v5138, %v5138
      %v5171 = vpack.c.b16 %v5139, %v5139
      %v5172 = vpack.c.b16 %v5140, %v5140
      %v5173 = vpack.c.b16 %v5141, %v5141
      %v5174 = vpack.c.b16 %v5142, %v5142
      %v5175 = vpack.c.b16 %v5143, %v5143
      %v5176 = vpack.c.b16 %v5144, %v5144
      %v5177 = vpack.c.b16 %v5145, %v5145
      %v5178 = vpack.c.b16 %v5146, %v5146
      %v5179 = vpack.c.b16 %v5147, %v5147
      %v5180 = vpack.c.b16 %v5148, %v5148
      %v5181 = vpack.c.b16 %v5149, %v5149
      %v5182 = vpack.c.b16 %v5150, %v5150
      %v5183 = vpack.c.b16 %v5151, %v5151
      %v5184 = vpack.c.b16 %v5152, %v5152
      %v5185 = vpack.c.b16 %v5153, %v5153
      %v5186 = vpack.c.b16 %v5154, %v5154
      %v5187 = vpack.c.b16 %v5155, %v5155
      %v5188 = vpack.c.b16 %v5156, %v5156
      %v5189 = vpack.c.b16 %v5157, %v5157
      %v5190 = vpack.c.b16 %v5158, %v5158
      %v5191 = vpack.c.b16 %v5159, %v5159
      %v5192 = vpack.c.b16 %v5160, %v5160
      %v5193 = vpack.c.b16 %v5161, %v5161
      %v5194 = vpack.c.b16 %v5162, %v5162
      %v5195 = vpack.c.b16 %v5163, %v5163
      %v5196 = vpack.c.b16 %v5164, %v5164
      %v5197 = vpack.c.b16 %v5165, %v5165
      %v5198 = vpack.c.b16 %v5166, %v5166
      %v5199 = vpack.c.b16 %v5167, %v5167
      %vm5232 = vcmask 60416
      %5233 = vst.msk [vmem:[%s359] sm:$0xf] %vm5232, %v5168
      %5234 = vst.msk [vmem:[%s359 + $0x4] sm:$0xf] %vm5232, %v5169
      %5235 = vst.msk [vmem:[%s359 + $0x8] sm:$0xf] %vm5232, %v5170
      %5236 = vst.msk [vmem:[%s359 + $0xc] sm:$0xf] %vm5232, %v5171
      %5237 = vst.msk [vmem:[%s359 + $0x10] sm:$0xf] %vm5232, %v5172
      %5238 = vst.msk [vmem:[%s359 + $0x14] sm:$0xf] %vm5232, %v5173
      %5239 = vst.msk [vmem:[%s359 + $0x18] sm:$0xf] %vm5232, %v5174
      %5240 = vst.msk [vmem:[%s359 + $0x1c] sm:$0xf] %vm5232, %v5175
      %5241 = vst.msk [vmem:[%s359 + $0x20] sm:$0xf] %vm5232, %v5176
      %5242 = vst.msk [vmem:[%s359 + $0x24] sm:$0xf] %vm5232, %v5177
      %5243 = vst.msk [vmem:[%s359 + $0x28] sm:$0xf] %vm5232, %v5178
      %5244 = vst.msk [vmem:[%s359 + $0x2c] sm:$0xf] %vm5232, %v5179
      %5245 = vst.msk [vmem:[%s359 + $0x30] sm:$0xf] %vm5232, %v5180
      %5246 = vst.msk [vmem:[%s359 + $0x34] sm:$0xf] %vm5232, %v5181
      %5247 = vst.msk [vmem:[%s359 + $0x38] sm:$0xf] %vm5232, %v5182
      %5248 = vst.msk [vmem:[%s359 + $0x3c] sm:$0xf] %vm5232, %v5183
      %5249 = vst.msk [vmem:[%s359 + $0x40] sm:$0xf] %vm5232, %v5184
      %5250 = vst.msk [vmem:[%s359 + $0x44] sm:$0xf] %vm5232, %v5185
      %5251 = vst.msk [vmem:[%s359 + $0x48] sm:$0xf] %vm5232, %v5186
      %5252 = vst.msk [vmem:[%s359 + $0x4c] sm:$0xf] %vm5232, %v5187
      %5253 = vst.msk [vmem:[%s359 + $0x50] sm:$0xf] %vm5232, %v5188
      %5254 = vst.msk [vmem:[%s359 + $0x54] sm:$0xf] %vm5232, %v5189
      %5255 = vst.msk [vmem:[%s359 + $0x58] sm:$0xf] %vm5232, %v5190
      %5256 = vst.msk [vmem:[%s359 + $0x5c] sm:$0xf] %vm5232, %v5191
      %5257 = vst.msk [vmem:[%s359 + $0x60] sm:$0xf] %vm5232, %v5192
      %5258 = vst.msk [vmem:[%s359 + $0x64] sm:$0xf] %vm5232, %v5193
      %5259 = vst.msk [vmem:[%s359 + $0x68] sm:$0xf] %vm5232, %v5194
      %5260 = vst.msk [vmem:[%s359 + $0x6c] sm:$0xf] %vm5232, %v5195
      %5261 = vst.msk [vmem:[%s359 + $0x70] sm:$0xf] %vm5232, %v5196
      %5262 = vst.msk [vmem:[%s359 + $0x74] sm:$0xf] %vm5232, %v5197
      %5263 = vst.msk [vmem:[%s359 + $0x78] sm:$0xf] %vm5232, %v5198
      %5264 = vst.msk [vmem:[%s359 + $0x7c] sm:$0xf] %vm5232, %v5199
      %p5265 = scmp.lt.s32.totalorder %s21, 1
      %s5266 = scalar_select %p5265, %s21, 1
      %s5267 = smul.addr %s5266, 32
      %s5268 = smul.addr %s5267, 4
      %s5269 = scalar_lea.vmem %s10, %s5268
      // Predicated region
      $region61: #{tpu_custom_call.1} parent=59 // pred_check
        %p5270 = pneg %p254
      $region62: #{tpu_custom_call.1} parent=59 // pred_check_branch
        %5272 = sbr.rel (%p5270) target = $region64
      $region63: #{tpu_custom_call.1} parent=59 // pred_region
        _
      $region64: #{tpu_custom_call.1} parent=59 // pred_fallthru
        _
    $region60: #{tpu_custom_call.1} parent=5 // pred_fallthru
      _
    %p5273 = scmp.le.s32.totalorder 2, %s16
    // Predicated region
    $region65: #{tpu_custom_call.1} parent=5 // pred_check
      %p5274 = pneg %p5273
    $region66: #{tpu_custom_call.1} parent=5 // pred_check_branch
      %5276 = sbr.rel (%p5274) target = $region68
    $region67: #{tpu_custom_call.1} parent=5 // pred_region
      %s5277 = ssub.s32 %s16, 2
      // Predicated region
      $region69: #{tpu_custom_call.1} parent=67 // pred_check
        %p5278 = pneg %p260
      $region70: #{tpu_custom_call.1} parent=67 // pred_check_branch
        %5280 = sbr.rel (%p5278) target = $region72
      $region71: #{tpu_custom_call.1} parent=67 // pred_region
        %p5281 = scmp.lt.s32.totalorder %s22, 1
        %s5282 = scalar_select %p5281, %s22, 1
        %s5283 = smul.addr %s5282, 32
        %s5284 = smul.addr %s5283, 4
        %s5285 = scalar_lea.vmem %s10, %s5284
      $region72: #{tpu_custom_call.1} parent=67 // pred_fallthru
        _
    $region68: #{tpu_custom_call.1} parent=5 // pred_fallthru
      _
  $region6: #{tpu_custom_call.1} parent=0 // loop_footer
    %s20 = sadd.s32 1, %s16
  $region7: #{tpu_custom_call.1} parent=0 // loop_footer_branch
    %15 = sbr.rel target = $region3
  $region8: #{tpu_custom_call.1} parent=0 // loop_exit
    _

</llo_original>
